<compile_context>
chip_gen: v7x
topology: tpu7x:2x2x1
jax: 0.10.0
libtpu: 0.0.40
codegen_flags: <defaults>
</compile_context>

<pallas_src>
import jax
import jax.numpy as jnp
from jax.experimental import pallas as pl
from jax.experimental.pallas import tpu as pltpu


def _upsample_kernel(stride):
    def kernel(x_ref, o_ref):
        x = x_ref[...]                      # (C_blk, H, W) block for this (b, c-block)
        c, H, W = x.shape
        # nearest-neighbor: (C,H,W) -> (C,H,1,W,1) -> (C,H,s,W,s) -> (C,H*s,W*s)
        y = jnp.broadcast_to(x[:, :, None, :, None], (c, H, stride, W, stride))
        o_ref[...] = y.reshape(c, H * stride, W * stride)
    return kernel


def _largest_divisor_at_most(n, cap):
    cap = max(1, min(n, cap))
    for d in range(cap, 0, -1):
        if n % d == 0:
            return d
    return 1


def _choose_c_block(B, C, H, W, stride, itemsize,
                    double_buffered_budget_bytes=16 * 1024 * 1024):
    """Pick how many channels to fold into one grid step."""
    # bytes per channel for (input block + output block); x2 for double buffering.
    per_c = H * W * itemsize * (1 + stride * stride)
    max_c = max(1, double_buffered_budget_bytes // (2 * per_c))
    c_blk = _largest_divisor_at_most(C, max_c)
    # Keep >= 2 grid programs when possible so v7x (2 TensorCores) can shard the
    # "parallel" grid axes across cores.  No-op cost-wise on v5e/v6e (1 TC).
    if B * (C // c_blk) == 1 and C > 1:
        c_blk = _largest_divisor_at_most(C, max(1, c_blk // 2))
    return c_blk


def upsample(x, stride=2):
    """Nearest-neighbor upsample of an NCHW tensor by `stride` along H and W."""
    assert x.ndim == 4
    B, C, H, W = x.shape
    Ho, Wo = H * stride, W * stride
    itemsize = jnp.dtype(x.dtype).itemsize

    # Assumes one channel's (in + out) spatial planes fit the VMEM budget (true for all
    # YOLOv3 upsample layers: 13x13 / 26x26 feature maps).
    c_blk = _choose_c_block(B, C, H, W, stride, itemsize)
    n_c_blocks = C // c_blk

    cost = pl.CostEstimate(
        flops=0,
        transcendentals=0,
        bytes_accessed=int(x.size) * itemsize * (1 + stride * stride),
    )

    return pl.pallas_call(
        _upsample_kernel(stride),
        out_shape=jax.ShapeDtypeStruct((B, C, Ho, Wo), x.dtype),
        grid_spec=pltpu.PrefetchScalarGridSpec(
            num_scalar_prefetch=0,
            grid=(B, n_c_blocks),
            in_specs=[
                # None => squeeze the batch block dim; kernel sees (C_blk, H, W)
                pl.BlockSpec((None, c_blk, H, W), lambda b, cb: (b, cb, 0, 0)),
            ],
            out_specs=pl.BlockSpec(
                (None, c_blk, Ho, Wo), lambda b, cb: (b, cb, 0, 0)
            ),
        ),
        compiler_params=pltpu.CompilerParams(
            dimension_semantics=("parallel", "parallel"),
            vmem_limit_bytes=48 * 1024 * 1024,
        ),
        cost_estimate=cost,
    )(x)


def upsample_ref(x, stride=2):
    B, C, H, W = x.shape
    y = jnp.broadcast_to(x[:, :, :, None, :, None], (B, C, H, stride, W, stride))
    return y.reshape(B, C, H * stride, W * stride)


if __name__ == "__main__":
    key = jax.random.PRNGKey(0)
    B, C, H, W = 2, 4, 16, 16
    x = jax.random.normal(key, (B, C, H, W), dtype=jnp.float32)

    out = jax.block_until_ready(upsample(x, stride=2))

    ref = upsample_ref(x, stride=2)
    assert out.shape == (B, C, 2 * H, 2 * W), out.shape
    assert out.dtype == x.dtype
    assert jnp.allclose(out, ref), "mismatch vs reference"

    print("KERNEL_OK")
</pallas_src>

<mosaic_0001>
module attributes {stable_mosaic.version = 11 : i64} {
  func.func @kernel(%arg0: i32, %arg1: i32, %arg2: memref<1x4x16x16xf32, #tpu.memory_space<vmem>>, %arg3: memref<1x4x32x32xf32, #tpu.memory_space<vmem>>) attributes {dimension_semantics = [#tpu.dimension_semantics<parallel>, #tpu.dimension_semantics<parallel>], iteration_bounds = array<i64: 2, 1>, scalar_prefetch = 0 : i64, scratch_operands = 0 : i64, tpu.core_type = #tpu.core_type<tc>, window_params = [{transform_indices = @transform_0, window_bounds = array<i64: 1, 4, 16, 16>}, {transform_indices = @transform_1, window_bounds = array<i64: 1, 4, 32, 32>}]} {
    %c0 = arith.constant 0 : index
    %c0_0 = arith.constant 0 : index
    %c0_1 = arith.constant 0 : index
    %c0_2 = arith.constant 0 : index
    %0 = vector.load %arg2[%c0, %c0_0, %c0_1, %c0_2] : memref<1x4x16x16xf32, #tpu.memory_space<vmem>>, vector<1x4x16x16xf32>
    %1 = vector.shape_cast %0 : vector<1x4x16x16xf32> to vector<4x16x16xf32>
    %2 = vector.shape_cast %1 : vector<4x16x16xf32> to vector<4x16x1x16x1xf32>
    %3 = vector.shape_cast %2 : vector<4x16x1x16x1xf32> to vector<4x16x1x16x1xf32>
    %4 = vector.broadcast %3 : vector<4x16x1x16x1xf32> to vector<4x16x2x16x2xf32>
    %5 = vector.shape_cast %4 : vector<4x16x2x16x2xf32> to vector<4x32x32xf32>
    %c0_3 = arith.constant 0 : index
    %c0_4 = arith.constant 0 : index
    %c0_5 = arith.constant 0 : index
    %c0_6 = arith.constant 0 : index
    %6 = vector.load %arg3[%c0_3, %c0_4, %c0_5, %c0_6] : memref<1x4x32x32xf32, #tpu.memory_space<vmem>>, vector<1x4x32x32xf32>
    %7 = vector.shape_cast %6 : vector<1x4x32x32xf32> to vector<4x32x32xf32>
    %8 = vector.shape_cast %5 : vector<4x32x32xf32> to vector<1x4x32x32xf32>
    tpu.vector_store %arg3[%c0_3, %c0_4, %c0_5, %c0_6], %8 {strides = array<i32>} : memref<1x4x32x32xf32, #tpu.memory_space<vmem>>, vector<1x4x32x32xf32>,
    return
  }
  func.func @transform_0(%arg0: i32, %arg1: i32) -> (i32, i32, i32, i32) {
    %c0_i32 = arith.constant 0 : i32
    %c0_i32_0 = arith.constant 0 : i32
    %c0_i32_1 = arith.constant 0 : i32
    return %arg0, %arg1, %c0_i32, %c0_i32_0 : i32, i32, i32, i32
  }
  func.func @transform_1(%arg0: i32, %arg1: i32) -> (i32, i32, i32, i32) {
    %c0_i32 = arith.constant 0 : i32
    %c0_i32_0 = arith.constant 0 : i32
    %c0_i32_1 = arith.constant 0 : i32
    return %arg0, %arg1, %c0_i32, %c0_i32_0 : i32, i32, i32, i32
  }
}

</mosaic_0001>

<llo_original>
// kernel: tpu_custom_call.1
$region0: #{tpu_custom_call.1}
  #allocation0 [shape = 'u32[]', space=smem, size = 0x4, offset = 0x4, fixed_abs, tag = 'smem constant byte address 0x4 - core index']
  #allocation1 [shape = 'u32[144,128]{1,0:T(1,128)}', space=vmem, size = 0x12000, scoped, tag = 'internal scratch']
  %s0 = inlined_call_operand.hbm [shape: f32[2,4,16,16], index: 0, kind: input, shape index: {}]
  %s1 = inlined_call_operand.hbm [shape: f32[2,4,32,32], index: 1, kind: output, shape index: {}]
  %s2 = sld [smem:[#allocation0]]
  $region41: #{tpu_custom_call.1} parent=0
    _
  %s4 = ssub.s32 1, %s2
  %s5 = scalar_select 0, %s4, %s2
  $region1: #{tpu_custom_call.1} parent=0
    #allocation2 [shape = 'u8[65536]{0}', space=vmem, size = 0x10000, scoped, tag = 'input window, operand 0']
    #allocation3 [shape = 's32[2]{0}', space=sflag, size = 0x8, scoped, tag = 'scoped memory for tpu_custom_call.1']
    #allocation4 [shape = 's32[2]{0}', space=sflag, size = 0x8, scoped, tag = 'scoped memory for tpu_custom_call.1']
    #allocation5 [shape = 'u8[131072]{0}', space=vmem, size = 0x20000, scoped, tag = 'output window, operand 0']
    %6 = vsyncpa [#allocation3], 0
    %s7 = scalar_lea.sflag [#allocation3], 1
    %8 = vsyncpa %s7, 0
    %9 = vsyncpa [#allocation4], 0
    %s10 = scalar_lea.sflag [#allocation4], 1
    %11 = vsyncpa %s10, 0
    loop: start=0, step=1, limit=4
    $region2: #{tpu_custom_call.1} parent=1 // loop_pre_header
      _
    $region3: #{tpu_custom_call.1} parent=1 // loop_header
      %s13 = sphi 0, %s17
      %p14 = scmp.ge.s32.totalorder %s13, 4
      %s20 = sphi 0, %s32
      %s21 = sphi 0, %s28
      %s22 = sphi 0, %s20
      %s23 = sphi 0, %s21
      %s24 = sphi 0, %s22
      %s25 = sphi 0, %s23
      %s37 = sphi 0, %s39
      %s40 = sphi 0, %s37
      %s41 = sphi 0, %s40
      %s57 = sphi 0, %s41
      %s65 = sphi 0, %s67
      %s68 = sphi 0, %s65
      %s69 = sphi 0, %s68
      %s85 = sphi 0, %s69
    $region4: #{tpu_custom_call.1} parent=1 // loop_header_branch
      %16 = sbr.rel (%p14) target = $region8
    $region5: #{tpu_custom_call.1} parent=1 // loop_body
      %s18 = ssub.s32 %s13, 1
      %s19 = ssub.s32 %s13, 2
      %s26 = sadd.s32 1, %s21
      %p27 = scmp.ge.s32.totalorder %s26, 1
      %s28 = scalar_select %p27, 0, %s26
      %s29 = sadd.s32 1, %s20
      %s30 = scalar_select %p27, %s29, %s20
      %p31 = scmp.ge.s32.totalorder %s30, 2
      %s32 = scalar_select %p31, 0, %s30
      %s33 = ssub.s32 %s20, %s32
      %s34 = ssub.s32 %s21, %s28
      %s35 = sor.u32 %s33, %s34
      %p36 = scmp.eq.s32.totalorder %s35, 0
      %s38 = sadd.s32 %s37, 1
      %s39 = scalar_select %p36, %s37, %s38
      %p42 = pneg %p36
      %p43 = scmp.eq.s32.totalorder %s13, 1
      %p44 = por %p42, %p43
      %p45 = scmp.ne.s32.totalorder %s37, %s40
      %p46 = scmp.eq.s32.totalorder %s13, 0
      %p47 = por %p45, %p46
      %p48 = scmp.ne.s32.totalorder %s37, %s40
      %p49 = scmp.eq.s32.totalorder %s18, 1
      %p50 = por %p48, %p49
      %p51 = scmp.ne.s32.totalorder %s40, %s41
      %p52 = scmp.eq.s32.totalorder %s18, 0
      %p53 = por %p51, %p52
      %p54 = scmp.ne.s32.totalorder %s40, %s41
      %p55 = scmp.eq.s32.totalorder %s19, 1
      %p56 = por %p54, %p55
      %p58 = scmp.ne.s32.totalorder %s41, %s57
      %p59 = scmp.eq.s32.totalorder %s19, 0
      %p60 = por %p58, %p59
      %s61 = ssub.s32 %s20, %s32
      %s62 = ssub.s32 %s21, %s28
      %s63 = sor.u32 %s61, %s62
      %p64 = scmp.eq.s32.totalorder %s63, 0
      %s66 = sadd.s32 %s65, 1
      %s67 = scalar_select %p64, %s65, %s66
      %p70 = pneg %p64
      %p71 = scmp.eq.s32.totalorder %s13, 1
      %p72 = por %p70, %p71
      %p73 = scmp.ne.s32.totalorder %s65, %s68
      %p74 = scmp.eq.s32.totalorder %s13, 0
      %p75 = por %p73, %p74
      %p76 = scmp.ne.s32.totalorder %s65, %s68
      %p77 = scmp.eq.s32.totalorder %s18, 1
      %p78 = por %p76, %p77
      %p79 = scmp.ne.s32.totalorder %s68, %s69
      %p80 = scmp.eq.s32.totalorder %s18, 0
      %p81 = por %p79, %p80
      %p82 = scmp.ne.s32.totalorder %s68, %s69
      %p83 = scmp.eq.s32.totalorder %s19, 1
      %p84 = por %p82, %p83
      %p86 = scmp.ne.s32.totalorder %s69, %s85
      %p87 = scmp.eq.s32.totalorder %s19, 0
      %p88 = por %p86, %p87
      %p89 = scmp.le.s32.totalorder 1, %s13
      %p90 = scmp.lt.s32.totalorder %s13, 3
      %p91 = pnand %p89, %p90
      %p92 = pneg %p91
      // Predicated region
      $region9: #{tpu_custom_call.1} parent=5 // pred_check
        _
      $region10: #{tpu_custom_call.1} parent=5 // pred_check_branch
        %94 = sbr.rel (%p91) target = $region12
      $region11: #{tpu_custom_call.1} parent=5 // pred_region
        %s95 = ssub.s32 %s13, 1
      $region12: #{tpu_custom_call.1} parent=5 // pred_fallthru
        _
      %p96 = scmp.lt.s32.totalorder %s13, 2
      // Predicated region
      $region13: #{tpu_custom_call.1} parent=5 // pred_check
        %p97 = pneg %p96
      $region14: #{tpu_custom_call.1} parent=5 // pred_check_branch
        %99 = sbr.rel (%p97) target = $region16
      $region15: #{tpu_custom_call.1} parent=5 // pred_region
        // Predicated region
        $region17: #{tpu_custom_call.1} parent=15 // pred_check
          %p100 = pneg %p47
        $region18: #{tpu_custom_call.1} parent=15 // pred_check_branch
          %102 = sbr.rel (%p100) target = $region20
        $region19: #{tpu_custom_call.1} parent=15 // pred_region
          %s103 = sand.u32 %s37, 1
          %s104 = scalar_lea.sflag [#allocation3], %s103
          %s105 = sand.u32 %s37, 1
          %s106 = smul.addr %s105, 64
          %s107 = scalar_lea.vmem [#allocation2], %s106
          %s108 = smul.u32 4, %s21
          %s110 = ssub.s32 1024, 1024
          %111 = vsyncadd %s104, %s110
          %s112 = smul.addr %s108, 2
          %s113 = smul.addr %s20, 8
          %s114 = sadd.s32 %s112, %s113
          %s115 = smul.addr %s114, 128
          %s116 = scalar_lea.hbm %s0, %s115
          %s117 = sshll.u32 %s107, 4
          %s118 = int_to_ptr.vmem [resolvable:$true] %s117
          %123 = dma.hbm_to_vmem [thread:$0]  %s116, 1024, %s118, %s104, 128, 128, 8
        $region20: #{tpu_custom_call.1} parent=15 // pred_fallthru
          _
      $region16: #{tpu_custom_call.1} parent=5 // pred_fallthru
        _
      %p124 = scmp.le.s32.totalorder 1, %s13
      %p125 = scmp.lt.s32.totalorder %s13, 3
      %p126 = pnand %p124, %p125
      %p127 = pneg %p126
      // Predicated region
      $region21: #{tpu_custom_call.1} parent=5 // pred_check
        _
      $region22: #{tpu_custom_call.1} parent=5 // pred_check_branch
        %129 = sbr.rel (%p126) target = $region24
      $region23: #{tpu_custom_call.1} parent=5 // pred_region
        %s130 = ssub.s32 %s13, 1
        %s131 = sand.u32 %s40, 1
        %s132 = scalar_lea.sflag [#allocation3], %s131
        %s133 = sand.u32 %s40, 1
        %s134 = smul.addr %s133, 64
        %s135 = scalar_lea.vmem [#allocation2], %s134
        // Predicated region
        $region25: #{tpu_custom_call.1} parent=23 // pred_check
          %p136 = pneg %p53
        $region26: #{tpu_custom_call.1} parent=23 // pred_check_branch
          %138 = sbr.rel (%p136) target = $region28
        $region27: #{tpu_custom_call.1} parent=23 // pred_region
          %139 = dma.done %s132, 1024
        $region28: #{tpu_custom_call.1} parent=23 // pred_fallthru
          _
        %s140 = sand.u32 %s40, 1
        %s141 = scalar_lea.sflag [#allocation3], %s140
        %s142 = sand.u32 %s40, 1
        %s143 = smul.addr %s142, 64
        %s144 = scalar_lea.vmem [#allocation2], %s143
        %p145 = pneg %p53
        %p146 = pneg %p50
        %p147 = pneg %p81
        %p148 = pneg %p78
        %s149 = sand.u32 %s68, 1
        %s150 = scalar_lea.sflag [#allocation4], %s149
        %s151 = sand.u32 %s68, 1
        %s152 = smul.addr %s151, 128
        %s153 = scalar_lea.vmem [#allocation5], %s152
        %s154 = smul.u32 4, %s23
        %s155 = smul.u32 4, %s23
        %v156 = vld [vmem:[%s135] sm:$0xff]
        %v157 = vld [vmem:[%s135 + $0x8] sm:$0xff]
        %v158 = vld [vmem:[%s135 + $0x10] sm:$0xff]
        %v159 = vld [vmem:[%s135 + $0x18] sm:$0xff]
        %v160 = vld [vmem:[%s135 + $0x20] sm:$0xff]
        %v161 = vld [vmem:[%s135 + $0x28] sm:$0xff]
        %v162 = vld [vmem:[%s135 + $0x30] sm:$0xff]
        %v163 = vld [vmem:[%s135 + $0x38] sm:$0xff]
        %v164 = vlaneseq
        %v165 = vshrl.u32 %v164, 7
        %v166 = vsub.s32 0, %v165
        %v167 = vrot.slane %v156, %v166
        %169 = vbcast.lane.b32.xlu0 %v167, 256
        %v170 = vpop.permute.xlu0 %169
        %s172 = sor.u32 256, 8
        %173 = vbcast.lane.b32.xlu0 %v167, %s172
        %v174 = vpop.permute.xlu0 %173
        %v175 = vlaneseq
        %v176 = vshrl.u32 %v175, 7
        %v177 = vsub.s32 1, %v176
        %v178 = vrot.slane %v156, %v177
        %180 = vbcast.lane.b32.xlu0 %v178, 256
        %v181 = vpop.permute.xlu0 %180
        %s183 = sor.u32 256, 8
        %184 = vbcast.lane.b32.xlu0 %v178, %s183
        %v185 = vpop.permute.xlu0 %184
        %v186 = vlaneseq
        %v187 = vshrl.u32 %v186, 7
        %v188 = vsub.s32 2, %v187
        %v189 = vrot.slane %v156, %v188
        %191 = vbcast.lane.b32.xlu0 %v189, 256
        %v192 = vpop.permute.xlu0 %191
        %s194 = sor.u32 256, 8
        %195 = vbcast.lane.b32.xlu0 %v189, %s194
        %v196 = vpop.permute.xlu0 %195
        %v197 = vlaneseq
        %v198 = vshrl.u32 %v197, 7
        %v199 = vsub.s32 3, %v198
        %v200 = vrot.slane %v156, %v199
        %202 = vbcast.lane.b32.xlu0 %v200, 256
        %v203 = vpop.permute.xlu0 %202
        %s205 = sor.u32 256, 8
        %206 = vbcast.lane.b32.xlu0 %v200, %s205
        %v207 = vpop.permute.xlu0 %206
        %v208 = vlaneseq
        %v209 = vshrl.u32 %v208, 7
        %v210 = vsub.s32 4, %v209
        %v211 = vrot.slane %v156, %v210
        %213 = vbcast.lane.b32.xlu0 %v211, 256
        %v214 = vpop.permute.xlu0 %213
        %s216 = sor.u32 256, 8
        %217 = vbcast.lane.b32.xlu0 %v211, %s216
        %v218 = vpop.permute.xlu0 %217
        %v219 = vlaneseq
        %v220 = vshrl.u32 %v219, 7
        %v221 = vsub.s32 5, %v220
        %v222 = vrot.slane %v156, %v221
        %224 = vbcast.lane.b32.xlu0 %v222, 256
        %v225 = vpop.permute.xlu0 %224
        %s227 = sor.u32 256, 8
        %228 = vbcast.lane.b32.xlu0 %v222, %s227
        %v229 = vpop.permute.xlu0 %228
        %v230 = vlaneseq
        %v231 = vshrl.u32 %v230, 7
        %v232 = vsub.s32 6, %v231
        %v233 = vrot.slane %v156, %v232
        %235 = vbcast.lane.b32.xlu0 %v233, 256
        %v236 = vpop.permute.xlu0 %235
        %s238 = sor.u32 256, 8
        %239 = vbcast.lane.b32.xlu0 %v233, %s238
        %v240 = vpop.permute.xlu0 %239
        %v241 = vlaneseq
        %v242 = vshrl.u32 %v241, 7
        %v243 = vsub.s32 7, %v242
        %v244 = vrot.slane %v156, %v243
        %246 = vbcast.lane.b32.xlu0 %v244, 256
        %v247 = vpop.permute.xlu0 %246
        %s249 = sor.u32 256, 8
        %250 = vbcast.lane.b32.xlu0 %v244, %s249
        %v251 = vpop.permute.xlu0 %250
        %v252 = vlaneseq
        %v253 = vshrl.u32 %v252, 7
        %v254 = vsub.s32 0, %v253
        %v255 = vrot.slane %v157, %v254
        %257 = vbcast.lane.b32.xlu0 %v255, 256
        %v258 = vpop.permute.xlu0 %257
        %s260 = sor.u32 256, 8
        %261 = vbcast.lane.b32.xlu0 %v255, %s260
        %v262 = vpop.permute.xlu0 %261
        %v263 = vlaneseq
        %v264 = vshrl.u32 %v263, 7
        %v265 = vsub.s32 1, %v264
        %v266 = vrot.slane %v157, %v265
        %268 = vbcast.lane.b32.xlu0 %v266, 256
        %v269 = vpop.permute.xlu0 %268
        %s271 = sor.u32 256, 8
        %272 = vbcast.lane.b32.xlu0 %v266, %s271
        %v273 = vpop.permute.xlu0 %272
        %v274 = vlaneseq
        %v275 = vshrl.u32 %v274, 7
        %v276 = vsub.s32 2, %v275
        %v277 = vrot.slane %v157, %v276
        %279 = vbcast.lane.b32.xlu0 %v277, 256
        %v280 = vpop.permute.xlu0 %279
        %s282 = sor.u32 256, 8
        %283 = vbcast.lane.b32.xlu0 %v277, %s282
        %v284 = vpop.permute.xlu0 %283
        %v285 = vlaneseq
        %v286 = vshrl.u32 %v285, 7
        %v287 = vsub.s32 3, %v286
        %v288 = vrot.slane %v157, %v287
        %290 = vbcast.lane.b32.xlu0 %v288, 256
        %v291 = vpop.permute.xlu0 %290
        %s293 = sor.u32 256, 8
        %294 = vbcast.lane.b32.xlu0 %v288, %s293
        %v295 = vpop.permute.xlu0 %294
        %v296 = vlaneseq
        %v297 = vshrl.u32 %v296, 7
        %v298 = vsub.s32 4, %v297
        %v299 = vrot.slane %v157, %v298
        %301 = vbcast.lane.b32.xlu0 %v299, 256
        %v302 = vpop.permute.xlu0 %301
        %s304 = sor.u32 256, 8
        %305 = vbcast.lane.b32.xlu0 %v299, %s304
        %v306 = vpop.permute.xlu0 %305
        %v307 = vlaneseq
        %v308 = vshrl.u32 %v307, 7
        %v309 = vsub.s32 5, %v308
        %v310 = vrot.slane %v157, %v309
        %312 = vbcast.lane.b32.xlu0 %v310, 256
        %v313 = vpop.permute.xlu0 %312
        %s315 = sor.u32 256, 8
        %316 = vbcast.lane.b32.xlu0 %v310, %s315
        %v317 = vpop.permute.xlu0 %316
        %v318 = vlaneseq
        %v319 = vshrl.u32 %v318, 7
        %v320 = vsub.s32 6, %v319
        %v321 = vrot.slane %v157, %v320
        %323 = vbcast.lane.b32.xlu0 %v321, 256
        %v324 = vpop.permute.xlu0 %323
        %s326 = sor.u32 256, 8
        %327 = vbcast.lane.b32.xlu0 %v321, %s326
        %v328 = vpop.permute.xlu0 %327
        %v329 = vlaneseq
        %v330 = vshrl.u32 %v329, 7
        %v331 = vsub.s32 7, %v330
        %v332 = vrot.slane %v157, %v331
        %334 = vbcast.lane.b32.xlu0 %v332, 256
        %v335 = vpop.permute.xlu0 %334
        %s337 = sor.u32 256, 8
        %338 = vbcast.lane.b32.xlu0 %v332, %s337
        %v339 = vpop.permute.xlu0 %338
        %v340 = vlaneseq
        %v341 = vshrl.u32 %v340, 7
        %v342 = vsub.s32 0, %v341
        %v343 = vrot.slane %v158, %v342
        %345 = vbcast.lane.b32.xlu0 %v343, 256
        %v346 = vpop.permute.xlu0 %345
        %s348 = sor.u32 256, 8
        %349 = vbcast.lane.b32.xlu0 %v343, %s348
        %v350 = vpop.permute.xlu0 %349
        %v351 = vlaneseq
        %v352 = vshrl.u32 %v351, 7
        %v353 = vsub.s32 1, %v352
        %v354 = vrot.slane %v158, %v353
        %356 = vbcast.lane.b32.xlu0 %v354, 256
        %v357 = vpop.permute.xlu0 %356
        %s359 = sor.u32 256, 8
        %360 = vbcast.lane.b32.xlu0 %v354, %s359
        %v361 = vpop.permute.xlu0 %360
        %v362 = vlaneseq
        %v363 = vshrl.u32 %v362, 7
        %v364 = vsub.s32 2, %v363
        %v365 = vrot.slane %v158, %v364
        %367 = vbcast.lane.b32.xlu0 %v365, 256
        %v368 = vpop.permute.xlu0 %367
        %s370 = sor.u32 256, 8
        %371 = vbcast.lane.b32.xlu0 %v365, %s370
        %v372 = vpop.permute.xlu0 %371
        %v373 = vlaneseq
        %v374 = vshrl.u32 %v373, 7
        %v375 = vsub.s32 3, %v374
        %v376 = vrot.slane %v158, %v375
        %378 = vbcast.lane.b32.xlu0 %v376, 256
        %v379 = vpop.permute.xlu0 %378
        %s381 = sor.u32 256, 8
        %382 = vbcast.lane.b32.xlu0 %v376, %s381
        %v383 = vpop.permute.xlu0 %382
        %v384 = vlaneseq
        %v385 = vshrl.u32 %v384, 7
        %v386 = vsub.s32 4, %v385
        %v387 = vrot.slane %v158, %v386
        %389 = vbcast.lane.b32.xlu0 %v387, 256
        %v390 = vpop.permute.xlu0 %389
        %s392 = sor.u32 256, 8
        %393 = vbcast.lane.b32.xlu0 %v387, %s392
        %v394 = vpop.permute.xlu0 %393
        %v395 = vlaneseq
        %v396 = vshrl.u32 %v395, 7
        %v397 = vsub.s32 5, %v396
        %v398 = vrot.slane %v158, %v397
        %400 = vbcast.lane.b32.xlu0 %v398, 256
        %v401 = vpop.permute.xlu0 %400
        %s403 = sor.u32 256, 8
        %404 = vbcast.lane.b32.xlu0 %v398, %s403
        %v405 = vpop.permute.xlu0 %404
        %v406 = vlaneseq
        %v407 = vshrl.u32 %v406, 7
        %v408 = vsub.s32 6, %v407
        %v409 = vrot.slane %v158, %v408
        %411 = vbcast.lane.b32.xlu0 %v409, 256
        %v412 = vpop.permute.xlu0 %411
        %s414 = sor.u32 256, 8
        %415 = vbcast.lane.b32.xlu0 %v409, %s414
        %v416 = vpop.permute.xlu0 %415
        %v417 = vlaneseq
        %v418 = vshrl.u32 %v417, 7
        %v419 = vsub.s32 7, %v418
        %v420 = vrot.slane %v158, %v419
        %422 = vbcast.lane.b32.xlu0 %v420, 256
        %v423 = vpop.permute.xlu0 %422
        %s425 = sor.u32 256, 8
        %426 = vbcast.lane.b32.xlu0 %v420, %s425
        %v427 = vpop.permute.xlu0 %426
        %v428 = vlaneseq
        %v429 = vshrl.u32 %v428, 7
        %v430 = vsub.s32 0, %v429
        %v431 = vrot.slane %v159, %v430
        %433 = vbcast.lane.b32.xlu0 %v431, 256
        %v434 = vpop.permute.xlu0 %433
        %s436 = sor.u32 256, 8
        %437 = vbcast.lane.b32.xlu0 %v431, %s436
        %v438 = vpop.permute.xlu0 %437
        %v439 = vlaneseq
        %v440 = vshrl.u32 %v439, 7
        %v441 = vsub.s32 1, %v440
        %v442 = vrot.slane %v159, %v441
        %444 = vbcast.lane.b32.xlu0 %v442, 256
        %v445 = vpop.permute.xlu0 %444
        %s447 = sor.u32 256, 8
        %448 = vbcast.lane.b32.xlu0 %v442, %s447
        %v449 = vpop.permute.xlu0 %448
        %v450 = vlaneseq
        %v451 = vshrl.u32 %v450, 7
        %v452 = vsub.s32 2, %v451
        %v453 = vrot.slane %v159, %v452
        %455 = vbcast.lane.b32.xlu0 %v453, 256
        %v456 = vpop.permute.xlu0 %455
        %s458 = sor.u32 256, 8
        %459 = vbcast.lane.b32.xlu0 %v453, %s458
        %v460 = vpop.permute.xlu0 %459
        %v461 = vlaneseq
        %v462 = vshrl.u32 %v461, 7
        %v463 = vsub.s32 3, %v462
        %v464 = vrot.slane %v159, %v463
        %466 = vbcast.lane.b32.xlu0 %v464, 256
        %v467 = vpop.permute.xlu0 %466
        %s469 = sor.u32 256, 8
        %470 = vbcast.lane.b32.xlu0 %v464, %s469
        %v471 = vpop.permute.xlu0 %470
        %v472 = vlaneseq
        %v473 = vshrl.u32 %v472, 7
        %v474 = vsub.s32 4, %v473
        %v475 = vrot.slane %v159, %v474
        %477 = vbcast.lane.b32.xlu0 %v475, 256
        %v478 = vpop.permute.xlu0 %477
        %s480 = sor.u32 256, 8
        %481 = vbcast.lane.b32.xlu0 %v475, %s480
        %v482 = vpop.permute.xlu0 %481
        %v483 = vlaneseq
        %v484 = vshrl.u32 %v483, 7
        %v485 = vsub.s32 5, %v484
        %v486 = vrot.slane %v159, %v485
        %488 = vbcast.lane.b32.xlu0 %v486, 256
        %v489 = vpop.permute.xlu0 %488
        %s491 = sor.u32 256, 8
        %492 = vbcast.lane.b32.xlu0 %v486, %s491
        %v493 = vpop.permute.xlu0 %492
        %v494 = vlaneseq
        %v495 = vshrl.u32 %v494, 7
        %v496 = vsub.s32 6, %v495
        %v497 = vrot.slane %v159, %v496
        %499 = vbcast.lane.b32.xlu0 %v497, 256
        %v500 = vpop.permute.xlu0 %499
        %s502 = sor.u32 256, 8
        %503 = vbcast.lane.b32.xlu0 %v497, %s502
        %v504 = vpop.permute.xlu0 %503
        %v505 = vlaneseq
        %v506 = vshrl.u32 %v505, 7
        %v507 = vsub.s32 7, %v506
        %v508 = vrot.slane %v159, %v507
        %510 = vbcast.lane.b32.xlu0 %v508, 256
        %v511 = vpop.permute.xlu0 %510
        %s513 = sor.u32 256, 8
        %514 = vbcast.lane.b32.xlu0 %v508, %s513
        %v515 = vpop.permute.xlu0 %514
        %v516 = vlaneseq
        %v517 = vshrl.u32 %v516, 7
        %v518 = vsub.s32 0, %v517
        %v519 = vrot.slane %v160, %v518
        %521 = vbcast.lane.b32.xlu0 %v519, 256
        %v522 = vpop.permute.xlu0 %521
        %s524 = sor.u32 256, 8
        %525 = vbcast.lane.b32.xlu0 %v519, %s524
        %v526 = vpop.permute.xlu0 %525
        %v527 = vlaneseq
        %v528 = vshrl.u32 %v527, 7
        %v529 = vsub.s32 1, %v528
        %v530 = vrot.slane %v160, %v529
        %532 = vbcast.lane.b32.xlu0 %v530, 256
        %v533 = vpop.permute.xlu0 %532
        %s535 = sor.u32 256, 8
        %536 = vbcast.lane.b32.xlu0 %v530, %s535
        %v537 = vpop.permute.xlu0 %536
        %v538 = vlaneseq
        %v539 = vshrl.u32 %v538, 7
        %v540 = vsub.s32 2, %v539
        %v541 = vrot.slane %v160, %v540
        %543 = vbcast.lane.b32.xlu0 %v541, 256
        %v544 = vpop.permute.xlu0 %543
        %s546 = sor.u32 256, 8
        %547 = vbcast.lane.b32.xlu0 %v541, %s546
        %v548 = vpop.permute.xlu0 %547
        %v549 = vlaneseq
        %v550 = vshrl.u32 %v549, 7
        %v551 = vsub.s32 3, %v550
        %v552 = vrot.slane %v160, %v551
        %554 = vbcast.lane.b32.xlu0 %v552, 256
        %v555 = vpop.permute.xlu0 %554
        %s557 = sor.u32 256, 8
        %558 = vbcast.lane.b32.xlu0 %v552, %s557
        %v559 = vpop.permute.xlu0 %558
        %v560 = vlaneseq
        %v561 = vshrl.u32 %v560, 7
        %v562 = vsub.s32 4, %v561
        %v563 = vrot.slane %v160, %v562
        %565 = vbcast.lane.b32.xlu0 %v563, 256
        %v566 = vpop.permute.xlu0 %565
        %s568 = sor.u32 256, 8
        %569 = vbcast.lane.b32.xlu0 %v563, %s568
        %v570 = vpop.permute.xlu0 %569
        %v571 = vlaneseq
        %v572 = vshrl.u32 %v571, 7
        %v573 = vsub.s32 5, %v572
        %v574 = vrot.slane %v160, %v573
        %576 = vbcast.lane.b32.xlu0 %v574, 256
        %v577 = vpop.permute.xlu0 %576
        %s579 = sor.u32 256, 8
        %580 = vbcast.lane.b32.xlu0 %v574, %s579
        %v581 = vpop.permute.xlu0 %580
        %v582 = vlaneseq
        %v583 = vshrl.u32 %v582, 7
        %v584 = vsub.s32 6, %v583
        %v585 = vrot.slane %v160, %v584
        %587 = vbcast.lane.b32.xlu0 %v585, 256
        %v588 = vpop.permute.xlu0 %587
        %s590 = sor.u32 256, 8
        %591 = vbcast.lane.b32.xlu0 %v585, %s590
        %v592 = vpop.permute.xlu0 %591
        %v593 = vlaneseq
        %v594 = vshrl.u32 %v593, 7
        %v595 = vsub.s32 7, %v594
        %v596 = vrot.slane %v160, %v595
        %598 = vbcast.lane.b32.xlu0 %v596, 256
        %v599 = vpop.permute.xlu0 %598
        %s601 = sor.u32 256, 8
        %602 = vbcast.lane.b32.xlu0 %v596, %s601
        %v603 = vpop.permute.xlu0 %602
        %v604 = vlaneseq
        %v605 = vshrl.u32 %v604, 7
        %v606 = vsub.s32 0, %v605
        %v607 = vrot.slane %v161, %v606
        %609 = vbcast.lane.b32.xlu0 %v607, 256
        %v610 = vpop.permute.xlu0 %609
        %s612 = sor.u32 256, 8
        %613 = vbcast.lane.b32.xlu0 %v607, %s612
        %v614 = vpop.permute.xlu0 %613
        %v615 = vlaneseq
        %v616 = vshrl.u32 %v615, 7
        %v617 = vsub.s32 1, %v616
        %v618 = vrot.slane %v161, %v617
        %620 = vbcast.lane.b32.xlu0 %v618, 256
        %v621 = vpop.permute.xlu0 %620
        %s623 = sor.u32 256, 8
        %624 = vbcast.lane.b32.xlu0 %v618, %s623
        %v625 = vpop.permute.xlu0 %624
        %v626 = vlaneseq
        %v627 = vshrl.u32 %v626, 7
        %v628 = vsub.s32 2, %v627
        %v629 = vrot.slane %v161, %v628
        %631 = vbcast.lane.b32.xlu0 %v629, 256
        %v632 = vpop.permute.xlu0 %631
        %s634 = sor.u32 256, 8
        %635 = vbcast.lane.b32.xlu0 %v629, %s634
        %v636 = vpop.permute.xlu0 %635
        %v637 = vlaneseq
        %v638 = vshrl.u32 %v637, 7
        %v639 = vsub.s32 3, %v638
        %v640 = vrot.slane %v161, %v639
        %642 = vbcast.lane.b32.xlu0 %v640, 256
        %v643 = vpop.permute.xlu0 %642
        %s645 = sor.u32 256, 8
        %646 = vbcast.lane.b32.xlu0 %v640, %s645
        %v647 = vpop.permute.xlu0 %646
        %v648 = vlaneseq
        %v649 = vshrl.u32 %v648, 7
        %v650 = vsub.s32 4, %v649
        %v651 = vrot.slane %v161, %v650
        %653 = vbcast.lane.b32.xlu0 %v651, 256
        %v654 = vpop.permute.xlu0 %653
        %s656 = sor.u32 256, 8
        %657 = vbcast.lane.b32.xlu0 %v651, %s656
        %v658 = vpop.permute.xlu0 %657
        %v659 = vlaneseq
        %v660 = vshrl.u32 %v659, 7
        %v661 = vsub.s32 5, %v660
        %v662 = vrot.slane %v161, %v661
        %664 = vbcast.lane.b32.xlu0 %v662, 256
        %v665 = vpop.permute.xlu0 %664
        %s667 = sor.u32 256, 8
        %668 = vbcast.lane.b32.xlu0 %v662, %s667
        %v669 = vpop.permute.xlu0 %668
        %v670 = vlaneseq
        %v671 = vshrl.u32 %v670, 7
        %v672 = vsub.s32 6, %v671
        %v673 = vrot.slane %v161, %v672
        %675 = vbcast.lane.b32.xlu0 %v673, 256
        %v676 = vpop.permute.xlu0 %675
        %s678 = sor.u32 256, 8
        %679 = vbcast.lane.b32.xlu0 %v673, %s678
        %v680 = vpop.permute.xlu0 %679
        %v681 = vlaneseq
        %v682 = vshrl.u32 %v681, 7
        %v683 = vsub.s32 7, %v682
        %v684 = vrot.slane %v161, %v683
        %686 = vbcast.lane.b32.xlu0 %v684, 256
        %v687 = vpop.permute.xlu0 %686
        %s689 = sor.u32 256, 8
        %690 = vbcast.lane.b32.xlu0 %v684, %s689
        %v691 = vpop.permute.xlu0 %690
        %v692 = vlaneseq
        %v693 = vshrl.u32 %v692, 7
        %v694 = vsub.s32 0, %v693
        %v695 = vrot.slane %v162, %v694
        %697 = vbcast.lane.b32.xlu0 %v695, 256
        %v698 = vpop.permute.xlu0 %697
        %s700 = sor.u32 256, 8
        %701 = vbcast.lane.b32.xlu0 %v695, %s700
        %v702 = vpop.permute.xlu0 %701
        %v703 = vlaneseq
        %v704 = vshrl.u32 %v703, 7
        %v705 = vsub.s32 1, %v704
        %v706 = vrot.slane %v162, %v705
        %708 = vbcast.lane.b32.xlu0 %v706, 256
        %v709 = vpop.permute.xlu0 %708
        %s711 = sor.u32 256, 8
        %712 = vbcast.lane.b32.xlu0 %v706, %s711
        %v713 = vpop.permute.xlu0 %712
        %v714 = vlaneseq
        %v715 = vshrl.u32 %v714, 7
        %v716 = vsub.s32 2, %v715
        %v717 = vrot.slane %v162, %v716
        %719 = vbcast.lane.b32.xlu0 %v717, 256
        %v720 = vpop.permute.xlu0 %719
        %s722 = sor.u32 256, 8
        %723 = vbcast.lane.b32.xlu0 %v717, %s722
        %v724 = vpop.permute.xlu0 %723
        %v725 = vlaneseq
        %v726 = vshrl.u32 %v725, 7
        %v727 = vsub.s32 3, %v726
        %v728 = vrot.slane %v162, %v727
        %730 = vbcast.lane.b32.xlu0 %v728, 256
        %v731 = vpop.permute.xlu0 %730
        %s733 = sor.u32 256, 8
        %734 = vbcast.lane.b32.xlu0 %v728, %s733
        %v735 = vpop.permute.xlu0 %734
        %v736 = vlaneseq
        %v737 = vshrl.u32 %v736, 7
        %v738 = vsub.s32 4, %v737
        %v739 = vrot.slane %v162, %v738
        %741 = vbcast.lane.b32.xlu0 %v739, 256
        %v742 = vpop.permute.xlu0 %741
        %s744 = sor.u32 256, 8
        %745 = vbcast.lane.b32.xlu0 %v739, %s744
        %v746 = vpop.permute.xlu0 %745
        %v747 = vlaneseq
        %v748 = vshrl.u32 %v747, 7
        %v749 = vsub.s32 5, %v748
        %v750 = vrot.slane %v162, %v749
        %752 = vbcast.lane.b32.xlu0 %v750, 256
        %v753 = vpop.permute.xlu0 %752
        %s755 = sor.u32 256, 8
        %756 = vbcast.lane.b32.xlu0 %v750, %s755
        %v757 = vpop.permute.xlu0 %756
        %v758 = vlaneseq
        %v759 = vshrl.u32 %v758, 7
        %v760 = vsub.s32 6, %v759
        %v761 = vrot.slane %v162, %v760
        %763 = vbcast.lane.b32.xlu0 %v761, 256
        %v764 = vpop.permute.xlu0 %763
        %s766 = sor.u32 256, 8
        %767 = vbcast.lane.b32.xlu0 %v761, %s766
        %v768 = vpop.permute.xlu0 %767
        %v769 = vlaneseq
        %v770 = vshrl.u32 %v769, 7
        %v771 = vsub.s32 7, %v770
        %v772 = vrot.slane %v162, %v771
        %774 = vbcast.lane.b32.xlu0 %v772, 256
        %v775 = vpop.permute.xlu0 %774
        %s777 = sor.u32 256, 8
        %778 = vbcast.lane.b32.xlu0 %v772, %s777
        %v779 = vpop.permute.xlu0 %778
        %v780 = vlaneseq
        %v781 = vshrl.u32 %v780, 7
        %v782 = vsub.s32 0, %v781
        %v783 = vrot.slane %v163, %v782
        %785 = vbcast.lane.b32.xlu0 %v783, 256
        %v786 = vpop.permute.xlu0 %785
        %s788 = sor.u32 256, 8
        %789 = vbcast.lane.b32.xlu0 %v783, %s788
        %v790 = vpop.permute.xlu0 %789
        %v791 = vlaneseq
        %v792 = vshrl.u32 %v791, 7
        %v793 = vsub.s32 1, %v792
        %v794 = vrot.slane %v163, %v793
        %796 = vbcast.lane.b32.xlu0 %v794, 256
        %v797 = vpop.permute.xlu0 %796
        %s799 = sor.u32 256, 8
        %800 = vbcast.lane.b32.xlu0 %v794, %s799
        %v801 = vpop.permute.xlu0 %800
        %v802 = vlaneseq
        %v803 = vshrl.u32 %v802, 7
        %v804 = vsub.s32 2, %v803
        %v805 = vrot.slane %v163, %v804
        %807 = vbcast.lane.b32.xlu0 %v805, 256
        %v808 = vpop.permute.xlu0 %807
        %s810 = sor.u32 256, 8
        %811 = vbcast.lane.b32.xlu0 %v805, %s810
        %v812 = vpop.permute.xlu0 %811
        %v813 = vlaneseq
        %v814 = vshrl.u32 %v813, 7
        %v815 = vsub.s32 3, %v814
        %v816 = vrot.slane %v163, %v815
        %818 = vbcast.lane.b32.xlu0 %v816, 256
        %v819 = vpop.permute.xlu0 %818
        %s821 = sor.u32 256, 8
        %822 = vbcast.lane.b32.xlu0 %v816, %s821
        %v823 = vpop.permute.xlu0 %822
        %v824 = vlaneseq
        %v825 = vshrl.u32 %v824, 7
        %v826 = vsub.s32 4, %v825
        %v827 = vrot.slane %v163, %v826
        %829 = vbcast.lane.b32.xlu0 %v827, 256
        %v830 = vpop.permute.xlu0 %829
        %s832 = sor.u32 256, 8
        %833 = vbcast.lane.b32.xlu0 %v827, %s832
        %v834 = vpop.permute.xlu0 %833
        %v835 = vlaneseq
        %v836 = vshrl.u32 %v835, 7
        %v837 = vsub.s32 5, %v836
        %v838 = vrot.slane %v163, %v837
        %840 = vbcast.lane.b32.xlu0 %v838, 256
        %v841 = vpop.permute.xlu0 %840
        %s843 = sor.u32 256, 8
        %844 = vbcast.lane.b32.xlu0 %v838, %s843
        %v845 = vpop.permute.xlu0 %844
        %v846 = vlaneseq
        %v847 = vshrl.u32 %v846, 7
        %v848 = vsub.s32 6, %v847
        %v849 = vrot.slane %v163, %v848
        %851 = vbcast.lane.b32.xlu0 %v849, 256
        %v852 = vpop.permute.xlu0 %851
        %s854 = sor.u32 256, 8
        %855 = vbcast.lane.b32.xlu0 %v849, %s854
        %v856 = vpop.permute.xlu0 %855
        %v857 = vlaneseq
        %v858 = vshrl.u32 %v857, 7
        %v859 = vsub.s32 7, %v858
        %v860 = vrot.slane %v163, %v859
        %862 = vbcast.lane.b32.xlu0 %v860, 256
        %v863 = vpop.permute.xlu0 %862
        %s865 = sor.u32 256, 8
        %866 = vbcast.lane.b32.xlu0 %v860, %s865
        %v867 = vpop.permute.xlu0 %866
        %v868 = vcombine.low %v170, %v181
        %v869 = vcombine.high %v170, %v181
        %v871 = vunpack.c.l.s4 1983009808
        %v872 = vunpack.c.0.s8 %v871
        %v873 = vlaneseq
        %v874 = vshrl.u32 %v873, 7
        %v875 = vsub.s32 %v872, %v874
        %v876 = vrot.slane %v868, %v875
        %v878 = vunpack.c.l.s4 1983009808
        %v879 = vunpack.c.0.s8 %v878
        %v880 = vlaneseq
        %v881 = vshrl.u32 %v880, 7
        %v882 = vsub.s32 %v879, %v881
        %v883 = vrot.slane %v869, %v882
        %v884 = vcombine.low %v192, %v203
        %v885 = vcombine.high %v192, %v203
        %v887 = vunpack.c.l.s4 1983009808
        %v888 = vunpack.c.0.s8 %v887
        %v889 = vlaneseq
        %v890 = vshrl.u32 %v889, 7
        %v891 = vsub.s32 %v888, %v890
        %v892 = vrot.slane %v884, %v891
        %v894 = vunpack.c.l.s4 1983009808
        %v895 = vunpack.c.0.s8 %v894
        %v896 = vlaneseq
        %v897 = vshrl.u32 %v896, 7
        %v898 = vsub.s32 %v895, %v897
        %v899 = vrot.slane %v885, %v898
        %v900 = vcombine.low %v876, %v876
        %v901 = vcombine.high %v876, %v876
        %v903 = vunpack.c.l.s4 1934713408
        %v904 = vunpack.c.0.s8 %v903
        %v905 = vlaneseq
        %v906 = vshrl.u32 %v905, 7
        %v907 = vsub.s32 %v904, %v906
        %v908 = vrot.slane %v900, %v907
        %v910 = vunpack.c.l.s4 1934713408
        %v911 = vunpack.c.0.s8 %v910
        %v912 = vlaneseq
        %v913 = vshrl.u32 %v912, 7
        %v914 = vsub.s32 %v911, %v913
        %v915 = vrot.slane %v901, %v914
        %v916 = vcombine.low %v883, %v883
        %v917 = vcombine.high %v883, %v883
        %v919 = vunpack.c.l.s4 1934713408
        %v920 = vunpack.c.0.s8 %v919
        %v921 = vlaneseq
        %v922 = vshrl.u32 %v921, 7
        %v923 = vsub.s32 %v920, %v922
        %v924 = vrot.slane %v916, %v923
        %v926 = vunpack.c.l.s4 1934713408
        %v927 = vunpack.c.0.s8 %v926
        %v928 = vlaneseq
        %v929 = vshrl.u32 %v928, 7
        %v930 = vsub.s32 %v927, %v929
        %v931 = vrot.slane %v917, %v930
        %v932 = vcombine.low %v892, %v892
        %v933 = vcombine.high %v892, %v892
        %v935 = vunpack.c.l.s4 1934713408
        %v936 = vunpack.c.0.s8 %v935
        %v937 = vlaneseq
        %v938 = vshrl.u32 %v937, 7
        %v939 = vsub.s32 %v936, %v938
        %v940 = vrot.slane %v932, %v939
        %v942 = vunpack.c.l.s4 1934713408
        %v943 = vunpack.c.0.s8 %v942
        %v944 = vlaneseq
        %v945 = vshrl.u32 %v944, 7
        %v946 = vsub.s32 %v943, %v945
        %v947 = vrot.slane %v933, %v946
        %v948 = vcombine.low %v899, %v899
        %v949 = vcombine.high %v899, %v899
        %v951 = vunpack.c.l.s4 1934713408
        %v952 = vunpack.c.0.s8 %v951
        %v953 = vlaneseq
        %v954 = vshrl.u32 %v953, 7
        %v955 = vsub.s32 %v952, %v954
        %v956 = vrot.slane %v948, %v955
        %v958 = vunpack.c.l.s4 1934713408
        %v959 = vunpack.c.0.s8 %v958
        %v960 = vlaneseq
        %v961 = vshrl.u32 %v960, 7
        %v962 = vsub.s32 %v959, %v961
        %v963 = vrot.slane %v949, %v962
        %v964 = vcombine.low %v908, %v940
        %v965 = vcombine.high %v908, %v940
        %v966 = vcombine.low %v915, %v947
        %v967 = vcombine.high %v915, %v947
        %v968 = vcombine.low %v924, %v956
        %v969 = vcombine.high %v924, %v956
        %v970 = vcombine.low %v931, %v963
        %v971 = vcombine.high %v931, %v963
        %v972 = vcombine.low %v214, %v225
        %v973 = vcombine.high %v214, %v225
        %v975 = vunpack.c.l.s4 1983009808
        %v976 = vunpack.c.0.s8 %v975
        %v977 = vlaneseq
        %v978 = vshrl.u32 %v977, 7
        %v979 = vsub.s32 %v976, %v978
        %v980 = vrot.slane %v972, %v979
        %v982 = vunpack.c.l.s4 1983009808
        %v983 = vunpack.c.0.s8 %v982
        %v984 = vlaneseq
        %v985 = vshrl.u32 %v984, 7
        %v986 = vsub.s32 %v983, %v985
        %v987 = vrot.slane %v973, %v986
        %v988 = vcombine.low %v236, %v247
        %v989 = vcombine.high %v236, %v247
        %v991 = vunpack.c.l.s4 1983009808
        %v992 = vunpack.c.0.s8 %v991
        %v993 = vlaneseq
        %v994 = vshrl.u32 %v993, 7
        %v995 = vsub.s32 %v992, %v994
        %v996 = vrot.slane %v988, %v995
        %v998 = vunpack.c.l.s4 1983009808
        %v999 = vunpack.c.0.s8 %v998
        %v1000 = vlaneseq
        %v1001 = vshrl.u32 %v1000, 7
        %v1002 = vsub.s32 %v999, %v1001
        %v1003 = vrot.slane %v989, %v1002
        %v1004 = vcombine.low %v980, %v980
        %v1005 = vcombine.high %v980, %v980
        %v1007 = vunpack.c.l.s4 1934713408
        %v1008 = vunpack.c.0.s8 %v1007
        %v1009 = vlaneseq
        %v1010 = vshrl.u32 %v1009, 7
        %v1011 = vsub.s32 %v1008, %v1010
        %v1012 = vrot.slane %v1004, %v1011
        %v1014 = vunpack.c.l.s4 1934713408
        %v1015 = vunpack.c.0.s8 %v1014
        %v1016 = vlaneseq
        %v1017 = vshrl.u32 %v1016, 7
        %v1018 = vsub.s32 %v1015, %v1017
        %v1019 = vrot.slane %v1005, %v1018
        %v1020 = vcombine.low %v987, %v987
        %v1021 = vcombine.high %v987, %v987
        %v1023 = vunpack.c.l.s4 1934713408
        %v1024 = vunpack.c.0.s8 %v1023
        %v1025 = vlaneseq
        %v1026 = vshrl.u32 %v1025, 7
        %v1027 = vsub.s32 %v1024, %v1026
        %v1028 = vrot.slane %v1020, %v1027
        %v1030 = vunpack.c.l.s4 1934713408
        %v1031 = vunpack.c.0.s8 %v1030
        %v1032 = vlaneseq
        %v1033 = vshrl.u32 %v1032, 7
        %v1034 = vsub.s32 %v1031, %v1033
        %v1035 = vrot.slane %v1021, %v1034
        %v1036 = vcombine.low %v996, %v996
        %v1037 = vcombine.high %v996, %v996
        %v1039 = vunpack.c.l.s4 1934713408
        %v1040 = vunpack.c.0.s8 %v1039
        %v1041 = vlaneseq
        %v1042 = vshrl.u32 %v1041, 7
        %v1043 = vsub.s32 %v1040, %v1042
        %v1044 = vrot.slane %v1036, %v1043
        %v1046 = vunpack.c.l.s4 1934713408
        %v1047 = vunpack.c.0.s8 %v1046
        %v1048 = vlaneseq
        %v1049 = vshrl.u32 %v1048, 7
        %v1050 = vsub.s32 %v1047, %v1049
        %v1051 = vrot.slane %v1037, %v1050
        %v1052 = vcombine.low %v1003, %v1003
        %v1053 = vcombine.high %v1003, %v1003
        %v1055 = vunpack.c.l.s4 1934713408
        %v1056 = vunpack.c.0.s8 %v1055
        %v1057 = vlaneseq
        %v1058 = vshrl.u32 %v1057, 7
        %v1059 = vsub.s32 %v1056, %v1058
        %v1060 = vrot.slane %v1052, %v1059
        %v1062 = vunpack.c.l.s4 1934713408
        %v1063 = vunpack.c.0.s8 %v1062
        %v1064 = vlaneseq
        %v1065 = vshrl.u32 %v1064, 7
        %v1066 = vsub.s32 %v1063, %v1065
        %v1067 = vrot.slane %v1053, %v1066
        %v1068 = vcombine.low %v1012, %v1044
        %v1069 = vcombine.high %v1012, %v1044
        %v1070 = vcombine.low %v1019, %v1051
        %v1071 = vcombine.high %v1019, %v1051
        %v1072 = vcombine.low %v1028, %v1060
        %v1073 = vcombine.high %v1028, %v1060
        %v1074 = vcombine.low %v1035, %v1067
        %v1075 = vcombine.high %v1035, %v1067
        %v1076 = vcombine.low %v258, %v269
        %v1077 = vcombine.high %v258, %v269
        %v1079 = vunpack.c.l.s4 1983009808
        %v1080 = vunpack.c.0.s8 %v1079
        %v1081 = vlaneseq
        %v1082 = vshrl.u32 %v1081, 7
        %v1083 = vsub.s32 %v1080, %v1082
        %v1084 = vrot.slane %v1076, %v1083
        %v1086 = vunpack.c.l.s4 1983009808
        %v1087 = vunpack.c.0.s8 %v1086
        %v1088 = vlaneseq
        %v1089 = vshrl.u32 %v1088, 7
        %v1090 = vsub.s32 %v1087, %v1089
        %v1091 = vrot.slane %v1077, %v1090
        %v1092 = vcombine.low %v280, %v291
        %v1093 = vcombine.high %v280, %v291
        %v1095 = vunpack.c.l.s4 1983009808
        %v1096 = vunpack.c.0.s8 %v1095
        %v1097 = vlaneseq
        %v1098 = vshrl.u32 %v1097, 7
        %v1099 = vsub.s32 %v1096, %v1098
        %v1100 = vrot.slane %v1092, %v1099
        %v1102 = vunpack.c.l.s4 1983009808
        %v1103 = vunpack.c.0.s8 %v1102
        %v1104 = vlaneseq
        %v1105 = vshrl.u32 %v1104, 7
        %v1106 = vsub.s32 %v1103, %v1105
        %v1107 = vrot.slane %v1093, %v1106
        %v1108 = vcombine.low %v1084, %v1084
        %v1109 = vcombine.high %v1084, %v1084
        %v1111 = vunpack.c.l.s4 1934713408
        %v1112 = vunpack.c.0.s8 %v1111
        %v1113 = vlaneseq
        %v1114 = vshrl.u32 %v1113, 7
        %v1115 = vsub.s32 %v1112, %v1114
        %v1116 = vrot.slane %v1108, %v1115
        %v1118 = vunpack.c.l.s4 1934713408
        %v1119 = vunpack.c.0.s8 %v1118
        %v1120 = vlaneseq
        %v1121 = vshrl.u32 %v1120, 7
        %v1122 = vsub.s32 %v1119, %v1121
        %v1123 = vrot.slane %v1109, %v1122
        %v1124 = vcombine.low %v1091, %v1091
        %v1125 = vcombine.high %v1091, %v1091
        %v1127 = vunpack.c.l.s4 1934713408
        %v1128 = vunpack.c.0.s8 %v1127
        %v1129 = vlaneseq
        %v1130 = vshrl.u32 %v1129, 7
        %v1131 = vsub.s32 %v1128, %v1130
        %v1132 = vrot.slane %v1124, %v1131
        %v1134 = vunpack.c.l.s4 1934713408
        %v1135 = vunpack.c.0.s8 %v1134
        %v1136 = vlaneseq
        %v1137 = vshrl.u32 %v1136, 7
        %v1138 = vsub.s32 %v1135, %v1137
        %v1139 = vrot.slane %v1125, %v1138
        %v1140 = vcombine.low %v1100, %v1100
        %v1141 = vcombine.high %v1100, %v1100
        %v1143 = vunpack.c.l.s4 1934713408
        %v1144 = vunpack.c.0.s8 %v1143
        %v1145 = vlaneseq
        %v1146 = vshrl.u32 %v1145, 7
        %v1147 = vsub.s32 %v1144, %v1146
        %v1148 = vrot.slane %v1140, %v1147
        %v1150 = vunpack.c.l.s4 1934713408
        %v1151 = vunpack.c.0.s8 %v1150
        %v1152 = vlaneseq
        %v1153 = vshrl.u32 %v1152, 7
        %v1154 = vsub.s32 %v1151, %v1153
        %v1155 = vrot.slane %v1141, %v1154
        %v1156 = vcombine.low %v1107, %v1107
        %v1157 = vcombine.high %v1107, %v1107
        %v1159 = vunpack.c.l.s4 1934713408
        %v1160 = vunpack.c.0.s8 %v1159
        %v1161 = vlaneseq
        %v1162 = vshrl.u32 %v1161, 7
        %v1163 = vsub.s32 %v1160, %v1162
        %v1164 = vrot.slane %v1156, %v1163
        %v1166 = vunpack.c.l.s4 1934713408
        %v1167 = vunpack.c.0.s8 %v1166
        %v1168 = vlaneseq
        %v1169 = vshrl.u32 %v1168, 7
        %v1170 = vsub.s32 %v1167, %v1169
        %v1171 = vrot.slane %v1157, %v1170
        %v1172 = vcombine.low %v1116, %v1148
        %v1173 = vcombine.high %v1116, %v1148
        %v1174 = vcombine.low %v1123, %v1155
        %v1175 = vcombine.high %v1123, %v1155
        %v1176 = vcombine.low %v1132, %v1164
        %v1177 = vcombine.high %v1132, %v1164
        %v1178 = vcombine.low %v1139, %v1171
        %v1179 = vcombine.high %v1139, %v1171
        %v1180 = vcombine.low %v302, %v313
        %v1181 = vcombine.high %v302, %v313
        %v1183 = vunpack.c.l.s4 1983009808
        %v1184 = vunpack.c.0.s8 %v1183
        %v1185 = vlaneseq
        %v1186 = vshrl.u32 %v1185, 7
        %v1187 = vsub.s32 %v1184, %v1186
        %v1188 = vrot.slane %v1180, %v1187
        %v1190 = vunpack.c.l.s4 1983009808
        %v1191 = vunpack.c.0.s8 %v1190
        %v1192 = vlaneseq
        %v1193 = vshrl.u32 %v1192, 7
        %v1194 = vsub.s32 %v1191, %v1193
        %v1195 = vrot.slane %v1181, %v1194
        %v1196 = vcombine.low %v324, %v335
        %v1197 = vcombine.high %v324, %v335
        %v1199 = vunpack.c.l.s4 1983009808
        %v1200 = vunpack.c.0.s8 %v1199
        %v1201 = vlaneseq
        %v1202 = vshrl.u32 %v1201, 7
        %v1203 = vsub.s32 %v1200, %v1202
        %v1204 = vrot.slane %v1196, %v1203
        %v1206 = vunpack.c.l.s4 1983009808
        %v1207 = vunpack.c.0.s8 %v1206
        %v1208 = vlaneseq
        %v1209 = vshrl.u32 %v1208, 7
        %v1210 = vsub.s32 %v1207, %v1209
        %v1211 = vrot.slane %v1197, %v1210
        %v1212 = vcombine.low %v1188, %v1188
        %v1213 = vcombine.high %v1188, %v1188
        %v1215 = vunpack.c.l.s4 1934713408
        %v1216 = vunpack.c.0.s8 %v1215
        %v1217 = vlaneseq
        %v1218 = vshrl.u32 %v1217, 7
        %v1219 = vsub.s32 %v1216, %v1218
        %v1220 = vrot.slane %v1212, %v1219
        %v1222 = vunpack.c.l.s4 1934713408
        %v1223 = vunpack.c.0.s8 %v1222
        %v1224 = vlaneseq
        %v1225 = vshrl.u32 %v1224, 7
        %v1226 = vsub.s32 %v1223, %v1225
        %v1227 = vrot.slane %v1213, %v1226
        %v1228 = vcombine.low %v1195, %v1195
        %v1229 = vcombine.high %v1195, %v1195
        %v1231 = vunpack.c.l.s4 1934713408
        %v1232 = vunpack.c.0.s8 %v1231
        %v1233 = vlaneseq
        %v1234 = vshrl.u32 %v1233, 7
        %v1235 = vsub.s32 %v1232, %v1234
        %v1236 = vrot.slane %v1228, %v1235
        %v1238 = vunpack.c.l.s4 1934713408
        %v1239 = vunpack.c.0.s8 %v1238
        %v1240 = vlaneseq
        %v1241 = vshrl.u32 %v1240, 7
        %v1242 = vsub.s32 %v1239, %v1241
        %v1243 = vrot.slane %v1229, %v1242
        %v1244 = vcombine.low %v1204, %v1204
        %v1245 = vcombine.high %v1204, %v1204
        %v1247 = vunpack.c.l.s4 1934713408
        %v1248 = vunpack.c.0.s8 %v1247
        %v1249 = vlaneseq
        %v1250 = vshrl.u32 %v1249, 7
        %v1251 = vsub.s32 %v1248, %v1250
        %v1252 = vrot.slane %v1244, %v1251
        %v1254 = vunpack.c.l.s4 1934713408
        %v1255 = vunpack.c.0.s8 %v1254
        %v1256 = vlaneseq
        %v1257 = vshrl.u32 %v1256, 7
        %v1258 = vsub.s32 %v1255, %v1257
        %v1259 = vrot.slane %v1245, %v1258
        %v1260 = vcombine.low %v1211, %v1211
        %v1261 = vcombine.high %v1211, %v1211
        %v1263 = vunpack.c.l.s4 1934713408
        %v1264 = vunpack.c.0.s8 %v1263
        %v1265 = vlaneseq
        %v1266 = vshrl.u32 %v1265, 7
        %v1267 = vsub.s32 %v1264, %v1266
        %v1268 = vrot.slane %v1260, %v1267
        %v1270 = vunpack.c.l.s4 1934713408
        %v1271 = vunpack.c.0.s8 %v1270
        %v1272 = vlaneseq
        %v1273 = vshrl.u32 %v1272, 7
        %v1274 = vsub.s32 %v1271, %v1273
        %v1275 = vrot.slane %v1261, %v1274
        %v1276 = vcombine.low %v1220, %v1252
        %v1277 = vcombine.high %v1220, %v1252
        %v1278 = vcombine.low %v1227, %v1259
        %v1279 = vcombine.high %v1227, %v1259
        %v1280 = vcombine.low %v1236, %v1268
        %v1281 = vcombine.high %v1236, %v1268
        %v1282 = vcombine.low %v1243, %v1275
        %v1283 = vcombine.high %v1243, %v1275
        %v1284 = vcombine.low %v174, %v185
        %v1285 = vcombine.high %v174, %v185
        %v1287 = vunpack.c.l.s4 1983009808
        %v1288 = vunpack.c.0.s8 %v1287
        %v1289 = vlaneseq
        %v1290 = vshrl.u32 %v1289, 7
        %v1291 = vsub.s32 %v1288, %v1290
        %v1292 = vrot.slane %v1284, %v1291
        %v1294 = vunpack.c.l.s4 1983009808
        %v1295 = vunpack.c.0.s8 %v1294
        %v1296 = vlaneseq
        %v1297 = vshrl.u32 %v1296, 7
        %v1298 = vsub.s32 %v1295, %v1297
        %v1299 = vrot.slane %v1285, %v1298
        %v1300 = vcombine.low %v196, %v207
        %v1301 = vcombine.high %v196, %v207
        %v1303 = vunpack.c.l.s4 1983009808
        %v1304 = vunpack.c.0.s8 %v1303
        %v1305 = vlaneseq
        %v1306 = vshrl.u32 %v1305, 7
        %v1307 = vsub.s32 %v1304, %v1306
        %v1308 = vrot.slane %v1300, %v1307
        %v1310 = vunpack.c.l.s4 1983009808
        %v1311 = vunpack.c.0.s8 %v1310
        %v1312 = vlaneseq
        %v1313 = vshrl.u32 %v1312, 7
        %v1314 = vsub.s32 %v1311, %v1313
        %v1315 = vrot.slane %v1301, %v1314
        %v1316 = vcombine.low %v1292, %v1292
        %v1317 = vcombine.high %v1292, %v1292
        %v1319 = vunpack.c.l.s4 1934713408
        %v1320 = vunpack.c.0.s8 %v1319
        %v1321 = vlaneseq
        %v1322 = vshrl.u32 %v1321, 7
        %v1323 = vsub.s32 %v1320, %v1322
        %v1324 = vrot.slane %v1316, %v1323
        %v1326 = vunpack.c.l.s4 1934713408
        %v1327 = vunpack.c.0.s8 %v1326
        %v1328 = vlaneseq
        %v1329 = vshrl.u32 %v1328, 7
        %v1330 = vsub.s32 %v1327, %v1329
        %v1331 = vrot.slane %v1317, %v1330
        %v1332 = vcombine.low %v1299, %v1299
        %v1333 = vcombine.high %v1299, %v1299
        %v1335 = vunpack.c.l.s4 1934713408
        %v1336 = vunpack.c.0.s8 %v1335
        %v1337 = vlaneseq
        %v1338 = vshrl.u32 %v1337, 7
        %v1339 = vsub.s32 %v1336, %v1338
        %v1340 = vrot.slane %v1332, %v1339
        %v1342 = vunpack.c.l.s4 1934713408
        %v1343 = vunpack.c.0.s8 %v1342
        %v1344 = vlaneseq
        %v1345 = vshrl.u32 %v1344, 7
        %v1346 = vsub.s32 %v1343, %v1345
        %v1347 = vrot.slane %v1333, %v1346
        %v1348 = vcombine.low %v1308, %v1308
        %v1349 = vcombine.high %v1308, %v1308
        %v1351 = vunpack.c.l.s4 1934713408
        %v1352 = vunpack.c.0.s8 %v1351
        %v1353 = vlaneseq
        %v1354 = vshrl.u32 %v1353, 7
        %v1355 = vsub.s32 %v1352, %v1354
        %v1356 = vrot.slane %v1348, %v1355
        %v1358 = vunpack.c.l.s4 1934713408
        %v1359 = vunpack.c.0.s8 %v1358
        %v1360 = vlaneseq
        %v1361 = vshrl.u32 %v1360, 7
        %v1362 = vsub.s32 %v1359, %v1361
        %v1363 = vrot.slane %v1349, %v1362
        %v1364 = vcombine.low %v1315, %v1315
        %v1365 = vcombine.high %v1315, %v1315
        %v1367 = vunpack.c.l.s4 1934713408
        %v1368 = vunpack.c.0.s8 %v1367
        %v1369 = vlaneseq
        %v1370 = vshrl.u32 %v1369, 7
        %v1371 = vsub.s32 %v1368, %v1370
        %v1372 = vrot.slane %v1364, %v1371
        %v1374 = vunpack.c.l.s4 1934713408
        %v1375 = vunpack.c.0.s8 %v1374
        %v1376 = vlaneseq
        %v1377 = vshrl.u32 %v1376, 7
        %v1378 = vsub.s32 %v1375, %v1377
        %v1379 = vrot.slane %v1365, %v1378
        %v1380 = vcombine.low %v1324, %v1356
        %v1381 = vcombine.high %v1324, %v1356
        %v1382 = vcombine.low %v1331, %v1363
        %v1383 = vcombine.high %v1331, %v1363
        %v1384 = vcombine.low %v1340, %v1372
        %v1385 = vcombine.high %v1340, %v1372
        %v1386 = vcombine.low %v1347, %v1379
        %v1387 = vcombine.high %v1347, %v1379
        %v1388 = vcombine.low %v218, %v229
        %v1389 = vcombine.high %v218, %v229
        %v1391 = vunpack.c.l.s4 1983009808
        %v1392 = vunpack.c.0.s8 %v1391
        %v1393 = vlaneseq
        %v1394 = vshrl.u32 %v1393, 7
        %v1395 = vsub.s32 %v1392, %v1394
        %v1396 = vrot.slane %v1388, %v1395
        %v1398 = vunpack.c.l.s4 1983009808
        %v1399 = vunpack.c.0.s8 %v1398
        %v1400 = vlaneseq
        %v1401 = vshrl.u32 %v1400, 7
        %v1402 = vsub.s32 %v1399, %v1401
        %v1403 = vrot.slane %v1389, %v1402
        %v1404 = vcombine.low %v240, %v251
        %v1405 = vcombine.high %v240, %v251
        %v1407 = vunpack.c.l.s4 1983009808
        %v1408 = vunpack.c.0.s8 %v1407
        %v1409 = vlaneseq
        %v1410 = vshrl.u32 %v1409, 7
        %v1411 = vsub.s32 %v1408, %v1410
        %v1412 = vrot.slane %v1404, %v1411
        %v1414 = vunpack.c.l.s4 1983009808
        %v1415 = vunpack.c.0.s8 %v1414
        %v1416 = vlaneseq
        %v1417 = vshrl.u32 %v1416, 7
        %v1418 = vsub.s32 %v1415, %v1417
        %v1419 = vrot.slane %v1405, %v1418
        %v1420 = vcombine.low %v1396, %v1396
        %v1421 = vcombine.high %v1396, %v1396
        %v1423 = vunpack.c.l.s4 1934713408
        %v1424 = vunpack.c.0.s8 %v1423
        %v1425 = vlaneseq
        %v1426 = vshrl.u32 %v1425, 7
        %v1427 = vsub.s32 %v1424, %v1426
        %v1428 = vrot.slane %v1420, %v1427
        %v1430 = vunpack.c.l.s4 1934713408
        %v1431 = vunpack.c.0.s8 %v1430
        %v1432 = vlaneseq
        %v1433 = vshrl.u32 %v1432, 7
        %v1434 = vsub.s32 %v1431, %v1433
        %v1435 = vrot.slane %v1421, %v1434
        %v1436 = vcombine.low %v1403, %v1403
        %v1437 = vcombine.high %v1403, %v1403
        %v1439 = vunpack.c.l.s4 1934713408
        %v1440 = vunpack.c.0.s8 %v1439
        %v1441 = vlaneseq
        %v1442 = vshrl.u32 %v1441, 7
        %v1443 = vsub.s32 %v1440, %v1442
        %v1444 = vrot.slane %v1436, %v1443
        %v1446 = vunpack.c.l.s4 1934713408
        %v1447 = vunpack.c.0.s8 %v1446
        %v1448 = vlaneseq
        %v1449 = vshrl.u32 %v1448, 7
        %v1450 = vsub.s32 %v1447, %v1449
        %v1451 = vrot.slane %v1437, %v1450
        %v1452 = vcombine.low %v1412, %v1412
        %v1453 = vcombine.high %v1412, %v1412
        %v1455 = vunpack.c.l.s4 1934713408
        %v1456 = vunpack.c.0.s8 %v1455
        %v1457 = vlaneseq
        %v1458 = vshrl.u32 %v1457, 7
        %v1459 = vsub.s32 %v1456, %v1458
        %v1460 = vrot.slane %v1452, %v1459
        %v1462 = vunpack.c.l.s4 1934713408
        %v1463 = vunpack.c.0.s8 %v1462
        %v1464 = vlaneseq
        %v1465 = vshrl.u32 %v1464, 7
        %v1466 = vsub.s32 %v1463, %v1465
        %v1467 = vrot.slane %v1453, %v1466
        %v1468 = vcombine.low %v1419, %v1419
        %v1469 = vcombine.high %v1419, %v1419
        %v1471 = vunpack.c.l.s4 1934713408
        %v1472 = vunpack.c.0.s8 %v1471
        %v1473 = vlaneseq
        %v1474 = vshrl.u32 %v1473, 7
        %v1475 = vsub.s32 %v1472, %v1474
        %v1476 = vrot.slane %v1468, %v1475
        %v1478 = vunpack.c.l.s4 1934713408
        %v1479 = vunpack.c.0.s8 %v1478
        %v1480 = vlaneseq
        %v1481 = vshrl.u32 %v1480, 7
        %v1482 = vsub.s32 %v1479, %v1481
        %v1483 = vrot.slane %v1469, %v1482
        %v1484 = vcombine.low %v1428, %v1460
        %v1485 = vcombine.high %v1428, %v1460
        %v1486 = vcombine.low %v1435, %v1467
        %v1487 = vcombine.high %v1435, %v1467
        %v1488 = vcombine.low %v1444, %v1476
        %v1489 = vcombine.high %v1444, %v1476
        %v1490 = vcombine.low %v1451, %v1483
        %v1491 = vcombine.high %v1451, %v1483
        %v1492 = vcombine.low %v262, %v273
        %v1493 = vcombine.high %v262, %v273
        %v1495 = vunpack.c.l.s4 1983009808
        %v1496 = vunpack.c.0.s8 %v1495
        %v1497 = vlaneseq
        %v1498 = vshrl.u32 %v1497, 7
        %v1499 = vsub.s32 %v1496, %v1498
        %v1500 = vrot.slane %v1492, %v1499
        %v1502 = vunpack.c.l.s4 1983009808
        %v1503 = vunpack.c.0.s8 %v1502
        %v1504 = vlaneseq
        %v1505 = vshrl.u32 %v1504, 7
        %v1506 = vsub.s32 %v1503, %v1505
        %v1507 = vrot.slane %v1493, %v1506
        %v1508 = vcombine.low %v284, %v295
        %v1509 = vcombine.high %v284, %v295
        %v1511 = vunpack.c.l.s4 1983009808
        %v1512 = vunpack.c.0.s8 %v1511
        %v1513 = vlaneseq
        %v1514 = vshrl.u32 %v1513, 7
        %v1515 = vsub.s32 %v1512, %v1514
        %v1516 = vrot.slane %v1508, %v1515
        %v1518 = vunpack.c.l.s4 1983009808
        %v1519 = vunpack.c.0.s8 %v1518
        %v1520 = vlaneseq
        %v1521 = vshrl.u32 %v1520, 7
        %v1522 = vsub.s32 %v1519, %v1521
        %v1523 = vrot.slane %v1509, %v1522
        %v1524 = vcombine.low %v1500, %v1500
        %v1525 = vcombine.high %v1500, %v1500
        %v1527 = vunpack.c.l.s4 1934713408
        %v1528 = vunpack.c.0.s8 %v1527
        %v1529 = vlaneseq
        %v1530 = vshrl.u32 %v1529, 7
        %v1531 = vsub.s32 %v1528, %v1530
        %v1532 = vrot.slane %v1524, %v1531
        %v1534 = vunpack.c.l.s4 1934713408
        %v1535 = vunpack.c.0.s8 %v1534
        %v1536 = vlaneseq
        %v1537 = vshrl.u32 %v1536, 7
        %v1538 = vsub.s32 %v1535, %v1537
        %v1539 = vrot.slane %v1525, %v1538
        %v1540 = vcombine.low %v1507, %v1507
        %v1541 = vcombine.high %v1507, %v1507
        %v1543 = vunpack.c.l.s4 1934713408
        %v1544 = vunpack.c.0.s8 %v1543
        %v1545 = vlaneseq
        %v1546 = vshrl.u32 %v1545, 7
        %v1547 = vsub.s32 %v1544, %v1546
        %v1548 = vrot.slane %v1540, %v1547
        %v1550 = vunpack.c.l.s4 1934713408
        %v1551 = vunpack.c.0.s8 %v1550
        %v1552 = vlaneseq
        %v1553 = vshrl.u32 %v1552, 7
        %v1554 = vsub.s32 %v1551, %v1553
        %v1555 = vrot.slane %v1541, %v1554
        %v1556 = vcombine.low %v1516, %v1516
        %v1557 = vcombine.high %v1516, %v1516
        %v1559 = vunpack.c.l.s4 1934713408
        %v1560 = vunpack.c.0.s8 %v1559
        %v1561 = vlaneseq
        %v1562 = vshrl.u32 %v1561, 7
        %v1563 = vsub.s32 %v1560, %v1562
        %v1564 = vrot.slane %v1556, %v1563
        %v1566 = vunpack.c.l.s4 1934713408
        %v1567 = vunpack.c.0.s8 %v1566
        %v1568 = vlaneseq
        %v1569 = vshrl.u32 %v1568, 7
        %v1570 = vsub.s32 %v1567, %v1569
        %v1571 = vrot.slane %v1557, %v1570
        %v1572 = vcombine.low %v1523, %v1523
        %v1573 = vcombine.high %v1523, %v1523
        %v1575 = vunpack.c.l.s4 1934713408
        %v1576 = vunpack.c.0.s8 %v1575
        %v1577 = vlaneseq
        %v1578 = vshrl.u32 %v1577, 7
        %v1579 = vsub.s32 %v1576, %v1578
        %v1580 = vrot.slane %v1572, %v1579
        %v1582 = vunpack.c.l.s4 1934713408
        %v1583 = vunpack.c.0.s8 %v1582
        %v1584 = vlaneseq
        %v1585 = vshrl.u32 %v1584, 7
        %v1586 = vsub.s32 %v1583, %v1585
        %v1587 = vrot.slane %v1573, %v1586
        %v1588 = vcombine.low %v1532, %v1564
        %v1589 = vcombine.high %v1532, %v1564
        %v1590 = vcombine.low %v1539, %v1571
        %v1591 = vcombine.high %v1539, %v1571
        %v1592 = vcombine.low %v1548, %v1580
        %v1593 = vcombine.high %v1548, %v1580
        %v1594 = vcombine.low %v1555, %v1587
        %v1595 = vcombine.high %v1555, %v1587
        %v1596 = vcombine.low %v306, %v317
        %v1597 = vcombine.high %v306, %v317
        %v1599 = vunpack.c.l.s4 1983009808
        %v1600 = vunpack.c.0.s8 %v1599
        %v1601 = vlaneseq
        %v1602 = vshrl.u32 %v1601, 7
        %v1603 = vsub.s32 %v1600, %v1602
        %v1604 = vrot.slane %v1596, %v1603
        %v1606 = vunpack.c.l.s4 1983009808
        %v1607 = vunpack.c.0.s8 %v1606
        %v1608 = vlaneseq
        %v1609 = vshrl.u32 %v1608, 7
        %v1610 = vsub.s32 %v1607, %v1609
        %v1611 = vrot.slane %v1597, %v1610
        %v1612 = vcombine.low %v328, %v339
        %v1613 = vcombine.high %v328, %v339
        %v1615 = vunpack.c.l.s4 1983009808
        %v1616 = vunpack.c.0.s8 %v1615
        %v1617 = vlaneseq
        %v1618 = vshrl.u32 %v1617, 7
        %v1619 = vsub.s32 %v1616, %v1618
        %v1620 = vrot.slane %v1612, %v1619
        %v1622 = vunpack.c.l.s4 1983009808
        %v1623 = vunpack.c.0.s8 %v1622
        %v1624 = vlaneseq
        %v1625 = vshrl.u32 %v1624, 7
        %v1626 = vsub.s32 %v1623, %v1625
        %v1627 = vrot.slane %v1613, %v1626
        %v1628 = vcombine.low %v1604, %v1604
        %v1629 = vcombine.high %v1604, %v1604
        %v1631 = vunpack.c.l.s4 1934713408
        %v1632 = vunpack.c.0.s8 %v1631
        %v1633 = vlaneseq
        %v1634 = vshrl.u32 %v1633, 7
        %v1635 = vsub.s32 %v1632, %v1634
        %v1636 = vrot.slane %v1628, %v1635
        %v1638 = vunpack.c.l.s4 1934713408
        %v1639 = vunpack.c.0.s8 %v1638
        %v1640 = vlaneseq
        %v1641 = vshrl.u32 %v1640, 7
        %v1642 = vsub.s32 %v1639, %v1641
        %v1643 = vrot.slane %v1629, %v1642
        %v1644 = vcombine.low %v1611, %v1611
        %v1645 = vcombine.high %v1611, %v1611
        %v1647 = vunpack.c.l.s4 1934713408
        %v1648 = vunpack.c.0.s8 %v1647
        %v1649 = vlaneseq
        %v1650 = vshrl.u32 %v1649, 7
        %v1651 = vsub.s32 %v1648, %v1650
        %v1652 = vrot.slane %v1644, %v1651
        %v1654 = vunpack.c.l.s4 1934713408
        %v1655 = vunpack.c.0.s8 %v1654
        %v1656 = vlaneseq
        %v1657 = vshrl.u32 %v1656, 7
        %v1658 = vsub.s32 %v1655, %v1657
        %v1659 = vrot.slane %v1645, %v1658
        %v1660 = vcombine.low %v1620, %v1620
        %v1661 = vcombine.high %v1620, %v1620
        %v1663 = vunpack.c.l.s4 1934713408
        %v1664 = vunpack.c.0.s8 %v1663
        %v1665 = vlaneseq
        %v1666 = vshrl.u32 %v1665, 7
        %v1667 = vsub.s32 %v1664, %v1666
        %v1668 = vrot.slane %v1660, %v1667
        %v1670 = vunpack.c.l.s4 1934713408
        %v1671 = vunpack.c.0.s8 %v1670
        %v1672 = vlaneseq
        %v1673 = vshrl.u32 %v1672, 7
        %v1674 = vsub.s32 %v1671, %v1673
        %v1675 = vrot.slane %v1661, %v1674
        %v1676 = vcombine.low %v1627, %v1627
        %v1677 = vcombine.high %v1627, %v1627
        %v1679 = vunpack.c.l.s4 1934713408
        %v1680 = vunpack.c.0.s8 %v1679
        %v1681 = vlaneseq
        %v1682 = vshrl.u32 %v1681, 7
        %v1683 = vsub.s32 %v1680, %v1682
        %v1684 = vrot.slane %v1676, %v1683
        %v1686 = vunpack.c.l.s4 1934713408
        %v1687 = vunpack.c.0.s8 %v1686
        %v1688 = vlaneseq
        %v1689 = vshrl.u32 %v1688, 7
        %v1690 = vsub.s32 %v1687, %v1689
        %v1691 = vrot.slane %v1677, %v1690
        %v1692 = vcombine.low %v1636, %v1668
        %v1693 = vcombine.high %v1636, %v1668
        %v1694 = vcombine.low %v1643, %v1675
        %v1695 = vcombine.high %v1643, %v1675
        %v1696 = vcombine.low %v1652, %v1684
        %v1697 = vcombine.high %v1652, %v1684
        %v1698 = vcombine.low %v1659, %v1691
        %v1699 = vcombine.high %v1659, %v1691
        %v1700 = vcombine.low %v346, %v357
        %v1701 = vcombine.high %v346, %v357
        %v1703 = vunpack.c.l.s4 1983009808
        %v1704 = vunpack.c.0.s8 %v1703
        %v1705 = vlaneseq
        %v1706 = vshrl.u32 %v1705, 7
        %v1707 = vsub.s32 %v1704, %v1706
        %v1708 = vrot.slane %v1700, %v1707
        %v1710 = vunpack.c.l.s4 1983009808
        %v1711 = vunpack.c.0.s8 %v1710
        %v1712 = vlaneseq
        %v1713 = vshrl.u32 %v1712, 7
        %v1714 = vsub.s32 %v1711, %v1713
        %v1715 = vrot.slane %v1701, %v1714
        %v1716 = vcombine.low %v368, %v379
        %v1717 = vcombine.high %v368, %v379
        %v1719 = vunpack.c.l.s4 1983009808
        %v1720 = vunpack.c.0.s8 %v1719
        %v1721 = vlaneseq
        %v1722 = vshrl.u32 %v1721, 7
        %v1723 = vsub.s32 %v1720, %v1722
        %v1724 = vrot.slane %v1716, %v1723
        %v1726 = vunpack.c.l.s4 1983009808
        %v1727 = vunpack.c.0.s8 %v1726
        %v1728 = vlaneseq
        %v1729 = vshrl.u32 %v1728, 7
        %v1730 = vsub.s32 %v1727, %v1729
        %v1731 = vrot.slane %v1717, %v1730
        %v1732 = vcombine.low %v1708, %v1708
        %v1733 = vcombine.high %v1708, %v1708
        %v1735 = vunpack.c.l.s4 1934713408
        %v1736 = vunpack.c.0.s8 %v1735
        %v1737 = vlaneseq
        %v1738 = vshrl.u32 %v1737, 7
        %v1739 = vsub.s32 %v1736, %v1738
        %v1740 = vrot.slane %v1732, %v1739
        %v1742 = vunpack.c.l.s4 1934713408
        %v1743 = vunpack.c.0.s8 %v1742
        %v1744 = vlaneseq
        %v1745 = vshrl.u32 %v1744, 7
        %v1746 = vsub.s32 %v1743, %v1745
        %v1747 = vrot.slane %v1733, %v1746
        %v1748 = vcombine.low %v1715, %v1715
        %v1749 = vcombine.high %v1715, %v1715
        %v1751 = vunpack.c.l.s4 1934713408
        %v1752 = vunpack.c.0.s8 %v1751
        %v1753 = vlaneseq
        %v1754 = vshrl.u32 %v1753, 7
        %v1755 = vsub.s32 %v1752, %v1754
        %v1756 = vrot.slane %v1748, %v1755
        %v1758 = vunpack.c.l.s4 1934713408
        %v1759 = vunpack.c.0.s8 %v1758
        %v1760 = vlaneseq
        %v1761 = vshrl.u32 %v1760, 7
        %v1762 = vsub.s32 %v1759, %v1761
        %v1763 = vrot.slane %v1749, %v1762
        %v1764 = vcombine.low %v1724, %v1724
        %v1765 = vcombine.high %v1724, %v1724
        %v1767 = vunpack.c.l.s4 1934713408
        %v1768 = vunpack.c.0.s8 %v1767
        %v1769 = vlaneseq
        %v1770 = vshrl.u32 %v1769, 7
        %v1771 = vsub.s32 %v1768, %v1770
        %v1772 = vrot.slane %v1764, %v1771
        %v1774 = vunpack.c.l.s4 1934713408
        %v1775 = vunpack.c.0.s8 %v1774
        %v1776 = vlaneseq
        %v1777 = vshrl.u32 %v1776, 7
        %v1778 = vsub.s32 %v1775, %v1777
        %v1779 = vrot.slane %v1765, %v1778
        %v1780 = vcombine.low %v1731, %v1731
        %v1781 = vcombine.high %v1731, %v1731
        %v1783 = vunpack.c.l.s4 1934713408
        %v1784 = vunpack.c.0.s8 %v1783
        %v1785 = vlaneseq
        %v1786 = vshrl.u32 %v1785, 7
        %v1787 = vsub.s32 %v1784, %v1786
        %v1788 = vrot.slane %v1780, %v1787
        %v1790 = vunpack.c.l.s4 1934713408
        %v1791 = vunpack.c.0.s8 %v1790
        %v1792 = vlaneseq
        %v1793 = vshrl.u32 %v1792, 7
        %v1794 = vsub.s32 %v1791, %v1793
        %v1795 = vrot.slane %v1781, %v1794
        %v1796 = vcombine.low %v1740, %v1772
        %v1797 = vcombine.high %v1740, %v1772
        %v1798 = vcombine.low %v1747, %v1779
        %v1799 = vcombine.high %v1747, %v1779
        %v1800 = vcombine.low %v1756, %v1788
        %v1801 = vcombine.high %v1756, %v1788
        %v1802 = vcombine.low %v1763, %v1795
        %v1803 = vcombine.high %v1763, %v1795
        %v1804 = vcombine.low %v390, %v401
        %v1805 = vcombine.high %v390, %v401
        %v1807 = vunpack.c.l.s4 1983009808
        %v1808 = vunpack.c.0.s8 %v1807
        %v1809 = vlaneseq
        %v1810 = vshrl.u32 %v1809, 7
        %v1811 = vsub.s32 %v1808, %v1810
        %v1812 = vrot.slane %v1804, %v1811
        %v1814 = vunpack.c.l.s4 1983009808
        %v1815 = vunpack.c.0.s8 %v1814
        %v1816 = vlaneseq
        %v1817 = vshrl.u32 %v1816, 7
        %v1818 = vsub.s32 %v1815, %v1817
        %v1819 = vrot.slane %v1805, %v1818
        %v1820 = vcombine.low %v412, %v423
        %v1821 = vcombine.high %v412, %v423
        %v1823 = vunpack.c.l.s4 1983009808
        %v1824 = vunpack.c.0.s8 %v1823
        %v1825 = vlaneseq
        %v1826 = vshrl.u32 %v1825, 7
        %v1827 = vsub.s32 %v1824, %v1826
        %v1828 = vrot.slane %v1820, %v1827
        %v1830 = vunpack.c.l.s4 1983009808
        %v1831 = vunpack.c.0.s8 %v1830
        %v1832 = vlaneseq
        %v1833 = vshrl.u32 %v1832, 7
        %v1834 = vsub.s32 %v1831, %v1833
        %v1835 = vrot.slane %v1821, %v1834
        %v1836 = vcombine.low %v1812, %v1812
        %v1837 = vcombine.high %v1812, %v1812
        %v1839 = vunpack.c.l.s4 1934713408
        %v1840 = vunpack.c.0.s8 %v1839
        %v1841 = vlaneseq
        %v1842 = vshrl.u32 %v1841, 7
        %v1843 = vsub.s32 %v1840, %v1842
        %v1844 = vrot.slane %v1836, %v1843
        %v1846 = vunpack.c.l.s4 1934713408
        %v1847 = vunpack.c.0.s8 %v1846
        %v1848 = vlaneseq
        %v1849 = vshrl.u32 %v1848, 7
        %v1850 = vsub.s32 %v1847, %v1849
        %v1851 = vrot.slane %v1837, %v1850
        %v1852 = vcombine.low %v1819, %v1819
        %v1853 = vcombine.high %v1819, %v1819
        %v1855 = vunpack.c.l.s4 1934713408
        %v1856 = vunpack.c.0.s8 %v1855
        %v1857 = vlaneseq
        %v1858 = vshrl.u32 %v1857, 7
        %v1859 = vsub.s32 %v1856, %v1858
        %v1860 = vrot.slane %v1852, %v1859
        %v1862 = vunpack.c.l.s4 1934713408
        %v1863 = vunpack.c.0.s8 %v1862
        %v1864 = vlaneseq
        %v1865 = vshrl.u32 %v1864, 7
        %v1866 = vsub.s32 %v1863, %v1865
        %v1867 = vrot.slane %v1853, %v1866
        %v1868 = vcombine.low %v1828, %v1828
        %v1869 = vcombine.high %v1828, %v1828
        %v1871 = vunpack.c.l.s4 1934713408
        %v1872 = vunpack.c.0.s8 %v1871
        %v1873 = vlaneseq
        %v1874 = vshrl.u32 %v1873, 7
        %v1875 = vsub.s32 %v1872, %v1874
        %v1876 = vrot.slane %v1868, %v1875
        %v1878 = vunpack.c.l.s4 1934713408
        %v1879 = vunpack.c.0.s8 %v1878
        %v1880 = vlaneseq
        %v1881 = vshrl.u32 %v1880, 7
        %v1882 = vsub.s32 %v1879, %v1881
        %v1883 = vrot.slane %v1869, %v1882
        %v1884 = vcombine.low %v1835, %v1835
        %v1885 = vcombine.high %v1835, %v1835
        %v1887 = vunpack.c.l.s4 1934713408
        %v1888 = vunpack.c.0.s8 %v1887
        %v1889 = vlaneseq
        %v1890 = vshrl.u32 %v1889, 7
        %v1891 = vsub.s32 %v1888, %v1890
        %v1892 = vrot.slane %v1884, %v1891
        %v1894 = vunpack.c.l.s4 1934713408
        %v1895 = vunpack.c.0.s8 %v1894
        %v1896 = vlaneseq
        %v1897 = vshrl.u32 %v1896, 7
        %v1898 = vsub.s32 %v1895, %v1897
        %v1899 = vrot.slane %v1885, %v1898
        %v1900 = vcombine.low %v1844, %v1876
        %v1901 = vcombine.high %v1844, %v1876
        %v1902 = vcombine.low %v1851, %v1883
        %v1903 = vcombine.high %v1851, %v1883
        %v1904 = vcombine.low %v1860, %v1892
        %v1905 = vcombine.high %v1860, %v1892
        %v1906 = vcombine.low %v1867, %v1899
        %v1907 = vcombine.high %v1867, %v1899
        %v1908 = vcombine.low %v434, %v445
        %v1909 = vcombine.high %v434, %v445
        %v1911 = vunpack.c.l.s4 1983009808
        %v1912 = vunpack.c.0.s8 %v1911
        %v1913 = vlaneseq
        %v1914 = vshrl.u32 %v1913, 7
        %v1915 = vsub.s32 %v1912, %v1914
        %v1916 = vrot.slane %v1908, %v1915
        %v1918 = vunpack.c.l.s4 1983009808
        %v1919 = vunpack.c.0.s8 %v1918
        %v1920 = vlaneseq
        %v1921 = vshrl.u32 %v1920, 7
        %v1922 = vsub.s32 %v1919, %v1921
        %v1923 = vrot.slane %v1909, %v1922
        %v1924 = vcombine.low %v456, %v467
        %v1925 = vcombine.high %v456, %v467
        %v1927 = vunpack.c.l.s4 1983009808
        %v1928 = vunpack.c.0.s8 %v1927
        %v1929 = vlaneseq
        %v1930 = vshrl.u32 %v1929, 7
        %v1931 = vsub.s32 %v1928, %v1930
        %v1932 = vrot.slane %v1924, %v1931
        %v1934 = vunpack.c.l.s4 1983009808
        %v1935 = vunpack.c.0.s8 %v1934
        %v1936 = vlaneseq
        %v1937 = vshrl.u32 %v1936, 7
        %v1938 = vsub.s32 %v1935, %v1937
        %v1939 = vrot.slane %v1925, %v1938
        %v1940 = vcombine.low %v1916, %v1916
        %v1941 = vcombine.high %v1916, %v1916
        %v1943 = vunpack.c.l.s4 1934713408
        %v1944 = vunpack.c.0.s8 %v1943
        %v1945 = vlaneseq
        %v1946 = vshrl.u32 %v1945, 7
        %v1947 = vsub.s32 %v1944, %v1946
        %v1948 = vrot.slane %v1940, %v1947
        %v1950 = vunpack.c.l.s4 1934713408
        %v1951 = vunpack.c.0.s8 %v1950
        %v1952 = vlaneseq
        %v1953 = vshrl.u32 %v1952, 7
        %v1954 = vsub.s32 %v1951, %v1953
        %v1955 = vrot.slane %v1941, %v1954
        %v1956 = vcombine.low %v1923, %v1923
        %v1957 = vcombine.high %v1923, %v1923
        %v1959 = vunpack.c.l.s4 1934713408
        %v1960 = vunpack.c.0.s8 %v1959
        %v1961 = vlaneseq
        %v1962 = vshrl.u32 %v1961, 7
        %v1963 = vsub.s32 %v1960, %v1962
        %v1964 = vrot.slane %v1956, %v1963
        %v1966 = vunpack.c.l.s4 1934713408
        %v1967 = vunpack.c.0.s8 %v1966
        %v1968 = vlaneseq
        %v1969 = vshrl.u32 %v1968, 7
        %v1970 = vsub.s32 %v1967, %v1969
        %v1971 = vrot.slane %v1957, %v1970
        %v1972 = vcombine.low %v1932, %v1932
        %v1973 = vcombine.high %v1932, %v1932
        %v1975 = vunpack.c.l.s4 1934713408
        %v1976 = vunpack.c.0.s8 %v1975
        %v1977 = vlaneseq
        %v1978 = vshrl.u32 %v1977, 7
        %v1979 = vsub.s32 %v1976, %v1978
        %v1980 = vrot.slane %v1972, %v1979
        %v1982 = vunpack.c.l.s4 1934713408
        %v1983 = vunpack.c.0.s8 %v1982
        %v1984 = vlaneseq
        %v1985 = vshrl.u32 %v1984, 7
        %v1986 = vsub.s32 %v1983, %v1985
        %v1987 = vrot.slane %v1973, %v1986
        %v1988 = vcombine.low %v1939, %v1939
        %v1989 = vcombine.high %v1939, %v1939
        %v1991 = vunpack.c.l.s4 1934713408
        %v1992 = vunpack.c.0.s8 %v1991
        %v1993 = vlaneseq
        %v1994 = vshrl.u32 %v1993, 7
        %v1995 = vsub.s32 %v1992, %v1994
        %v1996 = vrot.slane %v1988, %v1995
        %v1998 = vunpack.c.l.s4 1934713408
        %v1999 = vunpack.c.0.s8 %v1998
        %v2000 = vlaneseq
        %v2001 = vshrl.u32 %v2000, 7
        %v2002 = vsub.s32 %v1999, %v2001
        %v2003 = vrot.slane %v1989, %v2002
        %v2004 = vcombine.low %v1948, %v1980
        %v2005 = vcombine.high %v1948, %v1980
        %v2006 = vcombine.low %v1955, %v1987
        %v2007 = vcombine.high %v1955, %v1987
        %v2008 = vcombine.low %v1964, %v1996
        %v2009 = vcombine.high %v1964, %v1996
        %v2010 = vcombine.low %v1971, %v2003
        %v2011 = vcombine.high %v1971, %v2003
        %v2012 = vcombine.low %v478, %v489
        %v2013 = vcombine.high %v478, %v489
        %v2015 = vunpack.c.l.s4 1983009808
        %v2016 = vunpack.c.0.s8 %v2015
        %v2017 = vlaneseq
        %v2018 = vshrl.u32 %v2017, 7
        %v2019 = vsub.s32 %v2016, %v2018
        %v2020 = vrot.slane %v2012, %v2019
        %v2022 = vunpack.c.l.s4 1983009808
        %v2023 = vunpack.c.0.s8 %v2022
        %v2024 = vlaneseq
        %v2025 = vshrl.u32 %v2024, 7
        %v2026 = vsub.s32 %v2023, %v2025
        %v2027 = vrot.slane %v2013, %v2026
        %v2028 = vcombine.low %v500, %v511
        %v2029 = vcombine.high %v500, %v511
        %v2031 = vunpack.c.l.s4 1983009808
        %v2032 = vunpack.c.0.s8 %v2031
        %v2033 = vlaneseq
        %v2034 = vshrl.u32 %v2033, 7
        %v2035 = vsub.s32 %v2032, %v2034
        %v2036 = vrot.slane %v2028, %v2035
        %v2038 = vunpack.c.l.s4 1983009808
        %v2039 = vunpack.c.0.s8 %v2038
        %v2040 = vlaneseq
        %v2041 = vshrl.u32 %v2040, 7
        %v2042 = vsub.s32 %v2039, %v2041
        %v2043 = vrot.slane %v2029, %v2042
        %v2044 = vcombine.low %v2020, %v2020
        %v2045 = vcombine.high %v2020, %v2020
        %v2047 = vunpack.c.l.s4 1934713408
        %v2048 = vunpack.c.0.s8 %v2047
        %v2049 = vlaneseq
        %v2050 = vshrl.u32 %v2049, 7
        %v2051 = vsub.s32 %v2048, %v2050
        %v2052 = vrot.slane %v2044, %v2051
        %v2054 = vunpack.c.l.s4 1934713408
        %v2055 = vunpack.c.0.s8 %v2054
        %v2056 = vlaneseq
        %v2057 = vshrl.u32 %v2056, 7
        %v2058 = vsub.s32 %v2055, %v2057
        %v2059 = vrot.slane %v2045, %v2058
        %v2060 = vcombine.low %v2027, %v2027
        %v2061 = vcombine.high %v2027, %v2027
        %v2063 = vunpack.c.l.s4 1934713408
        %v2064 = vunpack.c.0.s8 %v2063
        %v2065 = vlaneseq
        %v2066 = vshrl.u32 %v2065, 7
        %v2067 = vsub.s32 %v2064, %v2066
        %v2068 = vrot.slane %v2060, %v2067
        %v2070 = vunpack.c.l.s4 1934713408
        %v2071 = vunpack.c.0.s8 %v2070
        %v2072 = vlaneseq
        %v2073 = vshrl.u32 %v2072, 7
        %v2074 = vsub.s32 %v2071, %v2073
        %v2075 = vrot.slane %v2061, %v2074
        %v2076 = vcombine.low %v2036, %v2036
        %v2077 = vcombine.high %v2036, %v2036
        %v2079 = vunpack.c.l.s4 1934713408
        %v2080 = vunpack.c.0.s8 %v2079
        %v2081 = vlaneseq
        %v2082 = vshrl.u32 %v2081, 7
        %v2083 = vsub.s32 %v2080, %v2082
        %v2084 = vrot.slane %v2076, %v2083
        %v2086 = vunpack.c.l.s4 1934713408
        %v2087 = vunpack.c.0.s8 %v2086
        %v2088 = vlaneseq
        %v2089 = vshrl.u32 %v2088, 7
        %v2090 = vsub.s32 %v2087, %v2089
        %v2091 = vrot.slane %v2077, %v2090
        %v2092 = vcombine.low %v2043, %v2043
        %v2093 = vcombine.high %v2043, %v2043
        %v2095 = vunpack.c.l.s4 1934713408
        %v2096 = vunpack.c.0.s8 %v2095
        %v2097 = vlaneseq
        %v2098 = vshrl.u32 %v2097, 7
        %v2099 = vsub.s32 %v2096, %v2098
        %v2100 = vrot.slane %v2092, %v2099
        %v2102 = vunpack.c.l.s4 1934713408
        %v2103 = vunpack.c.0.s8 %v2102
        %v2104 = vlaneseq
        %v2105 = vshrl.u32 %v2104, 7
        %v2106 = vsub.s32 %v2103, %v2105
        %v2107 = vrot.slane %v2093, %v2106
        %v2108 = vcombine.low %v2052, %v2084
        %v2109 = vcombine.high %v2052, %v2084
        %v2110 = vcombine.low %v2059, %v2091
        %v2111 = vcombine.high %v2059, %v2091
        %v2112 = vcombine.low %v2068, %v2100
        %v2113 = vcombine.high %v2068, %v2100
        %v2114 = vcombine.low %v2075, %v2107
        %v2115 = vcombine.high %v2075, %v2107
        %v2116 = vcombine.low %v350, %v361
        %v2117 = vcombine.high %v350, %v361
        %v2119 = vunpack.c.l.s4 1983009808
        %v2120 = vunpack.c.0.s8 %v2119
        %v2121 = vlaneseq
        %v2122 = vshrl.u32 %v2121, 7
        %v2123 = vsub.s32 %v2120, %v2122
        %v2124 = vrot.slane %v2116, %v2123
        %v2126 = vunpack.c.l.s4 1983009808
        %v2127 = vunpack.c.0.s8 %v2126
        %v2128 = vlaneseq
        %v2129 = vshrl.u32 %v2128, 7
        %v2130 = vsub.s32 %v2127, %v2129
        %v2131 = vrot.slane %v2117, %v2130
        %v2132 = vcombine.low %v372, %v383
        %v2133 = vcombine.high %v372, %v383
        %v2135 = vunpack.c.l.s4 1983009808
        %v2136 = vunpack.c.0.s8 %v2135
        %v2137 = vlaneseq
        %v2138 = vshrl.u32 %v2137, 7
        %v2139 = vsub.s32 %v2136, %v2138
        %v2140 = vrot.slane %v2132, %v2139
        %v2142 = vunpack.c.l.s4 1983009808
        %v2143 = vunpack.c.0.s8 %v2142
        %v2144 = vlaneseq
        %v2145 = vshrl.u32 %v2144, 7
        %v2146 = vsub.s32 %v2143, %v2145
        %v2147 = vrot.slane %v2133, %v2146
        %v2148 = vcombine.low %v2124, %v2124
        %v2149 = vcombine.high %v2124, %v2124
        %v2151 = vunpack.c.l.s4 1934713408
        %v2152 = vunpack.c.0.s8 %v2151
        %v2153 = vlaneseq
        %v2154 = vshrl.u32 %v2153, 7
        %v2155 = vsub.s32 %v2152, %v2154
        %v2156 = vrot.slane %v2148, %v2155
        %v2158 = vunpack.c.l.s4 1934713408
        %v2159 = vunpack.c.0.s8 %v2158
        %v2160 = vlaneseq
        %v2161 = vshrl.u32 %v2160, 7
        %v2162 = vsub.s32 %v2159, %v2161
        %v2163 = vrot.slane %v2149, %v2162
        %v2164 = vcombine.low %v2131, %v2131
        %v2165 = vcombine.high %v2131, %v2131
        %v2167 = vunpack.c.l.s4 1934713408
        %v2168 = vunpack.c.0.s8 %v2167
        %v2169 = vlaneseq
        %v2170 = vshrl.u32 %v2169, 7
        %v2171 = vsub.s32 %v2168, %v2170
        %v2172 = vrot.slane %v2164, %v2171
        %v2174 = vunpack.c.l.s4 1934713408
        %v2175 = vunpack.c.0.s8 %v2174
        %v2176 = vlaneseq
        %v2177 = vshrl.u32 %v2176, 7
        %v2178 = vsub.s32 %v2175, %v2177
        %v2179 = vrot.slane %v2165, %v2178
        %v2180 = vcombine.low %v2140, %v2140
        %v2181 = vcombine.high %v2140, %v2140
        %v2183 = vunpack.c.l.s4 1934713408
        %v2184 = vunpack.c.0.s8 %v2183
        %v2185 = vlaneseq
        %v2186 = vshrl.u32 %v2185, 7
        %v2187 = vsub.s32 %v2184, %v2186
        %v2188 = vrot.slane %v2180, %v2187
        %v2190 = vunpack.c.l.s4 1934713408
        %v2191 = vunpack.c.0.s8 %v2190
        %v2192 = vlaneseq
        %v2193 = vshrl.u32 %v2192, 7
        %v2194 = vsub.s32 %v2191, %v2193
        %v2195 = vrot.slane %v2181, %v2194
        %v2196 = vcombine.low %v2147, %v2147
        %v2197 = vcombine.high %v2147, %v2147
        %v2199 = vunpack.c.l.s4 1934713408
        %v2200 = vunpack.c.0.s8 %v2199
        %v2201 = vlaneseq
        %v2202 = vshrl.u32 %v2201, 7
        %v2203 = vsub.s32 %v2200, %v2202
        %v2204 = vrot.slane %v2196, %v2203
        %v2206 = vunpack.c.l.s4 1934713408
        %v2207 = vunpack.c.0.s8 %v2206
        %v2208 = vlaneseq
        %v2209 = vshrl.u32 %v2208, 7
        %v2210 = vsub.s32 %v2207, %v2209
        %v2211 = vrot.slane %v2197, %v2210
        %v2212 = vcombine.low %v2156, %v2188
        %v2213 = vcombine.high %v2156, %v2188
        %v2214 = vcombine.low %v2163, %v2195
        %v2215 = vcombine.high %v2163, %v2195
        %v2216 = vcombine.low %v2172, %v2204
        %v2217 = vcombine.high %v2172, %v2204
        %v2218 = vcombine.low %v2179, %v2211
        %v2219 = vcombine.high %v2179, %v2211
        %v2220 = vcombine.low %v394, %v405
        %v2221 = vcombine.high %v394, %v405
        %v2223 = vunpack.c.l.s4 1983009808
        %v2224 = vunpack.c.0.s8 %v2223
        %v2225 = vlaneseq
        %v2226 = vshrl.u32 %v2225, 7
        %v2227 = vsub.s32 %v2224, %v2226
        %v2228 = vrot.slane %v2220, %v2227
        %v2230 = vunpack.c.l.s4 1983009808
        %v2231 = vunpack.c.0.s8 %v2230
        %v2232 = vlaneseq
        %v2233 = vshrl.u32 %v2232, 7
        %v2234 = vsub.s32 %v2231, %v2233
        %v2235 = vrot.slane %v2221, %v2234
        %v2236 = vcombine.low %v416, %v427
        %v2237 = vcombine.high %v416, %v427
        %v2239 = vunpack.c.l.s4 1983009808
        %v2240 = vunpack.c.0.s8 %v2239
        %v2241 = vlaneseq
        %v2242 = vshrl.u32 %v2241, 7
        %v2243 = vsub.s32 %v2240, %v2242
        %v2244 = vrot.slane %v2236, %v2243
        %v2246 = vunpack.c.l.s4 1983009808
        %v2247 = vunpack.c.0.s8 %v2246
        %v2248 = vlaneseq
        %v2249 = vshrl.u32 %v2248, 7
        %v2250 = vsub.s32 %v2247, %v2249
        %v2251 = vrot.slane %v2237, %v2250
        %v2252 = vcombine.low %v2228, %v2228
        %v2253 = vcombine.high %v2228, %v2228
        %v2255 = vunpack.c.l.s4 1934713408
        %v2256 = vunpack.c.0.s8 %v2255
        %v2257 = vlaneseq
        %v2258 = vshrl.u32 %v2257, 7
        %v2259 = vsub.s32 %v2256, %v2258
        %v2260 = vrot.slane %v2252, %v2259
        %v2262 = vunpack.c.l.s4 1934713408
        %v2263 = vunpack.c.0.s8 %v2262
        %v2264 = vlaneseq
        %v2265 = vshrl.u32 %v2264, 7
        %v2266 = vsub.s32 %v2263, %v2265
        %v2267 = vrot.slane %v2253, %v2266
        %v2268 = vcombine.low %v2235, %v2235
        %v2269 = vcombine.high %v2235, %v2235
        %v2271 = vunpack.c.l.s4 1934713408
        %v2272 = vunpack.c.0.s8 %v2271
        %v2273 = vlaneseq
        %v2274 = vshrl.u32 %v2273, 7
        %v2275 = vsub.s32 %v2272, %v2274
        %v2276 = vrot.slane %v2268, %v2275
        %v2278 = vunpack.c.l.s4 1934713408
        %v2279 = vunpack.c.0.s8 %v2278
        %v2280 = vlaneseq
        %v2281 = vshrl.u32 %v2280, 7
        %v2282 = vsub.s32 %v2279, %v2281
        %v2283 = vrot.slane %v2269, %v2282
        %v2284 = vcombine.low %v2244, %v2244
        %v2285 = vcombine.high %v2244, %v2244
        %v2287 = vunpack.c.l.s4 1934713408
        %v2288 = vunpack.c.0.s8 %v2287
        %v2289 = vlaneseq
        %v2290 = vshrl.u32 %v2289, 7
        %v2291 = vsub.s32 %v2288, %v2290
        %v2292 = vrot.slane %v2284, %v2291
        %v2294 = vunpack.c.l.s4 1934713408
        %v2295 = vunpack.c.0.s8 %v2294
        %v2296 = vlaneseq
        %v2297 = vshrl.u32 %v2296, 7
        %v2298 = vsub.s32 %v2295, %v2297
        %v2299 = vrot.slane %v2285, %v2298
        %v2300 = vcombine.low %v2251, %v2251
        %v2301 = vcombine.high %v2251, %v2251
        %v2303 = vunpack.c.l.s4 1934713408
        %v2304 = vunpack.c.0.s8 %v2303
        %v2305 = vlaneseq
        %v2306 = vshrl.u32 %v2305, 7
        %v2307 = vsub.s32 %v2304, %v2306
        %v2308 = vrot.slane %v2300, %v2307
        %v2310 = vunpack.c.l.s4 1934713408
        %v2311 = vunpack.c.0.s8 %v2310
        %v2312 = vlaneseq
        %v2313 = vshrl.u32 %v2312, 7
        %v2314 = vsub.s32 %v2311, %v2313
        %v2315 = vrot.slane %v2301, %v2314
        %v2316 = vcombine.low %v2260, %v2292
        %v2317 = vcombine.high %v2260, %v2292
        %v2318 = vcombine.low %v2267, %v2299
        %v2319 = vcombine.high %v2267, %v2299
        %v2320 = vcombine.low %v2276, %v2308
        %v2321 = vcombine.high %v2276, %v2308
        %v2322 = vcombine.low %v2283, %v2315
        %v2323 = vcombine.high %v2283, %v2315
        %v2324 = vcombine.low %v438, %v449
        %v2325 = vcombine.high %v438, %v449
        %v2327 = vunpack.c.l.s4 1983009808
        %v2328 = vunpack.c.0.s8 %v2327
        %v2329 = vlaneseq
        %v2330 = vshrl.u32 %v2329, 7
        %v2331 = vsub.s32 %v2328, %v2330
        %v2332 = vrot.slane %v2324, %v2331
        %v2334 = vunpack.c.l.s4 1983009808
        %v2335 = vunpack.c.0.s8 %v2334
        %v2336 = vlaneseq
        %v2337 = vshrl.u32 %v2336, 7
        %v2338 = vsub.s32 %v2335, %v2337
        %v2339 = vrot.slane %v2325, %v2338
        %v2340 = vcombine.low %v460, %v471
        %v2341 = vcombine.high %v460, %v471
        %v2343 = vunpack.c.l.s4 1983009808
        %v2344 = vunpack.c.0.s8 %v2343
        %v2345 = vlaneseq
        %v2346 = vshrl.u32 %v2345, 7
        %v2347 = vsub.s32 %v2344, %v2346
        %v2348 = vrot.slane %v2340, %v2347
        %v2350 = vunpack.c.l.s4 1983009808
        %v2351 = vunpack.c.0.s8 %v2350
        %v2352 = vlaneseq
        %v2353 = vshrl.u32 %v2352, 7
        %v2354 = vsub.s32 %v2351, %v2353
        %v2355 = vrot.slane %v2341, %v2354
        %v2356 = vcombine.low %v2332, %v2332
        %v2357 = vcombine.high %v2332, %v2332
        %v2359 = vunpack.c.l.s4 1934713408
        %v2360 = vunpack.c.0.s8 %v2359
        %v2361 = vlaneseq
        %v2362 = vshrl.u32 %v2361, 7
        %v2363 = vsub.s32 %v2360, %v2362
        %v2364 = vrot.slane %v2356, %v2363
        %v2366 = vunpack.c.l.s4 1934713408
        %v2367 = vunpack.c.0.s8 %v2366
        %v2368 = vlaneseq
        %v2369 = vshrl.u32 %v2368, 7
        %v2370 = vsub.s32 %v2367, %v2369
        %v2371 = vrot.slane %v2357, %v2370
        %v2372 = vcombine.low %v2339, %v2339
        %v2373 = vcombine.high %v2339, %v2339
        %v2375 = vunpack.c.l.s4 1934713408
        %v2376 = vunpack.c.0.s8 %v2375
        %v2377 = vlaneseq
        %v2378 = vshrl.u32 %v2377, 7
        %v2379 = vsub.s32 %v2376, %v2378
        %v2380 = vrot.slane %v2372, %v2379
        %v2382 = vunpack.c.l.s4 1934713408
        %v2383 = vunpack.c.0.s8 %v2382
        %v2384 = vlaneseq
        %v2385 = vshrl.u32 %v2384, 7
        %v2386 = vsub.s32 %v2383, %v2385
        %v2387 = vrot.slane %v2373, %v2386
        %v2388 = vcombine.low %v2348, %v2348
        %v2389 = vcombine.high %v2348, %v2348
        %v2391 = vunpack.c.l.s4 1934713408
        %v2392 = vunpack.c.0.s8 %v2391
        %v2393 = vlaneseq
        %v2394 = vshrl.u32 %v2393, 7
        %v2395 = vsub.s32 %v2392, %v2394
        %v2396 = vrot.slane %v2388, %v2395
        %v2398 = vunpack.c.l.s4 1934713408
        %v2399 = vunpack.c.0.s8 %v2398
        %v2400 = vlaneseq
        %v2401 = vshrl.u32 %v2400, 7
        %v2402 = vsub.s32 %v2399, %v2401
        %v2403 = vrot.slane %v2389, %v2402
        %v2404 = vcombine.low %v2355, %v2355
        %v2405 = vcombine.high %v2355, %v2355
        %v2407 = vunpack.c.l.s4 1934713408
        %v2408 = vunpack.c.0.s8 %v2407
        %v2409 = vlaneseq
        %v2410 = vshrl.u32 %v2409, 7
        %v2411 = vsub.s32 %v2408, %v2410
        %v2412 = vrot.slane %v2404, %v2411
        %v2414 = vunpack.c.l.s4 1934713408
        %v2415 = vunpack.c.0.s8 %v2414
        %v2416 = vlaneseq
        %v2417 = vshrl.u32 %v2416, 7
        %v2418 = vsub.s32 %v2415, %v2417
        %v2419 = vrot.slane %v2405, %v2418
        %v2420 = vcombine.low %v2364, %v2396
        %v2421 = vcombine.high %v2364, %v2396
        %v2422 = vcombine.low %v2371, %v2403
        %v2423 = vcombine.high %v2371, %v2403
        %v2424 = vcombine.low %v2380, %v2412
        %v2425 = vcombine.high %v2380, %v2412
        %v2426 = vcombine.low %v2387, %v2419
        %v2427 = vcombine.high %v2387, %v2419
        %v2428 = vcombine.low %v482, %v493
        %v2429 = vcombine.high %v482, %v493
        %v2431 = vunpack.c.l.s4 1983009808
        %v2432 = vunpack.c.0.s8 %v2431
        %v2433 = vlaneseq
        %v2434 = vshrl.u32 %v2433, 7
        %v2435 = vsub.s32 %v2432, %v2434
        %v2436 = vrot.slane %v2428, %v2435
        %v2438 = vunpack.c.l.s4 1983009808
        %v2439 = vunpack.c.0.s8 %v2438
        %v2440 = vlaneseq
        %v2441 = vshrl.u32 %v2440, 7
        %v2442 = vsub.s32 %v2439, %v2441
        %v2443 = vrot.slane %v2429, %v2442
        %v2444 = vcombine.low %v504, %v515
        %v2445 = vcombine.high %v504, %v515
        %v2447 = vunpack.c.l.s4 1983009808
        %v2448 = vunpack.c.0.s8 %v2447
        %v2449 = vlaneseq
        %v2450 = vshrl.u32 %v2449, 7
        %v2451 = vsub.s32 %v2448, %v2450
        %v2452 = vrot.slane %v2444, %v2451
        %v2454 = vunpack.c.l.s4 1983009808
        %v2455 = vunpack.c.0.s8 %v2454
        %v2456 = vlaneseq
        %v2457 = vshrl.u32 %v2456, 7
        %v2458 = vsub.s32 %v2455, %v2457
        %v2459 = vrot.slane %v2445, %v2458
        %v2460 = vcombine.low %v2436, %v2436
        %v2461 = vcombine.high %v2436, %v2436
        %v2463 = vunpack.c.l.s4 1934713408
        %v2464 = vunpack.c.0.s8 %v2463
        %v2465 = vlaneseq
        %v2466 = vshrl.u32 %v2465, 7
        %v2467 = vsub.s32 %v2464, %v2466
        %v2468 = vrot.slane %v2460, %v2467
        %v2470 = vunpack.c.l.s4 1934713408
        %v2471 = vunpack.c.0.s8 %v2470
        %v2472 = vlaneseq
        %v2473 = vshrl.u32 %v2472, 7
        %v2474 = vsub.s32 %v2471, %v2473
        %v2475 = vrot.slane %v2461, %v2474
        %v2476 = vcombine.low %v2443, %v2443
        %v2477 = vcombine.high %v2443, %v2443
        %v2479 = vunpack.c.l.s4 1934713408
        %v2480 = vunpack.c.0.s8 %v2479
        %v2481 = vlaneseq
        %v2482 = vshrl.u32 %v2481, 7
        %v2483 = vsub.s32 %v2480, %v2482
        %v2484 = vrot.slane %v2476, %v2483
        %v2486 = vunpack.c.l.s4 1934713408
        %v2487 = vunpack.c.0.s8 %v2486
        %v2488 = vlaneseq
        %v2489 = vshrl.u32 %v2488, 7
        %v2490 = vsub.s32 %v2487, %v2489
        %v2491 = vrot.slane %v2477, %v2490
        %v2492 = vcombine.low %v2452, %v2452
        %v2493 = vcombine.high %v2452, %v2452
        %v2495 = vunpack.c.l.s4 1934713408
        %v2496 = vunpack.c.0.s8 %v2495
        %v2497 = vlaneseq
        %v2498 = vshrl.u32 %v2497, 7
        %v2499 = vsub.s32 %v2496, %v2498
        %v2500 = vrot.slane %v2492, %v2499
        %v2502 = vunpack.c.l.s4 1934713408
        %v2503 = vunpack.c.0.s8 %v2502
        %v2504 = vlaneseq
        %v2505 = vshrl.u32 %v2504, 7
        %v2506 = vsub.s32 %v2503, %v2505
        %v2507 = vrot.slane %v2493, %v2506
        %v2508 = vcombine.low %v2459, %v2459
        %v2509 = vcombine.high %v2459, %v2459
        %v2511 = vunpack.c.l.s4 1934713408
        %v2512 = vunpack.c.0.s8 %v2511
        %v2513 = vlaneseq
        %v2514 = vshrl.u32 %v2513, 7
        %v2515 = vsub.s32 %v2512, %v2514
        %v2516 = vrot.slane %v2508, %v2515
        %v2518 = vunpack.c.l.s4 1934713408
        %v2519 = vunpack.c.0.s8 %v2518
        %v2520 = vlaneseq
        %v2521 = vshrl.u32 %v2520, 7
        %v2522 = vsub.s32 %v2519, %v2521
        %v2523 = vrot.slane %v2509, %v2522
        %v2524 = vcombine.low %v2468, %v2500
        %v2525 = vcombine.high %v2468, %v2500
        %v2526 = vcombine.low %v2475, %v2507
        %v2527 = vcombine.high %v2475, %v2507
        %v2528 = vcombine.low %v2484, %v2516
        %v2529 = vcombine.high %v2484, %v2516
        %v2530 = vcombine.low %v2491, %v2523
        %v2531 = vcombine.high %v2491, %v2523
        %v2532 = vcombine.low %v522, %v533
        %v2533 = vcombine.high %v522, %v533
        %v2535 = vunpack.c.l.s4 1983009808
        %v2536 = vunpack.c.0.s8 %v2535
        %v2537 = vlaneseq
        %v2538 = vshrl.u32 %v2537, 7
        %v2539 = vsub.s32 %v2536, %v2538
        %v2540 = vrot.slane %v2532, %v2539
        %v2542 = vunpack.c.l.s4 1983009808
        %v2543 = vunpack.c.0.s8 %v2542
        %v2544 = vlaneseq
        %v2545 = vshrl.u32 %v2544, 7
        %v2546 = vsub.s32 %v2543, %v2545
        %v2547 = vrot.slane %v2533, %v2546
        %v2548 = vcombine.low %v544, %v555
        %v2549 = vcombine.high %v544, %v555
        %v2551 = vunpack.c.l.s4 1983009808
        %v2552 = vunpack.c.0.s8 %v2551
        %v2553 = vlaneseq
        %v2554 = vshrl.u32 %v2553, 7
        %v2555 = vsub.s32 %v2552, %v2554
        %v2556 = vrot.slane %v2548, %v2555
        %v2558 = vunpack.c.l.s4 1983009808
        %v2559 = vunpack.c.0.s8 %v2558
        %v2560 = vlaneseq
        %v2561 = vshrl.u32 %v2560, 7
        %v2562 = vsub.s32 %v2559, %v2561
        %v2563 = vrot.slane %v2549, %v2562
        %v2564 = vcombine.low %v2540, %v2540
        %v2565 = vcombine.high %v2540, %v2540
        %v2567 = vunpack.c.l.s4 1934713408
        %v2568 = vunpack.c.0.s8 %v2567
        %v2569 = vlaneseq
        %v2570 = vshrl.u32 %v2569, 7
        %v2571 = vsub.s32 %v2568, %v2570
        %v2572 = vrot.slane %v2564, %v2571
        %v2574 = vunpack.c.l.s4 1934713408
        %v2575 = vunpack.c.0.s8 %v2574
        %v2576 = vlaneseq
        %v2577 = vshrl.u32 %v2576, 7
        %v2578 = vsub.s32 %v2575, %v2577
        %v2579 = vrot.slane %v2565, %v2578
        %v2580 = vcombine.low %v2547, %v2547
        %v2581 = vcombine.high %v2547, %v2547
        %v2583 = vunpack.c.l.s4 1934713408
        %v2584 = vunpack.c.0.s8 %v2583
        %v2585 = vlaneseq
        %v2586 = vshrl.u32 %v2585, 7
        %v2587 = vsub.s32 %v2584, %v2586
        %v2588 = vrot.slane %v2580, %v2587
        %v2590 = vunpack.c.l.s4 1934713408
        %v2591 = vunpack.c.0.s8 %v2590
        %v2592 = vlaneseq
        %v2593 = vshrl.u32 %v2592, 7
        %v2594 = vsub.s32 %v2591, %v2593
        %v2595 = vrot.slane %v2581, %v2594
        %v2596 = vcombine.low %v2556, %v2556
        %v2597 = vcombine.high %v2556, %v2556
        %v2599 = vunpack.c.l.s4 1934713408
        %v2600 = vunpack.c.0.s8 %v2599
        %v2601 = vlaneseq
        %v2602 = vshrl.u32 %v2601, 7
        %v2603 = vsub.s32 %v2600, %v2602
        %v2604 = vrot.slane %v2596, %v2603
        %v2606 = vunpack.c.l.s4 1934713408
        %v2607 = vunpack.c.0.s8 %v2606
        %v2608 = vlaneseq
        %v2609 = vshrl.u32 %v2608, 7
        %v2610 = vsub.s32 %v2607, %v2609
        %v2611 = vrot.slane %v2597, %v2610
        %v2612 = vcombine.low %v2563, %v2563
        %v2613 = vcombine.high %v2563, %v2563
        %v2615 = vunpack.c.l.s4 1934713408
        %v2616 = vunpack.c.0.s8 %v2615
        %v2617 = vlaneseq
        %v2618 = vshrl.u32 %v2617, 7
        %v2619 = vsub.s32 %v2616, %v2618
        %v2620 = vrot.slane %v2612, %v2619
        %v2622 = vunpack.c.l.s4 1934713408
        %v2623 = vunpack.c.0.s8 %v2622
        %v2624 = vlaneseq
        %v2625 = vshrl.u32 %v2624, 7
        %v2626 = vsub.s32 %v2623, %v2625
        %v2627 = vrot.slane %v2613, %v2626
        %v2628 = vcombine.low %v2572, %v2604
        %v2629 = vcombine.high %v2572, %v2604
        %v2630 = vcombine.low %v2579, %v2611
        %v2631 = vcombine.high %v2579, %v2611
        %v2632 = vcombine.low %v2588, %v2620
        %v2633 = vcombine.high %v2588, %v2620
        %v2634 = vcombine.low %v2595, %v2627
        %v2635 = vcombine.high %v2595, %v2627
        %v2636 = vcombine.low %v566, %v577
        %v2637 = vcombine.high %v566, %v577
        %v2639 = vunpack.c.l.s4 1983009808
        %v2640 = vunpack.c.0.s8 %v2639
        %v2641 = vlaneseq
        %v2642 = vshrl.u32 %v2641, 7
        %v2643 = vsub.s32 %v2640, %v2642
        %v2644 = vrot.slane %v2636, %v2643
        %v2646 = vunpack.c.l.s4 1983009808
        %v2647 = vunpack.c.0.s8 %v2646
        %v2648 = vlaneseq
        %v2649 = vshrl.u32 %v2648, 7
        %v2650 = vsub.s32 %v2647, %v2649
        %v2651 = vrot.slane %v2637, %v2650
        %v2652 = vcombine.low %v588, %v599
        %v2653 = vcombine.high %v588, %v599
        %v2655 = vunpack.c.l.s4 1983009808
        %v2656 = vunpack.c.0.s8 %v2655
        %v2657 = vlaneseq
        %v2658 = vshrl.u32 %v2657, 7
        %v2659 = vsub.s32 %v2656, %v2658
        %v2660 = vrot.slane %v2652, %v2659
        %v2662 = vunpack.c.l.s4 1983009808
        %v2663 = vunpack.c.0.s8 %v2662
        %v2664 = vlaneseq
        %v2665 = vshrl.u32 %v2664, 7
        %v2666 = vsub.s32 %v2663, %v2665
        %v2667 = vrot.slane %v2653, %v2666
        %v2668 = vcombine.low %v2644, %v2644
        %v2669 = vcombine.high %v2644, %v2644
        %v2671 = vunpack.c.l.s4 1934713408
        %v2672 = vunpack.c.0.s8 %v2671
        %v2673 = vlaneseq
        %v2674 = vshrl.u32 %v2673, 7
        %v2675 = vsub.s32 %v2672, %v2674
        %v2676 = vrot.slane %v2668, %v2675
        %v2678 = vunpack.c.l.s4 1934713408
        %v2679 = vunpack.c.0.s8 %v2678
        %v2680 = vlaneseq
        %v2681 = vshrl.u32 %v2680, 7
        %v2682 = vsub.s32 %v2679, %v2681
        %v2683 = vrot.slane %v2669, %v2682
        %v2684 = vcombine.low %v2651, %v2651
        %v2685 = vcombine.high %v2651, %v2651
        %v2687 = vunpack.c.l.s4 1934713408
        %v2688 = vunpack.c.0.s8 %v2687
        %v2689 = vlaneseq
        %v2690 = vshrl.u32 %v2689, 7
        %v2691 = vsub.s32 %v2688, %v2690
        %v2692 = vrot.slane %v2684, %v2691
        %v2694 = vunpack.c.l.s4 1934713408
        %v2695 = vunpack.c.0.s8 %v2694
        %v2696 = vlaneseq
        %v2697 = vshrl.u32 %v2696, 7
        %v2698 = vsub.s32 %v2695, %v2697
        %v2699 = vrot.slane %v2685, %v2698
        %v2700 = vcombine.low %v2660, %v2660
        %v2701 = vcombine.high %v2660, %v2660
        %v2703 = vunpack.c.l.s4 1934713408
        %v2704 = vunpack.c.0.s8 %v2703
        %v2705 = vlaneseq
        %v2706 = vshrl.u32 %v2705, 7
        %v2707 = vsub.s32 %v2704, %v2706
        %v2708 = vrot.slane %v2700, %v2707
        %v2710 = vunpack.c.l.s4 1934713408
        %v2711 = vunpack.c.0.s8 %v2710
        %v2712 = vlaneseq
        %v2713 = vshrl.u32 %v2712, 7
        %v2714 = vsub.s32 %v2711, %v2713
        %v2715 = vrot.slane %v2701, %v2714
        %v2716 = vcombine.low %v2667, %v2667
        %v2717 = vcombine.high %v2667, %v2667
        %v2719 = vunpack.c.l.s4 1934713408
        %v2720 = vunpack.c.0.s8 %v2719
        %v2721 = vlaneseq
        %v2722 = vshrl.u32 %v2721, 7
        %v2723 = vsub.s32 %v2720, %v2722
        %v2724 = vrot.slane %v2716, %v2723
        %v2726 = vunpack.c.l.s4 1934713408
        %v2727 = vunpack.c.0.s8 %v2726
        %v2728 = vlaneseq
        %v2729 = vshrl.u32 %v2728, 7
        %v2730 = vsub.s32 %v2727, %v2729
        %v2731 = vrot.slane %v2717, %v2730
        %v2732 = vcombine.low %v2676, %v2708
        %v2733 = vcombine.high %v2676, %v2708
        %v2734 = vcombine.low %v2683, %v2715
        %v2735 = vcombine.high %v2683, %v2715
        %v2736 = vcombine.low %v2692, %v2724
        %v2737 = vcombine.high %v2692, %v2724
        %v2738 = vcombine.low %v2699, %v2731
        %v2739 = vcombine.high %v2699, %v2731
        %v2740 = vcombine.low %v610, %v621
        %v2741 = vcombine.high %v610, %v621
        %v2743 = vunpack.c.l.s4 1983009808
        %v2744 = vunpack.c.0.s8 %v2743
        %v2745 = vlaneseq
        %v2746 = vshrl.u32 %v2745, 7
        %v2747 = vsub.s32 %v2744, %v2746
        %v2748 = vrot.slane %v2740, %v2747
        %v2750 = vunpack.c.l.s4 1983009808
        %v2751 = vunpack.c.0.s8 %v2750
        %v2752 = vlaneseq
        %v2753 = vshrl.u32 %v2752, 7
        %v2754 = vsub.s32 %v2751, %v2753
        %v2755 = vrot.slane %v2741, %v2754
        %v2756 = vcombine.low %v632, %v643
        %v2757 = vcombine.high %v632, %v643
        %v2759 = vunpack.c.l.s4 1983009808
        %v2760 = vunpack.c.0.s8 %v2759
        %v2761 = vlaneseq
        %v2762 = vshrl.u32 %v2761, 7
        %v2763 = vsub.s32 %v2760, %v2762
        %v2764 = vrot.slane %v2756, %v2763
        %v2766 = vunpack.c.l.s4 1983009808
        %v2767 = vunpack.c.0.s8 %v2766
        %v2768 = vlaneseq
        %v2769 = vshrl.u32 %v2768, 7
        %v2770 = vsub.s32 %v2767, %v2769
        %v2771 = vrot.slane %v2757, %v2770
        %v2772 = vcombine.low %v2748, %v2748
        %v2773 = vcombine.high %v2748, %v2748
        %v2775 = vunpack.c.l.s4 1934713408
        %v2776 = vunpack.c.0.s8 %v2775
        %v2777 = vlaneseq
        %v2778 = vshrl.u32 %v2777, 7
        %v2779 = vsub.s32 %v2776, %v2778
        %v2780 = vrot.slane %v2772, %v2779
        %v2782 = vunpack.c.l.s4 1934713408
        %v2783 = vunpack.c.0.s8 %v2782
        %v2784 = vlaneseq
        %v2785 = vshrl.u32 %v2784, 7
        %v2786 = vsub.s32 %v2783, %v2785
        %v2787 = vrot.slane %v2773, %v2786
        %v2788 = vcombine.low %v2755, %v2755
        %v2789 = vcombine.high %v2755, %v2755
        %v2791 = vunpack.c.l.s4 1934713408
        %v2792 = vunpack.c.0.s8 %v2791
        %v2793 = vlaneseq
        %v2794 = vshrl.u32 %v2793, 7
        %v2795 = vsub.s32 %v2792, %v2794
        %v2796 = vrot.slane %v2788, %v2795
        %v2798 = vunpack.c.l.s4 1934713408
        %v2799 = vunpack.c.0.s8 %v2798
        %v2800 = vlaneseq
        %v2801 = vshrl.u32 %v2800, 7
        %v2802 = vsub.s32 %v2799, %v2801
        %v2803 = vrot.slane %v2789, %v2802
        %v2804 = vcombine.low %v2764, %v2764
        %v2805 = vcombine.high %v2764, %v2764
        %v2807 = vunpack.c.l.s4 1934713408
        %v2808 = vunpack.c.0.s8 %v2807
        %v2809 = vlaneseq
        %v2810 = vshrl.u32 %v2809, 7
        %v2811 = vsub.s32 %v2808, %v2810
        %v2812 = vrot.slane %v2804, %v2811
        %v2814 = vunpack.c.l.s4 1934713408
        %v2815 = vunpack.c.0.s8 %v2814
        %v2816 = vlaneseq
        %v2817 = vshrl.u32 %v2816, 7
        %v2818 = vsub.s32 %v2815, %v2817
        %v2819 = vrot.slane %v2805, %v2818
        %v2820 = vcombine.low %v2771, %v2771
        %v2821 = vcombine.high %v2771, %v2771
        %v2823 = vunpack.c.l.s4 1934713408
        %v2824 = vunpack.c.0.s8 %v2823
        %v2825 = vlaneseq
        %v2826 = vshrl.u32 %v2825, 7
        %v2827 = vsub.s32 %v2824, %v2826
        %v2828 = vrot.slane %v2820, %v2827
        %v2830 = vunpack.c.l.s4 1934713408
        %v2831 = vunpack.c.0.s8 %v2830
        %v2832 = vlaneseq
        %v2833 = vshrl.u32 %v2832, 7
        %v2834 = vsub.s32 %v2831, %v2833
        %v2835 = vrot.slane %v2821, %v2834
        %v2836 = vcombine.low %v2780, %v2812
        %v2837 = vcombine.high %v2780, %v2812
        %v2838 = vcombine.low %v2787, %v2819
        %v2839 = vcombine.high %v2787, %v2819
        %v2840 = vcombine.low %v2796, %v2828
        %v2841 = vcombine.high %v2796, %v2828
        %v2842 = vcombine.low %v2803, %v2835
        %v2843 = vcombine.high %v2803, %v2835
        %v2844 = vcombine.low %v654, %v665
        %v2845 = vcombine.high %v654, %v665
        %v2847 = vunpack.c.l.s4 1983009808
        %v2848 = vunpack.c.0.s8 %v2847
        %v2849 = vlaneseq
        %v2850 = vshrl.u32 %v2849, 7
        %v2851 = vsub.s32 %v2848, %v2850
        %v2852 = vrot.slane %v2844, %v2851
        %v2854 = vunpack.c.l.s4 1983009808
        %v2855 = vunpack.c.0.s8 %v2854
        %v2856 = vlaneseq
        %v2857 = vshrl.u32 %v2856, 7
        %v2858 = vsub.s32 %v2855, %v2857
        %v2859 = vrot.slane %v2845, %v2858
        %v2860 = vcombine.low %v676, %v687
        %v2861 = vcombine.high %v676, %v687
        %v2863 = vunpack.c.l.s4 1983009808
        %v2864 = vunpack.c.0.s8 %v2863
        %v2865 = vlaneseq
        %v2866 = vshrl.u32 %v2865, 7
        %v2867 = vsub.s32 %v2864, %v2866
        %v2868 = vrot.slane %v2860, %v2867
        %v2870 = vunpack.c.l.s4 1983009808
        %v2871 = vunpack.c.0.s8 %v2870
        %v2872 = vlaneseq
        %v2873 = vshrl.u32 %v2872, 7
        %v2874 = vsub.s32 %v2871, %v2873
        %v2875 = vrot.slane %v2861, %v2874
        %v2876 = vcombine.low %v2852, %v2852
        %v2877 = vcombine.high %v2852, %v2852
        %v2879 = vunpack.c.l.s4 1934713408
        %v2880 = vunpack.c.0.s8 %v2879
        %v2881 = vlaneseq
        %v2882 = vshrl.u32 %v2881, 7
        %v2883 = vsub.s32 %v2880, %v2882
        %v2884 = vrot.slane %v2876, %v2883
        %v2886 = vunpack.c.l.s4 1934713408
        %v2887 = vunpack.c.0.s8 %v2886
        %v2888 = vlaneseq
        %v2889 = vshrl.u32 %v2888, 7
        %v2890 = vsub.s32 %v2887, %v2889
        %v2891 = vrot.slane %v2877, %v2890
        %v2892 = vcombine.low %v2859, %v2859
        %v2893 = vcombine.high %v2859, %v2859
        %v2895 = vunpack.c.l.s4 1934713408
        %v2896 = vunpack.c.0.s8 %v2895
        %v2897 = vlaneseq
        %v2898 = vshrl.u32 %v2897, 7
        %v2899 = vsub.s32 %v2896, %v2898
        %v2900 = vrot.slane %v2892, %v2899
        %v2902 = vunpack.c.l.s4 1934713408
        %v2903 = vunpack.c.0.s8 %v2902
        %v2904 = vlaneseq
        %v2905 = vshrl.u32 %v2904, 7
        %v2906 = vsub.s32 %v2903, %v2905
        %v2907 = vrot.slane %v2893, %v2906
        %v2908 = vcombine.low %v2868, %v2868
        %v2909 = vcombine.high %v2868, %v2868
        %v2911 = vunpack.c.l.s4 1934713408
        %v2912 = vunpack.c.0.s8 %v2911
        %v2913 = vlaneseq
        %v2914 = vshrl.u32 %v2913, 7
        %v2915 = vsub.s32 %v2912, %v2914
        %v2916 = vrot.slane %v2908, %v2915
        %v2918 = vunpack.c.l.s4 1934713408
        %v2919 = vunpack.c.0.s8 %v2918
        %v2920 = vlaneseq
        %v2921 = vshrl.u32 %v2920, 7
        %v2922 = vsub.s32 %v2919, %v2921
        %v2923 = vrot.slane %v2909, %v2922
        %v2924 = vcombine.low %v2875, %v2875
        %v2925 = vcombine.high %v2875, %v2875
        %v2927 = vunpack.c.l.s4 1934713408
        %v2928 = vunpack.c.0.s8 %v2927
        %v2929 = vlaneseq
        %v2930 = vshrl.u32 %v2929, 7
        %v2931 = vsub.s32 %v2928, %v2930
        %v2932 = vrot.slane %v2924, %v2931
        %v2934 = vunpack.c.l.s4 1934713408
        %v2935 = vunpack.c.0.s8 %v2934
        %v2936 = vlaneseq
        %v2937 = vshrl.u32 %v2936, 7
        %v2938 = vsub.s32 %v2935, %v2937
        %v2939 = vrot.slane %v2925, %v2938
        %v2940 = vcombine.low %v2884, %v2916
        %v2941 = vcombine.high %v2884, %v2916
        %v2942 = vcombine.low %v2891, %v2923
        %v2943 = vcombine.high %v2891, %v2923
        %v2944 = vcombine.low %v2900, %v2932
        %v2945 = vcombine.high %v2900, %v2932
        %v2946 = vcombine.low %v2907, %v2939
        %v2947 = vcombine.high %v2907, %v2939
        %v2948 = vcombine.low %v526, %v537
        %v2949 = vcombine.high %v526, %v537
        %v2951 = vunpack.c.l.s4 1983009808
        %v2952 = vunpack.c.0.s8 %v2951
        %v2953 = vlaneseq
        %v2954 = vshrl.u32 %v2953, 7
        %v2955 = vsub.s32 %v2952, %v2954
        %v2956 = vrot.slane %v2948, %v2955
        %v2958 = vunpack.c.l.s4 1983009808
        %v2959 = vunpack.c.0.s8 %v2958
        %v2960 = vlaneseq
        %v2961 = vshrl.u32 %v2960, 7
        %v2962 = vsub.s32 %v2959, %v2961
        %v2963 = vrot.slane %v2949, %v2962
        %v2964 = vcombine.low %v548, %v559
        %v2965 = vcombine.high %v548, %v559
        %v2967 = vunpack.c.l.s4 1983009808
        %v2968 = vunpack.c.0.s8 %v2967
        %v2969 = vlaneseq
        %v2970 = vshrl.u32 %v2969, 7
        %v2971 = vsub.s32 %v2968, %v2970
        %v2972 = vrot.slane %v2964, %v2971
        %v2974 = vunpack.c.l.s4 1983009808
        %v2975 = vunpack.c.0.s8 %v2974
        %v2976 = vlaneseq
        %v2977 = vshrl.u32 %v2976, 7
        %v2978 = vsub.s32 %v2975, %v2977
        %v2979 = vrot.slane %v2965, %v2978
        %v2980 = vcombine.low %v2956, %v2956
        %v2981 = vcombine.high %v2956, %v2956
        %v2983 = vunpack.c.l.s4 1934713408
        %v2984 = vunpack.c.0.s8 %v2983
        %v2985 = vlaneseq
        %v2986 = vshrl.u32 %v2985, 7
        %v2987 = vsub.s32 %v2984, %v2986
        %v2988 = vrot.slane %v2980, %v2987
        %v2990 = vunpack.c.l.s4 1934713408
        %v2991 = vunpack.c.0.s8 %v2990
        %v2992 = vlaneseq
        %v2993 = vshrl.u32 %v2992, 7
        %v2994 = vsub.s32 %v2991, %v2993
        %v2995 = vrot.slane %v2981, %v2994
        %v2996 = vcombine.low %v2963, %v2963
        %v2997 = vcombine.high %v2963, %v2963
        %v2999 = vunpack.c.l.s4 1934713408
        %v3000 = vunpack.c.0.s8 %v2999
        %v3001 = vlaneseq
        %v3002 = vshrl.u32 %v3001, 7
        %v3003 = vsub.s32 %v3000, %v3002
        %v3004 = vrot.slane %v2996, %v3003
        %v3006 = vunpack.c.l.s4 1934713408
        %v3007 = vunpack.c.0.s8 %v3006
        %v3008 = vlaneseq
        %v3009 = vshrl.u32 %v3008, 7
        %v3010 = vsub.s32 %v3007, %v3009
        %v3011 = vrot.slane %v2997, %v3010
        %v3012 = vcombine.low %v2972, %v2972
        %v3013 = vcombine.high %v2972, %v2972
        %v3015 = vunpack.c.l.s4 1934713408
        %v3016 = vunpack.c.0.s8 %v3015
        %v3017 = vlaneseq
        %v3018 = vshrl.u32 %v3017, 7
        %v3019 = vsub.s32 %v3016, %v3018
        %v3020 = vrot.slane %v3012, %v3019
        %v3022 = vunpack.c.l.s4 1934713408
        %v3023 = vunpack.c.0.s8 %v3022
        %v3024 = vlaneseq
        %v3025 = vshrl.u32 %v3024, 7
        %v3026 = vsub.s32 %v3023, %v3025
        %v3027 = vrot.slane %v3013, %v3026
        %v3028 = vcombine.low %v2979, %v2979
        %v3029 = vcombine.high %v2979, %v2979
        %v3031 = vunpack.c.l.s4 1934713408
        %v3032 = vunpack.c.0.s8 %v3031
        %v3033 = vlaneseq
        %v3034 = vshrl.u32 %v3033, 7
        %v3035 = vsub.s32 %v3032, %v3034
        %v3036 = vrot.slane %v3028, %v3035
        %v3038 = vunpack.c.l.s4 1934713408
        %v3039 = vunpack.c.0.s8 %v3038
        %v3040 = vlaneseq
        %v3041 = vshrl.u32 %v3040, 7
        %v3042 = vsub.s32 %v3039, %v3041
        %v3043 = vrot.slane %v3029, %v3042
        %v3044 = vcombine.low %v2988, %v3020
        %v3045 = vcombine.high %v2988, %v3020
        %v3046 = vcombine.low %v2995, %v3027
        %v3047 = vcombine.high %v2995, %v3027
        %v3048 = vcombine.low %v3004, %v3036
        %v3049 = vcombine.high %v3004, %v3036
        %v3050 = vcombine.low %v3011, %v3043
        %v3051 = vcombine.high %v3011, %v3043
        %v3052 = vcombine.low %v570, %v581
        %v3053 = vcombine.high %v570, %v581
        %v3055 = vunpack.c.l.s4 1983009808
        %v3056 = vunpack.c.0.s8 %v3055
        %v3057 = vlaneseq
        %v3058 = vshrl.u32 %v3057, 7
        %v3059 = vsub.s32 %v3056, %v3058
        %v3060 = vrot.slane %v3052, %v3059
        %v3062 = vunpack.c.l.s4 1983009808
        %v3063 = vunpack.c.0.s8 %v3062
        %v3064 = vlaneseq
        %v3065 = vshrl.u32 %v3064, 7
        %v3066 = vsub.s32 %v3063, %v3065
        %v3067 = vrot.slane %v3053, %v3066
        %v3068 = vcombine.low %v592, %v603
        %v3069 = vcombine.high %v592, %v603
        %v3071 = vunpack.c.l.s4 1983009808
        %v3072 = vunpack.c.0.s8 %v3071
        %v3073 = vlaneseq
        %v3074 = vshrl.u32 %v3073, 7
        %v3075 = vsub.s32 %v3072, %v3074
        %v3076 = vrot.slane %v3068, %v3075
        %v3078 = vunpack.c.l.s4 1983009808
        %v3079 = vunpack.c.0.s8 %v3078
        %v3080 = vlaneseq
        %v3081 = vshrl.u32 %v3080, 7
        %v3082 = vsub.s32 %v3079, %v3081
        %v3083 = vrot.slane %v3069, %v3082
        %v3084 = vcombine.low %v3060, %v3060
        %v3085 = vcombine.high %v3060, %v3060
        %v3087 = vunpack.c.l.s4 1934713408
        %v3088 = vunpack.c.0.s8 %v3087
        %v3089 = vlaneseq
        %v3090 = vshrl.u32 %v3089, 7
        %v3091 = vsub.s32 %v3088, %v3090
        %v3092 = vrot.slane %v3084, %v3091
        %v3094 = vunpack.c.l.s4 1934713408
        %v3095 = vunpack.c.0.s8 %v3094
        %v3096 = vlaneseq
        %v3097 = vshrl.u32 %v3096, 7
        %v3098 = vsub.s32 %v3095, %v3097
        %v3099 = vrot.slane %v3085, %v3098
        %v3100 = vcombine.low %v3067, %v3067
        %v3101 = vcombine.high %v3067, %v3067
        %v3103 = vunpack.c.l.s4 1934713408
        %v3104 = vunpack.c.0.s8 %v3103
        %v3105 = vlaneseq
        %v3106 = vshrl.u32 %v3105, 7
        %v3107 = vsub.s32 %v3104, %v3106
        %v3108 = vrot.slane %v3100, %v3107
        %v3110 = vunpack.c.l.s4 1934713408
        %v3111 = vunpack.c.0.s8 %v3110
        %v3112 = vlaneseq
        %v3113 = vshrl.u32 %v3112, 7
        %v3114 = vsub.s32 %v3111, %v3113
        %v3115 = vrot.slane %v3101, %v3114
        %v3116 = vcombine.low %v3076, %v3076
        %v3117 = vcombine.high %v3076, %v3076
        %v3119 = vunpack.c.l.s4 1934713408
        %v3120 = vunpack.c.0.s8 %v3119
        %v3121 = vlaneseq
        %v3122 = vshrl.u32 %v3121, 7
        %v3123 = vsub.s32 %v3120, %v3122
        %v3124 = vrot.slane %v3116, %v3123
        %v3126 = vunpack.c.l.s4 1934713408
        %v3127 = vunpack.c.0.s8 %v3126
        %v3128 = vlaneseq
        %v3129 = vshrl.u32 %v3128, 7
        %v3130 = vsub.s32 %v3127, %v3129
        %v3131 = vrot.slane %v3117, %v3130
        %v3132 = vcombine.low %v3083, %v3083
        %v3133 = vcombine.high %v3083, %v3083
        %v3135 = vunpack.c.l.s4 1934713408
        %v3136 = vunpack.c.0.s8 %v3135
        %v3137 = vlaneseq
        %v3138 = vshrl.u32 %v3137, 7
        %v3139 = vsub.s32 %v3136, %v3138
        %v3140 = vrot.slane %v3132, %v3139
        %v3142 = vunpack.c.l.s4 1934713408
        %v3143 = vunpack.c.0.s8 %v3142
        %v3144 = vlaneseq
        %v3145 = vshrl.u32 %v3144, 7
        %v3146 = vsub.s32 %v3143, %v3145
        %v3147 = vrot.slane %v3133, %v3146
        %v3148 = vcombine.low %v3092, %v3124
        %v3149 = vcombine.high %v3092, %v3124
        %v3150 = vcombine.low %v3099, %v3131
        %v3151 = vcombine.high %v3099, %v3131
        %v3152 = vcombine.low %v3108, %v3140
        %v3153 = vcombine.high %v3108, %v3140
        %v3154 = vcombine.low %v3115, %v3147
        %v3155 = vcombine.high %v3115, %v3147
        %v3156 = vcombine.low %v614, %v625
        %v3157 = vcombine.high %v614, %v625
        %v3159 = vunpack.c.l.s4 1983009808
        %v3160 = vunpack.c.0.s8 %v3159
        %v3161 = vlaneseq
        %v3162 = vshrl.u32 %v3161, 7
        %v3163 = vsub.s32 %v3160, %v3162
        %v3164 = vrot.slane %v3156, %v3163
        %v3166 = vunpack.c.l.s4 1983009808
        %v3167 = vunpack.c.0.s8 %v3166
        %v3168 = vlaneseq
        %v3169 = vshrl.u32 %v3168, 7
        %v3170 = vsub.s32 %v3167, %v3169
        %v3171 = vrot.slane %v3157, %v3170
        %v3172 = vcombine.low %v636, %v647
        %v3173 = vcombine.high %v636, %v647
        %v3175 = vunpack.c.l.s4 1983009808
        %v3176 = vunpack.c.0.s8 %v3175
        %v3177 = vlaneseq
        %v3178 = vshrl.u32 %v3177, 7
        %v3179 = vsub.s32 %v3176, %v3178
        %v3180 = vrot.slane %v3172, %v3179
        %v3182 = vunpack.c.l.s4 1983009808
        %v3183 = vunpack.c.0.s8 %v3182
        %v3184 = vlaneseq
        %v3185 = vshrl.u32 %v3184, 7
        %v3186 = vsub.s32 %v3183, %v3185
        %v3187 = vrot.slane %v3173, %v3186
        %v3188 = vcombine.low %v3164, %v3164
        %v3189 = vcombine.high %v3164, %v3164
        %v3191 = vunpack.c.l.s4 1934713408
        %v3192 = vunpack.c.0.s8 %v3191
        %v3193 = vlaneseq
        %v3194 = vshrl.u32 %v3193, 7
        %v3195 = vsub.s32 %v3192, %v3194
        %v3196 = vrot.slane %v3188, %v3195
        %v3198 = vunpack.c.l.s4 1934713408
        %v3199 = vunpack.c.0.s8 %v3198
        %v3200 = vlaneseq
        %v3201 = vshrl.u32 %v3200, 7
        %v3202 = vsub.s32 %v3199, %v3201
        %v3203 = vrot.slane %v3189, %v3202
        %v3204 = vcombine.low %v3171, %v3171
        %v3205 = vcombine.high %v3171, %v3171
        %v3207 = vunpack.c.l.s4 1934713408
        %v3208 = vunpack.c.0.s8 %v3207
        %v3209 = vlaneseq
        %v3210 = vshrl.u32 %v3209, 7
        %v3211 = vsub.s32 %v3208, %v3210
        %v3212 = vrot.slane %v3204, %v3211
        %v3214 = vunpack.c.l.s4 1934713408
        %v3215 = vunpack.c.0.s8 %v3214
        %v3216 = vlaneseq
        %v3217 = vshrl.u32 %v3216, 7
        %v3218 = vsub.s32 %v3215, %v3217
        %v3219 = vrot.slane %v3205, %v3218
        %v3220 = vcombine.low %v3180, %v3180
        %v3221 = vcombine.high %v3180, %v3180
        %v3223 = vunpack.c.l.s4 1934713408
        %v3224 = vunpack.c.0.s8 %v3223
        %v3225 = vlaneseq
        %v3226 = vshrl.u32 %v3225, 7
        %v3227 = vsub.s32 %v3224, %v3226
        %v3228 = vrot.slane %v3220, %v3227
        %v3230 = vunpack.c.l.s4 1934713408
        %v3231 = vunpack.c.0.s8 %v3230
        %v3232 = vlaneseq
        %v3233 = vshrl.u32 %v3232, 7
        %v3234 = vsub.s32 %v3231, %v3233
        %v3235 = vrot.slane %v3221, %v3234
        %v3236 = vcombine.low %v3187, %v3187
        %v3237 = vcombine.high %v3187, %v3187
        %v3239 = vunpack.c.l.s4 1934713408
        %v3240 = vunpack.c.0.s8 %v3239
        %v3241 = vlaneseq
        %v3242 = vshrl.u32 %v3241, 7
        %v3243 = vsub.s32 %v3240, %v3242
        %v3244 = vrot.slane %v3236, %v3243
        %v3246 = vunpack.c.l.s4 1934713408
        %v3247 = vunpack.c.0.s8 %v3246
        %v3248 = vlaneseq
        %v3249 = vshrl.u32 %v3248, 7
        %v3250 = vsub.s32 %v3247, %v3249
        %v3251 = vrot.slane %v3237, %v3250
        %v3252 = vcombine.low %v3196, %v3228
        %v3253 = vcombine.high %v3196, %v3228
        %v3254 = vcombine.low %v3203, %v3235
        %v3255 = vcombine.high %v3203, %v3235
        %v3256 = vcombine.low %v3212, %v3244
        %v3257 = vcombine.high %v3212, %v3244
        %v3258 = vcombine.low %v3219, %v3251
        %v3259 = vcombine.high %v3219, %v3251
        %v3260 = vcombine.low %v658, %v669
        %v3261 = vcombine.high %v658, %v669
        %v3263 = vunpack.c.l.s4 1983009808
        %v3264 = vunpack.c.0.s8 %v3263
        %v3265 = vlaneseq
        %v3266 = vshrl.u32 %v3265, 7
        %v3267 = vsub.s32 %v3264, %v3266
        %v3268 = vrot.slane %v3260, %v3267
        %v3270 = vunpack.c.l.s4 1983009808
        %v3271 = vunpack.c.0.s8 %v3270
        %v3272 = vlaneseq
        %v3273 = vshrl.u32 %v3272, 7
        %v3274 = vsub.s32 %v3271, %v3273
        %v3275 = vrot.slane %v3261, %v3274
        %v3276 = vcombine.low %v680, %v691
        %v3277 = vcombine.high %v680, %v691
        %v3279 = vunpack.c.l.s4 1983009808
        %v3280 = vunpack.c.0.s8 %v3279
        %v3281 = vlaneseq
        %v3282 = vshrl.u32 %v3281, 7
        %v3283 = vsub.s32 %v3280, %v3282
        %v3284 = vrot.slane %v3276, %v3283
        %v3286 = vunpack.c.l.s4 1983009808
        %v3287 = vunpack.c.0.s8 %v3286
        %v3288 = vlaneseq
        %v3289 = vshrl.u32 %v3288, 7
        %v3290 = vsub.s32 %v3287, %v3289
        %v3291 = vrot.slane %v3277, %v3290
        %v3292 = vcombine.low %v3268, %v3268
        %v3293 = vcombine.high %v3268, %v3268
        %v3295 = vunpack.c.l.s4 1934713408
        %v3296 = vunpack.c.0.s8 %v3295
        %v3297 = vlaneseq
        %v3298 = vshrl.u32 %v3297, 7
        %v3299 = vsub.s32 %v3296, %v3298
        %v3300 = vrot.slane %v3292, %v3299
        %v3302 = vunpack.c.l.s4 1934713408
        %v3303 = vunpack.c.0.s8 %v3302
        %v3304 = vlaneseq
        %v3305 = vshrl.u32 %v3304, 7
        %v3306 = vsub.s32 %v3303, %v3305
        %v3307 = vrot.slane %v3293, %v3306
        %v3308 = vcombine.low %v3275, %v3275
        %v3309 = vcombine.high %v3275, %v3275
        %v3311 = vunpack.c.l.s4 1934713408
        %v3312 = vunpack.c.0.s8 %v3311
        %v3313 = vlaneseq
        %v3314 = vshrl.u32 %v3313, 7
        %v3315 = vsub.s32 %v3312, %v3314
        %v3316 = vrot.slane %v3308, %v3315
        %v3318 = vunpack.c.l.s4 1934713408
        %v3319 = vunpack.c.0.s8 %v3318
        %v3320 = vlaneseq
        %v3321 = vshrl.u32 %v3320, 7
        %v3322 = vsub.s32 %v3319, %v3321
        %v3323 = vrot.slane %v3309, %v3322
        %v3324 = vcombine.low %v3284, %v3284
        %v3325 = vcombine.high %v3284, %v3284
        %v3327 = vunpack.c.l.s4 1934713408
        %v3328 = vunpack.c.0.s8 %v3327
        %v3329 = vlaneseq
        %v3330 = vshrl.u32 %v3329, 7
        %v3331 = vsub.s32 %v3328, %v3330
        %v3332 = vrot.slane %v3324, %v3331
        %v3334 = vunpack.c.l.s4 1934713408
        %v3335 = vunpack.c.0.s8 %v3334
        %v3336 = vlaneseq
        %v3337 = vshrl.u32 %v3336, 7
        %v3338 = vsub.s32 %v3335, %v3337
        %v3339 = vrot.slane %v3325, %v3338
        %v3340 = vcombine.low %v3291, %v3291
        %v3341 = vcombine.high %v3291, %v3291
        %v3343 = vunpack.c.l.s4 1934713408
        %v3344 = vunpack.c.0.s8 %v3343
        %v3345 = vlaneseq
        %v3346 = vshrl.u32 %v3345, 7
        %v3347 = vsub.s32 %v3344, %v3346
        %v3348 = vrot.slane %v3340, %v3347
        %v3350 = vunpack.c.l.s4 1934713408
        %v3351 = vunpack.c.0.s8 %v3350
        %v3352 = vlaneseq
        %v3353 = vshrl.u32 %v3352, 7
        %v3354 = vsub.s32 %v3351, %v3353
        %v3355 = vrot.slane %v3341, %v3354
        %v3356 = vcombine.low %v3300, %v3332
        %v3357 = vcombine.high %v3300, %v3332
        %v3358 = vcombine.low %v3307, %v3339
        %v3359 = vcombine.high %v3307, %v3339
        %v3360 = vcombine.low %v3316, %v3348
        %v3361 = vcombine.high %v3316, %v3348
        %v3362 = vcombine.low %v3323, %v3355
        %v3363 = vcombine.high %v3323, %v3355
        %v3364 = vcombine.low %v698, %v709
        %v3365 = vcombine.high %v698, %v709
        %v3367 = vunpack.c.l.s4 1983009808
        %v3368 = vunpack.c.0.s8 %v3367
        %v3369 = vlaneseq
        %v3370 = vshrl.u32 %v3369, 7
        %v3371 = vsub.s32 %v3368, %v3370
        %v3372 = vrot.slane %v3364, %v3371
        %v3374 = vunpack.c.l.s4 1983009808
        %v3375 = vunpack.c.0.s8 %v3374
        %v3376 = vlaneseq
        %v3377 = vshrl.u32 %v3376, 7
        %v3378 = vsub.s32 %v3375, %v3377
        %v3379 = vrot.slane %v3365, %v3378
        %v3380 = vcombine.low %v720, %v731
        %v3381 = vcombine.high %v720, %v731
        %v3383 = vunpack.c.l.s4 1983009808
        %v3384 = vunpack.c.0.s8 %v3383
        %v3385 = vlaneseq
        %v3386 = vshrl.u32 %v3385, 7
        %v3387 = vsub.s32 %v3384, %v3386
        %v3388 = vrot.slane %v3380, %v3387
        %v3390 = vunpack.c.l.s4 1983009808
        %v3391 = vunpack.c.0.s8 %v3390
        %v3392 = vlaneseq
        %v3393 = vshrl.u32 %v3392, 7
        %v3394 = vsub.s32 %v3391, %v3393
        %v3395 = vrot.slane %v3381, %v3394
        %v3396 = vcombine.low %v3372, %v3372
        %v3397 = vcombine.high %v3372, %v3372
        %v3399 = vunpack.c.l.s4 1934713408
        %v3400 = vunpack.c.0.s8 %v3399
        %v3401 = vlaneseq
        %v3402 = vshrl.u32 %v3401, 7
        %v3403 = vsub.s32 %v3400, %v3402
        %v3404 = vrot.slane %v3396, %v3403
        %v3406 = vunpack.c.l.s4 1934713408
        %v3407 = vunpack.c.0.s8 %v3406
        %v3408 = vlaneseq
        %v3409 = vshrl.u32 %v3408, 7
        %v3410 = vsub.s32 %v3407, %v3409
        %v3411 = vrot.slane %v3397, %v3410
        %v3412 = vcombine.low %v3379, %v3379
        %v3413 = vcombine.high %v3379, %v3379
        %v3415 = vunpack.c.l.s4 1934713408
        %v3416 = vunpack.c.0.s8 %v3415
        %v3417 = vlaneseq
        %v3418 = vshrl.u32 %v3417, 7
        %v3419 = vsub.s32 %v3416, %v3418
        %v3420 = vrot.slane %v3412, %v3419
        %v3422 = vunpack.c.l.s4 1934713408
        %v3423 = vunpack.c.0.s8 %v3422
        %v3424 = vlaneseq
        %v3425 = vshrl.u32 %v3424, 7
        %v3426 = vsub.s32 %v3423, %v3425
        %v3427 = vrot.slane %v3413, %v3426
        %v3428 = vcombine.low %v3388, %v3388
        %v3429 = vcombine.high %v3388, %v3388
        %v3431 = vunpack.c.l.s4 1934713408
        %v3432 = vunpack.c.0.s8 %v3431
        %v3433 = vlaneseq
        %v3434 = vshrl.u32 %v3433, 7
        %v3435 = vsub.s32 %v3432, %v3434
        %v3436 = vrot.slane %v3428, %v3435
        %v3438 = vunpack.c.l.s4 1934713408
        %v3439 = vunpack.c.0.s8 %v3438
        %v3440 = vlaneseq
        %v3441 = vshrl.u32 %v3440, 7
        %v3442 = vsub.s32 %v3439, %v3441
        %v3443 = vrot.slane %v3429, %v3442
        %v3444 = vcombine.low %v3395, %v3395
        %v3445 = vcombine.high %v3395, %v3395
        %v3447 = vunpack.c.l.s4 1934713408
        %v3448 = vunpack.c.0.s8 %v3447
        %v3449 = vlaneseq
        %v3450 = vshrl.u32 %v3449, 7
        %v3451 = vsub.s32 %v3448, %v3450
        %v3452 = vrot.slane %v3444, %v3451
        %v3454 = vunpack.c.l.s4 1934713408
        %v3455 = vunpack.c.0.s8 %v3454
        %v3456 = vlaneseq
        %v3457 = vshrl.u32 %v3456, 7
        %v3458 = vsub.s32 %v3455, %v3457
        %v3459 = vrot.slane %v3445, %v3458
        %v3460 = vcombine.low %v3404, %v3436
        %v3461 = vcombine.high %v3404, %v3436
        %v3462 = vcombine.low %v3411, %v3443
        %v3463 = vcombine.high %v3411, %v3443
        %v3464 = vcombine.low %v3420, %v3452
        %v3465 = vcombine.high %v3420, %v3452
        %v3466 = vcombine.low %v3427, %v3459
        %v3467 = vcombine.high %v3427, %v3459
        %v3468 = vcombine.low %v742, %v753
        %v3469 = vcombine.high %v742, %v753
        %v3471 = vunpack.c.l.s4 1983009808
        %v3472 = vunpack.c.0.s8 %v3471
        %v3473 = vlaneseq
        %v3474 = vshrl.u32 %v3473, 7
        %v3475 = vsub.s32 %v3472, %v3474
        %v3476 = vrot.slane %v3468, %v3475
        %v3478 = vunpack.c.l.s4 1983009808
        %v3479 = vunpack.c.0.s8 %v3478
        %v3480 = vlaneseq
        %v3481 = vshrl.u32 %v3480, 7
        %v3482 = vsub.s32 %v3479, %v3481
        %v3483 = vrot.slane %v3469, %v3482
        %v3484 = vcombine.low %v764, %v775
        %v3485 = vcombine.high %v764, %v775
        %v3487 = vunpack.c.l.s4 1983009808
        %v3488 = vunpack.c.0.s8 %v3487
        %v3489 = vlaneseq
        %v3490 = vshrl.u32 %v3489, 7
        %v3491 = vsub.s32 %v3488, %v3490
        %v3492 = vrot.slane %v3484, %v3491
        %v3494 = vunpack.c.l.s4 1983009808
        %v3495 = vunpack.c.0.s8 %v3494
        %v3496 = vlaneseq
        %v3497 = vshrl.u32 %v3496, 7
        %v3498 = vsub.s32 %v3495, %v3497
        %v3499 = vrot.slane %v3485, %v3498
        %v3500 = vcombine.low %v3476, %v3476
        %v3501 = vcombine.high %v3476, %v3476
        %v3503 = vunpack.c.l.s4 1934713408
        %v3504 = vunpack.c.0.s8 %v3503
        %v3505 = vlaneseq
        %v3506 = vshrl.u32 %v3505, 7
        %v3507 = vsub.s32 %v3504, %v3506
        %v3508 = vrot.slane %v3500, %v3507
        %v3510 = vunpack.c.l.s4 1934713408
        %v3511 = vunpack.c.0.s8 %v3510
        %v3512 = vlaneseq
        %v3513 = vshrl.u32 %v3512, 7
        %v3514 = vsub.s32 %v3511, %v3513
        %v3515 = vrot.slane %v3501, %v3514
        %v3516 = vcombine.low %v3483, %v3483
        %v3517 = vcombine.high %v3483, %v3483
        %v3519 = vunpack.c.l.s4 1934713408
        %v3520 = vunpack.c.0.s8 %v3519
        %v3521 = vlaneseq
        %v3522 = vshrl.u32 %v3521, 7
        %v3523 = vsub.s32 %v3520, %v3522
        %v3524 = vrot.slane %v3516, %v3523
        %v3526 = vunpack.c.l.s4 1934713408
        %v3527 = vunpack.c.0.s8 %v3526
        %v3528 = vlaneseq
        %v3529 = vshrl.u32 %v3528, 7
        %v3530 = vsub.s32 %v3527, %v3529
        %v3531 = vrot.slane %v3517, %v3530
        %v3532 = vcombine.low %v3492, %v3492
        %v3533 = vcombine.high %v3492, %v3492
        %v3535 = vunpack.c.l.s4 1934713408
        %v3536 = vunpack.c.0.s8 %v3535
        %v3537 = vlaneseq
        %v3538 = vshrl.u32 %v3537, 7
        %v3539 = vsub.s32 %v3536, %v3538
        %v3540 = vrot.slane %v3532, %v3539
        %v3542 = vunpack.c.l.s4 1934713408
        %v3543 = vunpack.c.0.s8 %v3542
        %v3544 = vlaneseq
        %v3545 = vshrl.u32 %v3544, 7
        %v3546 = vsub.s32 %v3543, %v3545
        %v3547 = vrot.slane %v3533, %v3546
        %v3548 = vcombine.low %v3499, %v3499
        %v3549 = vcombine.high %v3499, %v3499
        %v3551 = vunpack.c.l.s4 1934713408
        %v3552 = vunpack.c.0.s8 %v3551
        %v3553 = vlaneseq
        %v3554 = vshrl.u32 %v3553, 7
        %v3555 = vsub.s32 %v3552, %v3554
        %v3556 = vrot.slane %v3548, %v3555
        %v3558 = vunpack.c.l.s4 1934713408
        %v3559 = vunpack.c.0.s8 %v3558
        %v3560 = vlaneseq
        %v3561 = vshrl.u32 %v3560, 7
        %v3562 = vsub.s32 %v3559, %v3561
        %v3563 = vrot.slane %v3549, %v3562
        %v3564 = vcombine.low %v3508, %v3540
        %v3565 = vcombine.high %v3508, %v3540
        %v3566 = vcombine.low %v3515, %v3547
        %v3567 = vcombine.high %v3515, %v3547
        %v3568 = vcombine.low %v3524, %v3556
        %v3569 = vcombine.high %v3524, %v3556
        %v3570 = vcombine.low %v3531, %v3563
        %v3571 = vcombine.high %v3531, %v3563
        %v3572 = vcombine.low %v786, %v797
        %v3573 = vcombine.high %v786, %v797
        %v3575 = vunpack.c.l.s4 1983009808
        %v3576 = vunpack.c.0.s8 %v3575
        %v3577 = vlaneseq
        %v3578 = vshrl.u32 %v3577, 7
        %v3579 = vsub.s32 %v3576, %v3578
        %v3580 = vrot.slane %v3572, %v3579
        %v3582 = vunpack.c.l.s4 1983009808
        %v3583 = vunpack.c.0.s8 %v3582
        %v3584 = vlaneseq
        %v3585 = vshrl.u32 %v3584, 7
        %v3586 = vsub.s32 %v3583, %v3585
        %v3587 = vrot.slane %v3573, %v3586
        %v3588 = vcombine.low %v808, %v819
        %v3589 = vcombine.high %v808, %v819
        %v3591 = vunpack.c.l.s4 1983009808
        %v3592 = vunpack.c.0.s8 %v3591
        %v3593 = vlaneseq
        %v3594 = vshrl.u32 %v3593, 7
        %v3595 = vsub.s32 %v3592, %v3594
        %v3596 = vrot.slane %v3588, %v3595
        %v3598 = vunpack.c.l.s4 1983009808
        %v3599 = vunpack.c.0.s8 %v3598
        %v3600 = vlaneseq
        %v3601 = vshrl.u32 %v3600, 7
        %v3602 = vsub.s32 %v3599, %v3601
        %v3603 = vrot.slane %v3589, %v3602
        %v3604 = vcombine.low %v3580, %v3580
        %v3605 = vcombine.high %v3580, %v3580
        %v3607 = vunpack.c.l.s4 1934713408
        %v3608 = vunpack.c.0.s8 %v3607
        %v3609 = vlaneseq
        %v3610 = vshrl.u32 %v3609, 7
        %v3611 = vsub.s32 %v3608, %v3610
        %v3612 = vrot.slane %v3604, %v3611
        %v3614 = vunpack.c.l.s4 1934713408
        %v3615 = vunpack.c.0.s8 %v3614
        %v3616 = vlaneseq
        %v3617 = vshrl.u32 %v3616, 7
        %v3618 = vsub.s32 %v3615, %v3617
        %v3619 = vrot.slane %v3605, %v3618
        %v3620 = vcombine.low %v3587, %v3587
        %v3621 = vcombine.high %v3587, %v3587
        %v3623 = vunpack.c.l.s4 1934713408
        %v3624 = vunpack.c.0.s8 %v3623
        %v3625 = vlaneseq
        %v3626 = vshrl.u32 %v3625, 7
        %v3627 = vsub.s32 %v3624, %v3626
        %v3628 = vrot.slane %v3620, %v3627
        %v3630 = vunpack.c.l.s4 1934713408
        %v3631 = vunpack.c.0.s8 %v3630
        %v3632 = vlaneseq
        %v3633 = vshrl.u32 %v3632, 7
        %v3634 = vsub.s32 %v3631, %v3633
        %v3635 = vrot.slane %v3621, %v3634
        %v3636 = vcombine.low %v3596, %v3596
        %v3637 = vcombine.high %v3596, %v3596
        %v3639 = vunpack.c.l.s4 1934713408
        %v3640 = vunpack.c.0.s8 %v3639
        %v3641 = vlaneseq
        %v3642 = vshrl.u32 %v3641, 7
        %v3643 = vsub.s32 %v3640, %v3642
        %v3644 = vrot.slane %v3636, %v3643
        %v3646 = vunpack.c.l.s4 1934713408
        %v3647 = vunpack.c.0.s8 %v3646
        %v3648 = vlaneseq
        %v3649 = vshrl.u32 %v3648, 7
        %v3650 = vsub.s32 %v3647, %v3649
        %v3651 = vrot.slane %v3637, %v3650
        %v3652 = vcombine.low %v3603, %v3603
        %v3653 = vcombine.high %v3603, %v3603
        %v3655 = vunpack.c.l.s4 1934713408
        %v3656 = vunpack.c.0.s8 %v3655
        %v3657 = vlaneseq
        %v3658 = vshrl.u32 %v3657, 7
        %v3659 = vsub.s32 %v3656, %v3658
        %v3660 = vrot.slane %v3652, %v3659
        %v3662 = vunpack.c.l.s4 1934713408
        %v3663 = vunpack.c.0.s8 %v3662
        %v3664 = vlaneseq
        %v3665 = vshrl.u32 %v3664, 7
        %v3666 = vsub.s32 %v3663, %v3665
        %v3667 = vrot.slane %v3653, %v3666
        %v3668 = vcombine.low %v3612, %v3644
        %v3669 = vcombine.high %v3612, %v3644
        %v3670 = vcombine.low %v3619, %v3651
        %v3671 = vcombine.high %v3619, %v3651
        %v3672 = vcombine.low %v3628, %v3660
        %v3673 = vcombine.high %v3628, %v3660
        %v3674 = vcombine.low %v3635, %v3667
        %v3675 = vcombine.high %v3635, %v3667
        %v3676 = vcombine.low %v830, %v841
        %v3677 = vcombine.high %v830, %v841
        %v3679 = vunpack.c.l.s4 1983009808
        %v3680 = vunpack.c.0.s8 %v3679
        %v3681 = vlaneseq
        %v3682 = vshrl.u32 %v3681, 7
        %v3683 = vsub.s32 %v3680, %v3682
        %v3684 = vrot.slane %v3676, %v3683
        %v3686 = vunpack.c.l.s4 1983009808
        %v3687 = vunpack.c.0.s8 %v3686
        %v3688 = vlaneseq
        %v3689 = vshrl.u32 %v3688, 7
        %v3690 = vsub.s32 %v3687, %v3689
        %v3691 = vrot.slane %v3677, %v3690
        %v3692 = vcombine.low %v852, %v863
        %v3693 = vcombine.high %v852, %v863
        %v3695 = vunpack.c.l.s4 1983009808
        %v3696 = vunpack.c.0.s8 %v3695
        %v3697 = vlaneseq
        %v3698 = vshrl.u32 %v3697, 7
        %v3699 = vsub.s32 %v3696, %v3698
        %v3700 = vrot.slane %v3692, %v3699
        %v3702 = vunpack.c.l.s4 1983009808
        %v3703 = vunpack.c.0.s8 %v3702
        %v3704 = vlaneseq
        %v3705 = vshrl.u32 %v3704, 7
        %v3706 = vsub.s32 %v3703, %v3705
        %v3707 = vrot.slane %v3693, %v3706
        %v3708 = vcombine.low %v3684, %v3684
        %v3709 = vcombine.high %v3684, %v3684
        %v3711 = vunpack.c.l.s4 1934713408
        %v3712 = vunpack.c.0.s8 %v3711
        %v3713 = vlaneseq
        %v3714 = vshrl.u32 %v3713, 7
        %v3715 = vsub.s32 %v3712, %v3714
        %v3716 = vrot.slane %v3708, %v3715
        %v3718 = vunpack.c.l.s4 1934713408
        %v3719 = vunpack.c.0.s8 %v3718
        %v3720 = vlaneseq
        %v3721 = vshrl.u32 %v3720, 7
        %v3722 = vsub.s32 %v3719, %v3721
        %v3723 = vrot.slane %v3709, %v3722
        %v3724 = vcombine.low %v3691, %v3691
        %v3725 = vcombine.high %v3691, %v3691
        %v3727 = vunpack.c.l.s4 1934713408
        %v3728 = vunpack.c.0.s8 %v3727
        %v3729 = vlaneseq
        %v3730 = vshrl.u32 %v3729, 7
        %v3731 = vsub.s32 %v3728, %v3730
        %v3732 = vrot.slane %v3724, %v3731
        %v3734 = vunpack.c.l.s4 1934713408
        %v3735 = vunpack.c.0.s8 %v3734
        %v3736 = vlaneseq
        %v3737 = vshrl.u32 %v3736, 7
        %v3738 = vsub.s32 %v3735, %v3737
        %v3739 = vrot.slane %v3725, %v3738
        %v3740 = vcombine.low %v3700, %v3700
        %v3741 = vcombine.high %v3700, %v3700
        %v3743 = vunpack.c.l.s4 1934713408
        %v3744 = vunpack.c.0.s8 %v3743
        %v3745 = vlaneseq
        %v3746 = vshrl.u32 %v3745, 7
        %v3747 = vsub.s32 %v3744, %v3746
        %v3748 = vrot.slane %v3740, %v3747
        %v3750 = vunpack.c.l.s4 1934713408
        %v3751 = vunpack.c.0.s8 %v3750
        %v3752 = vlaneseq
        %v3753 = vshrl.u32 %v3752, 7
        %v3754 = vsub.s32 %v3751, %v3753
        %v3755 = vrot.slane %v3741, %v3754
        %v3756 = vcombine.low %v3707, %v3707
        %v3757 = vcombine.high %v3707, %v3707
        %v3759 = vunpack.c.l.s4 1934713408
        %v3760 = vunpack.c.0.s8 %v3759
        %v3761 = vlaneseq
        %v3762 = vshrl.u32 %v3761, 7
        %v3763 = vsub.s32 %v3760, %v3762
        %v3764 = vrot.slane %v3756, %v3763
        %v3766 = vunpack.c.l.s4 1934713408
        %v3767 = vunpack.c.0.s8 %v3766
        %v3768 = vlaneseq
        %v3769 = vshrl.u32 %v3768, 7
        %v3770 = vsub.s32 %v3767, %v3769
        %v3771 = vrot.slane %v3757, %v3770
        %v3772 = vcombine.low %v3716, %v3748
        %v3773 = vcombine.high %v3716, %v3748
        %v3774 = vcombine.low %v3723, %v3755
        %v3775 = vcombine.high %v3723, %v3755
        %v3776 = vcombine.low %v3732, %v3764
        %v3777 = vcombine.high %v3732, %v3764
        %v3778 = vcombine.low %v3739, %v3771
        %v3779 = vcombine.high %v3739, %v3771
        %v3780 = vcombine.low %v702, %v713
        %v3781 = vcombine.high %v702, %v713
        %v3783 = vunpack.c.l.s4 1983009808
        %v3784 = vunpack.c.0.s8 %v3783
        %v3785 = vlaneseq
        %v3786 = vshrl.u32 %v3785, 7
        %v3787 = vsub.s32 %v3784, %v3786
        %v3788 = vrot.slane %v3780, %v3787
        %v3790 = vunpack.c.l.s4 1983009808
        %v3791 = vunpack.c.0.s8 %v3790
        %v3792 = vlaneseq
        %v3793 = vshrl.u32 %v3792, 7
        %v3794 = vsub.s32 %v3791, %v3793
        %v3795 = vrot.slane %v3781, %v3794
        %v3796 = vcombine.low %v724, %v735
        %v3797 = vcombine.high %v724, %v735
        %v3799 = vunpack.c.l.s4 1983009808
        %v3800 = vunpack.c.0.s8 %v3799
        %v3801 = vlaneseq
        %v3802 = vshrl.u32 %v3801, 7
        %v3803 = vsub.s32 %v3800, %v3802
        %v3804 = vrot.slane %v3796, %v3803
        %v3806 = vunpack.c.l.s4 1983009808
        %v3807 = vunpack.c.0.s8 %v3806
        %v3808 = vlaneseq
        %v3809 = vshrl.u32 %v3808, 7
        %v3810 = vsub.s32 %v3807, %v3809
        %v3811 = vrot.slane %v3797, %v3810
        %v3812 = vcombine.low %v3788, %v3788
        %v3813 = vcombine.high %v3788, %v3788
        %v3815 = vunpack.c.l.s4 1934713408
        %v3816 = vunpack.c.0.s8 %v3815
        %v3817 = vlaneseq
        %v3818 = vshrl.u32 %v3817, 7
        %v3819 = vsub.s32 %v3816, %v3818
        %v3820 = vrot.slane %v3812, %v3819
        %v3822 = vunpack.c.l.s4 1934713408
        %v3823 = vunpack.c.0.s8 %v3822
        %v3824 = vlaneseq
        %v3825 = vshrl.u32 %v3824, 7
        %v3826 = vsub.s32 %v3823, %v3825
        %v3827 = vrot.slane %v3813, %v3826
        %v3828 = vcombine.low %v3795, %v3795
        %v3829 = vcombine.high %v3795, %v3795
        %v3831 = vunpack.c.l.s4 1934713408
        %v3832 = vunpack.c.0.s8 %v3831
        %v3833 = vlaneseq
        %v3834 = vshrl.u32 %v3833, 7
        %v3835 = vsub.s32 %v3832, %v3834
        %v3836 = vrot.slane %v3828, %v3835
        %v3838 = vunpack.c.l.s4 1934713408
        %v3839 = vunpack.c.0.s8 %v3838
        %v3840 = vlaneseq
        %v3841 = vshrl.u32 %v3840, 7
        %v3842 = vsub.s32 %v3839, %v3841
        %v3843 = vrot.slane %v3829, %v3842
        %v3844 = vcombine.low %v3804, %v3804
        %v3845 = vcombine.high %v3804, %v3804
        %v3847 = vunpack.c.l.s4 1934713408
        %v3848 = vunpack.c.0.s8 %v3847
        %v3849 = vlaneseq
        %v3850 = vshrl.u32 %v3849, 7
        %v3851 = vsub.s32 %v3848, %v3850
        %v3852 = vrot.slane %v3844, %v3851
        %v3854 = vunpack.c.l.s4 1934713408
        %v3855 = vunpack.c.0.s8 %v3854
        %v3856 = vlaneseq
        %v3857 = vshrl.u32 %v3856, 7
        %v3858 = vsub.s32 %v3855, %v3857
        %v3859 = vrot.slane %v3845, %v3858
        %v3860 = vcombine.low %v3811, %v3811
        %v3861 = vcombine.high %v3811, %v3811
        %v3863 = vunpack.c.l.s4 1934713408
        %v3864 = vunpack.c.0.s8 %v3863
        %v3865 = vlaneseq
        %v3866 = vshrl.u32 %v3865, 7
        %v3867 = vsub.s32 %v3864, %v3866
        %v3868 = vrot.slane %v3860, %v3867
        %v3870 = vunpack.c.l.s4 1934713408
        %v3871 = vunpack.c.0.s8 %v3870
        %v3872 = vlaneseq
        %v3873 = vshrl.u32 %v3872, 7
        %v3874 = vsub.s32 %v3871, %v3873
        %v3875 = vrot.slane %v3861, %v3874
        %v3876 = vcombine.low %v3820, %v3852
        %v3877 = vcombine.high %v3820, %v3852
        %v3878 = vcombine.low %v3827, %v3859
        %v3879 = vcombine.high %v3827, %v3859
        %v3880 = vcombine.low %v3836, %v3868
        %v3881 = vcombine.high %v3836, %v3868
        %v3882 = vcombine.low %v3843, %v3875
        %v3883 = vcombine.high %v3843, %v3875
        %v3884 = vcombine.low %v746, %v757
        %v3885 = vcombine.high %v746, %v757
        %v3887 = vunpack.c.l.s4 1983009808
        %v3888 = vunpack.c.0.s8 %v3887
        %v3889 = vlaneseq
        %v3890 = vshrl.u32 %v3889, 7
        %v3891 = vsub.s32 %v3888, %v3890
        %v3892 = vrot.slane %v3884, %v3891
        %v3894 = vunpack.c.l.s4 1983009808
        %v3895 = vunpack.c.0.s8 %v3894
        %v3896 = vlaneseq
        %v3897 = vshrl.u32 %v3896, 7
        %v3898 = vsub.s32 %v3895, %v3897
        %v3899 = vrot.slane %v3885, %v3898
        %v3900 = vcombine.low %v768, %v779
        %v3901 = vcombine.high %v768, %v779
        %v3903 = vunpack.c.l.s4 1983009808
        %v3904 = vunpack.c.0.s8 %v3903
        %v3905 = vlaneseq
        %v3906 = vshrl.u32 %v3905, 7
        %v3907 = vsub.s32 %v3904, %v3906
        %v3908 = vrot.slane %v3900, %v3907
        %v3910 = vunpack.c.l.s4 1983009808
        %v3911 = vunpack.c.0.s8 %v3910
        %v3912 = vlaneseq
        %v3913 = vshrl.u32 %v3912, 7
        %v3914 = vsub.s32 %v3911, %v3913
        %v3915 = vrot.slane %v3901, %v3914
        %v3916 = vcombine.low %v3892, %v3892
        %v3917 = vcombine.high %v3892, %v3892
        %v3919 = vunpack.c.l.s4 1934713408
        %v3920 = vunpack.c.0.s8 %v3919
        %v3921 = vlaneseq
        %v3922 = vshrl.u32 %v3921, 7
        %v3923 = vsub.s32 %v3920, %v3922
        %v3924 = vrot.slane %v3916, %v3923
        %v3926 = vunpack.c.l.s4 1934713408
        %v3927 = vunpack.c.0.s8 %v3926
        %v3928 = vlaneseq
        %v3929 = vshrl.u32 %v3928, 7
        %v3930 = vsub.s32 %v3927, %v3929
        %v3931 = vrot.slane %v3917, %v3930
        %v3932 = vcombine.low %v3899, %v3899
        %v3933 = vcombine.high %v3899, %v3899
        %v3935 = vunpack.c.l.s4 1934713408
        %v3936 = vunpack.c.0.s8 %v3935
        %v3937 = vlaneseq
        %v3938 = vshrl.u32 %v3937, 7
        %v3939 = vsub.s32 %v3936, %v3938
        %v3940 = vrot.slane %v3932, %v3939
        %v3942 = vunpack.c.l.s4 1934713408
        %v3943 = vunpack.c.0.s8 %v3942
        %v3944 = vlaneseq
        %v3945 = vshrl.u32 %v3944, 7
        %v3946 = vsub.s32 %v3943, %v3945
        %v3947 = vrot.slane %v3933, %v3946
        %v3948 = vcombine.low %v3908, %v3908
        %v3949 = vcombine.high %v3908, %v3908
        %v3951 = vunpack.c.l.s4 1934713408
        %v3952 = vunpack.c.0.s8 %v3951
        %v3953 = vlaneseq
        %v3954 = vshrl.u32 %v3953, 7
        %v3955 = vsub.s32 %v3952, %v3954
        %v3956 = vrot.slane %v3948, %v3955
        %v3958 = vunpack.c.l.s4 1934713408
        %v3959 = vunpack.c.0.s8 %v3958
        %v3960 = vlaneseq
        %v3961 = vshrl.u32 %v3960, 7
        %v3962 = vsub.s32 %v3959, %v3961
        %v3963 = vrot.slane %v3949, %v3962
        %v3964 = vcombine.low %v3915, %v3915
        %v3965 = vcombine.high %v3915, %v3915
        %v3967 = vunpack.c.l.s4 1934713408
        %v3968 = vunpack.c.0.s8 %v3967
        %v3969 = vlaneseq
        %v3970 = vshrl.u32 %v3969, 7
        %v3971 = vsub.s32 %v3968, %v3970
        %v3972 = vrot.slane %v3964, %v3971
        %v3974 = vunpack.c.l.s4 1934713408
        %v3975 = vunpack.c.0.s8 %v3974
        %v3976 = vlaneseq
        %v3977 = vshrl.u32 %v3976, 7
        %v3978 = vsub.s32 %v3975, %v3977
        %v3979 = vrot.slane %v3965, %v3978
        %v3980 = vcombine.low %v3924, %v3956
        %v3981 = vcombine.high %v3924, %v3956
        %v3982 = vcombine.low %v3931, %v3963
        %v3983 = vcombine.high %v3931, %v3963
        %v3984 = vcombine.low %v3940, %v3972
        %v3985 = vcombine.high %v3940, %v3972
        %v3986 = vcombine.low %v3947, %v3979
        %v3987 = vcombine.high %v3947, %v3979
        %v3988 = vcombine.low %v790, %v801
        %v3989 = vcombine.high %v790, %v801
        %v3991 = vunpack.c.l.s4 1983009808
        %v3992 = vunpack.c.0.s8 %v3991
        %v3993 = vlaneseq
        %v3994 = vshrl.u32 %v3993, 7
        %v3995 = vsub.s32 %v3992, %v3994
        %v3996 = vrot.slane %v3988, %v3995
        %v3998 = vunpack.c.l.s4 1983009808
        %v3999 = vunpack.c.0.s8 %v3998
        %v4000 = vlaneseq
        %v4001 = vshrl.u32 %v4000, 7
        %v4002 = vsub.s32 %v3999, %v4001
        %v4003 = vrot.slane %v3989, %v4002
        %v4004 = vcombine.low %v812, %v823
        %v4005 = vcombine.high %v812, %v823
        %v4007 = vunpack.c.l.s4 1983009808
        %v4008 = vunpack.c.0.s8 %v4007
        %v4009 = vlaneseq
        %v4010 = vshrl.u32 %v4009, 7
        %v4011 = vsub.s32 %v4008, %v4010
        %v4012 = vrot.slane %v4004, %v4011
        %v4014 = vunpack.c.l.s4 1983009808
        %v4015 = vunpack.c.0.s8 %v4014
        %v4016 = vlaneseq
        %v4017 = vshrl.u32 %v4016, 7
        %v4018 = vsub.s32 %v4015, %v4017
        %v4019 = vrot.slane %v4005, %v4018
        %v4020 = vcombine.low %v3996, %v3996
        %v4021 = vcombine.high %v3996, %v3996
        %v4023 = vunpack.c.l.s4 1934713408
        %v4024 = vunpack.c.0.s8 %v4023
        %v4025 = vlaneseq
        %v4026 = vshrl.u32 %v4025, 7
        %v4027 = vsub.s32 %v4024, %v4026
        %v4028 = vrot.slane %v4020, %v4027
        %v4030 = vunpack.c.l.s4 1934713408
        %v4031 = vunpack.c.0.s8 %v4030
        %v4032 = vlaneseq
        %v4033 = vshrl.u32 %v4032, 7
        %v4034 = vsub.s32 %v4031, %v4033
        %v4035 = vrot.slane %v4021, %v4034
        %v4036 = vcombine.low %v4003, %v4003
        %v4037 = vcombine.high %v4003, %v4003
        %v4039 = vunpack.c.l.s4 1934713408
        %v4040 = vunpack.c.0.s8 %v4039
        %v4041 = vlaneseq
        %v4042 = vshrl.u32 %v4041, 7
        %v4043 = vsub.s32 %v4040, %v4042
        %v4044 = vrot.slane %v4036, %v4043
        %v4046 = vunpack.c.l.s4 1934713408
        %v4047 = vunpack.c.0.s8 %v4046
        %v4048 = vlaneseq
        %v4049 = vshrl.u32 %v4048, 7
        %v4050 = vsub.s32 %v4047, %v4049
        %v4051 = vrot.slane %v4037, %v4050
        %v4052 = vcombine.low %v4012, %v4012
        %v4053 = vcombine.high %v4012, %v4012
        %v4055 = vunpack.c.l.s4 1934713408
        %v4056 = vunpack.c.0.s8 %v4055
        %v4057 = vlaneseq
        %v4058 = vshrl.u32 %v4057, 7
        %v4059 = vsub.s32 %v4056, %v4058
        %v4060 = vrot.slane %v4052, %v4059
        %v4062 = vunpack.c.l.s4 1934713408
        %v4063 = vunpack.c.0.s8 %v4062
        %v4064 = vlaneseq
        %v4065 = vshrl.u32 %v4064, 7
        %v4066 = vsub.s32 %v4063, %v4065
        %v4067 = vrot.slane %v4053, %v4066
        %v4068 = vcombine.low %v4019, %v4019
        %v4069 = vcombine.high %v4019, %v4019
        %v4071 = vunpack.c.l.s4 1934713408
        %v4072 = vunpack.c.0.s8 %v4071
        %v4073 = vlaneseq
        %v4074 = vshrl.u32 %v4073, 7
        %v4075 = vsub.s32 %v4072, %v4074
        %v4076 = vrot.slane %v4068, %v4075
        %v4078 = vunpack.c.l.s4 1934713408
        %v4079 = vunpack.c.0.s8 %v4078
        %v4080 = vlaneseq
        %v4081 = vshrl.u32 %v4080, 7
        %v4082 = vsub.s32 %v4079, %v4081
        %v4083 = vrot.slane %v4069, %v4082
        %v4084 = vcombine.low %v4028, %v4060
        %v4085 = vcombine.high %v4028, %v4060
        %v4086 = vcombine.low %v4035, %v4067
        %v4087 = vcombine.high %v4035, %v4067
        %v4088 = vcombine.low %v4044, %v4076
        %v4089 = vcombine.high %v4044, %v4076
        %v4090 = vcombine.low %v4051, %v4083
        %v4091 = vcombine.high %v4051, %v4083
        %v4092 = vcombine.low %v834, %v845
        %v4093 = vcombine.high %v834, %v845
        %v4095 = vunpack.c.l.s4 1983009808
        %v4096 = vunpack.c.0.s8 %v4095
        %v4097 = vlaneseq
        %v4098 = vshrl.u32 %v4097, 7
        %v4099 = vsub.s32 %v4096, %v4098
        %v4100 = vrot.slane %v4092, %v4099
        %v4102 = vunpack.c.l.s4 1983009808
        %v4103 = vunpack.c.0.s8 %v4102
        %v4104 = vlaneseq
        %v4105 = vshrl.u32 %v4104, 7
        %v4106 = vsub.s32 %v4103, %v4105
        %v4107 = vrot.slane %v4093, %v4106
        %v4108 = vcombine.low %v856, %v867
        %v4109 = vcombine.high %v856, %v867
        %v4111 = vunpack.c.l.s4 1983009808
        %v4112 = vunpack.c.0.s8 %v4111
        %v4113 = vlaneseq
        %v4114 = vshrl.u32 %v4113, 7
        %v4115 = vsub.s32 %v4112, %v4114
        %v4116 = vrot.slane %v4108, %v4115
        %v4118 = vunpack.c.l.s4 1983009808
        %v4119 = vunpack.c.0.s8 %v4118
        %v4120 = vlaneseq
        %v4121 = vshrl.u32 %v4120, 7
        %v4122 = vsub.s32 %v4119, %v4121
        %v4123 = vrot.slane %v4109, %v4122
        %v4124 = vcombine.low %v4100, %v4100
        %v4125 = vcombine.high %v4100, %v4100
        %v4127 = vunpack.c.l.s4 1934713408
        %v4128 = vunpack.c.0.s8 %v4127
        %v4129 = vlaneseq
        %v4130 = vshrl.u32 %v4129, 7
        %v4131 = vsub.s32 %v4128, %v4130
        %v4132 = vrot.slane %v4124, %v4131
        %v4134 = vunpack.c.l.s4 1934713408
        %v4135 = vunpack.c.0.s8 %v4134
        %v4136 = vlaneseq
        %v4137 = vshrl.u32 %v4136, 7
        %v4138 = vsub.s32 %v4135, %v4137
        %v4139 = vrot.slane %v4125, %v4138
        %v4140 = vcombine.low %v4107, %v4107
        %v4141 = vcombine.high %v4107, %v4107
        %v4143 = vunpack.c.l.s4 1934713408
        %v4144 = vunpack.c.0.s8 %v4143
        %v4145 = vlaneseq
        %v4146 = vshrl.u32 %v4145, 7
        %v4147 = vsub.s32 %v4144, %v4146
        %v4148 = vrot.slane %v4140, %v4147
        %v4150 = vunpack.c.l.s4 1934713408
        %v4151 = vunpack.c.0.s8 %v4150
        %v4152 = vlaneseq
        %v4153 = vshrl.u32 %v4152, 7
        %v4154 = vsub.s32 %v4151, %v4153
        %v4155 = vrot.slane %v4141, %v4154
        %v4156 = vcombine.low %v4116, %v4116
        %v4157 = vcombine.high %v4116, %v4116
        %v4159 = vunpack.c.l.s4 1934713408
        %v4160 = vunpack.c.0.s8 %v4159
        %v4161 = vlaneseq
        %v4162 = vshrl.u32 %v4161, 7
        %v4163 = vsub.s32 %v4160, %v4162
        %v4164 = vrot.slane %v4156, %v4163
        %v4166 = vunpack.c.l.s4 1934713408
        %v4167 = vunpack.c.0.s8 %v4166
        %v4168 = vlaneseq
        %v4169 = vshrl.u32 %v4168, 7
        %v4170 = vsub.s32 %v4167, %v4169
        %v4171 = vrot.slane %v4157, %v4170
        %v4172 = vcombine.low %v4123, %v4123
        %v4173 = vcombine.high %v4123, %v4123
        %v4175 = vunpack.c.l.s4 1934713408
        %v4176 = vunpack.c.0.s8 %v4175
        %v4177 = vlaneseq
        %v4178 = vshrl.u32 %v4177, 7
        %v4179 = vsub.s32 %v4176, %v4178
        %v4180 = vrot.slane %v4172, %v4179
        %v4182 = vunpack.c.l.s4 1934713408
        %v4183 = vunpack.c.0.s8 %v4182
        %v4184 = vlaneseq
        %v4185 = vshrl.u32 %v4184, 7
        %v4186 = vsub.s32 %v4183, %v4185
        %v4187 = vrot.slane %v4173, %v4186
        %v4188 = vcombine.low %v4132, %v4164
        %v4189 = vcombine.high %v4132, %v4164
        %v4190 = vcombine.low %v4139, %v4171
        %v4191 = vcombine.high %v4139, %v4171
        %v4192 = vcombine.low %v4148, %v4180
        %v4193 = vcombine.high %v4148, %v4180
        %v4194 = vcombine.low %v4155, %v4187
        %v4195 = vcombine.high %v4155, %v4187
        %4212 = vrot.lane.b32.xlu0 %v965, 2
        %v4213 = vpop.permute.xlu0 %4212
        %4214 = vrot.lane.b32.xlu0 %v1069, 2
        %v4215 = vpop.permute.xlu0 %4214
        %4216 = vrot.lane.b32.xlu0 %v1173, 2
        %v4217 = vpop.permute.xlu0 %4216
        %4218 = vrot.lane.b32.xlu0 %v1277, 2
        %v4219 = vpop.permute.xlu0 %4218
        %4220 = vrot.lane.b32.xlu0 %v1797, 2
        %v4221 = vpop.permute.xlu0 %4220
        %4222 = vrot.lane.b32.xlu0 %v1901, 2
        %v4223 = vpop.permute.xlu0 %4222
        %4224 = vrot.lane.b32.xlu0 %v2005, 2
        %v4225 = vpop.permute.xlu0 %4224
        %4226 = vrot.lane.b32.xlu0 %v2109, 2
        %v4227 = vpop.permute.xlu0 %4226
        %4228 = vrot.lane.b32.xlu0 %v2629, 2
        %v4229 = vpop.permute.xlu0 %4228
        %4230 = vrot.lane.b32.xlu0 %v2733, 2
        %v4231 = vpop.permute.xlu0 %4230
        %4232 = vrot.lane.b32.xlu0 %v2837, 2
        %v4233 = vpop.permute.xlu0 %4232
        %4234 = vrot.lane.b32.xlu0 %v2941, 2
        %v4235 = vpop.permute.xlu0 %4234
        %4236 = vrot.lane.b32.xlu0 %v3461, 2
        %v4237 = vpop.permute.xlu0 %4236
        %4238 = vrot.lane.b32.xlu0 %v3565, 2
        %v4239 = vpop.permute.xlu0 %4238
        %4240 = vrot.lane.b32.xlu0 %v3669, 2
        %v4241 = vpop.permute.xlu0 %4240
        %4242 = vrot.lane.b32.xlu0 %v3773, 2
        %v4243 = vpop.permute.xlu0 %4242
        %4276 = vrot.lane.b32.xlu0 %v966, 4
        %v4277 = vpop.permute.xlu0 %4276
        %4278 = vrot.lane.b32.xlu0 %v1070, 4
        %v4279 = vpop.permute.xlu0 %4278
        %4280 = vrot.lane.b32.xlu0 %v1174, 4
        %v4281 = vpop.permute.xlu0 %4280
        %4282 = vrot.lane.b32.xlu0 %v1278, 4
        %v4283 = vpop.permute.xlu0 %4282
        %4284 = vrot.lane.b32.xlu0 %v1798, 4
        %v4285 = vpop.permute.xlu0 %4284
        %4286 = vrot.lane.b32.xlu0 %v1902, 4
        %v4287 = vpop.permute.xlu0 %4286
        %4288 = vrot.lane.b32.xlu0 %v2006, 4
        %v4289 = vpop.permute.xlu0 %4288
        %4290 = vrot.lane.b32.xlu0 %v2110, 4
        %v4291 = vpop.permute.xlu0 %4290
        %4292 = vrot.lane.b32.xlu0 %v2630, 4
        %v4293 = vpop.permute.xlu0 %4292
        %4294 = vrot.lane.b32.xlu0 %v2734, 4
        %v4295 = vpop.permute.xlu0 %4294
        %4296 = vrot.lane.b32.xlu0 %v2838, 4
        %v4297 = vpop.permute.xlu0 %4296
        %4298 = vrot.lane.b32.xlu0 %v2942, 4
        %v4299 = vpop.permute.xlu0 %4298
        %4300 = vrot.lane.b32.xlu0 %v3462, 4
        %v4301 = vpop.permute.xlu0 %4300
        %4302 = vrot.lane.b32.xlu0 %v3566, 4
        %v4303 = vpop.permute.xlu0 %4302
        %4304 = vrot.lane.b32.xlu0 %v3670, 4
        %v4305 = vpop.permute.xlu0 %4304
        %4306 = vrot.lane.b32.xlu0 %v3774, 4
        %v4307 = vpop.permute.xlu0 %4306
        %4340 = vrot.lane.b32.xlu0 %v967, 6
        %v4341 = vpop.permute.xlu0 %4340
        %4342 = vrot.lane.b32.xlu0 %v1071, 6
        %v4343 = vpop.permute.xlu0 %4342
        %4344 = vrot.lane.b32.xlu0 %v1175, 6
        %v4345 = vpop.permute.xlu0 %4344
        %4346 = vrot.lane.b32.xlu0 %v1279, 6
        %v4347 = vpop.permute.xlu0 %4346
        %4348 = vrot.lane.b32.xlu0 %v1799, 6
        %v4349 = vpop.permute.xlu0 %4348
        %4350 = vrot.lane.b32.xlu0 %v1903, 6
        %v4351 = vpop.permute.xlu0 %4350
        %4352 = vrot.lane.b32.xlu0 %v2007, 6
        %v4353 = vpop.permute.xlu0 %4352
        %4354 = vrot.lane.b32.xlu0 %v2111, 6
        %v4355 = vpop.permute.xlu0 %4354
        %4356 = vrot.lane.b32.xlu0 %v2631, 6
        %v4357 = vpop.permute.xlu0 %4356
        %4358 = vrot.lane.b32.xlu0 %v2735, 6
        %v4359 = vpop.permute.xlu0 %4358
        %4360 = vrot.lane.b32.xlu0 %v2839, 6
        %v4361 = vpop.permute.xlu0 %4360
        %4362 = vrot.lane.b32.xlu0 %v2943, 6
        %v4363 = vpop.permute.xlu0 %4362
        %4364 = vrot.lane.b32.xlu0 %v3463, 6
        %v4365 = vpop.permute.xlu0 %4364
        %4366 = vrot.lane.b32.xlu0 %v3567, 6
        %v4367 = vpop.permute.xlu0 %4366
        %4368 = vrot.lane.b32.xlu0 %v3671, 6
        %v4369 = vpop.permute.xlu0 %4368
        %4370 = vrot.lane.b32.xlu0 %v3775, 6
        %v4371 = vpop.permute.xlu0 %4370
        %4404 = vrot.lane.b32.xlu0 %v968, 8
        %v4405 = vpop.permute.xlu0 %4404
        %4406 = vrot.lane.b32.xlu0 %v1072, 8
        %v4407 = vpop.permute.xlu0 %4406
        %4408 = vrot.lane.b32.xlu0 %v1176, 8
        %v4409 = vpop.permute.xlu0 %4408
        %4410 = vrot.lane.b32.xlu0 %v1280, 8
        %v4411 = vpop.permute.xlu0 %4410
        %4412 = vrot.lane.b32.xlu0 %v1800, 8
        %v4413 = vpop.permute.xlu0 %4412
        %4414 = vrot.lane.b32.xlu0 %v1904, 8
        %v4415 = vpop.permute.xlu0 %4414
        %4416 = vrot.lane.b32.xlu0 %v2008, 8
        %v4417 = vpop.permute.xlu0 %4416
        %4418 = vrot.lane.b32.xlu0 %v2112, 8
        %v4419 = vpop.permute.xlu0 %4418
        %4420 = vrot.lane.b32.xlu0 %v2632, 8
        %v4421 = vpop.permute.xlu0 %4420
        %4422 = vrot.lane.b32.xlu0 %v2736, 8
        %v4423 = vpop.permute.xlu0 %4422
        %4424 = vrot.lane.b32.xlu0 %v2840, 8
        %v4425 = vpop.permute.xlu0 %4424
        %4426 = vrot.lane.b32.xlu0 %v2944, 8
        %v4427 = vpop.permute.xlu0 %4426
        %4428 = vrot.lane.b32.xlu0 %v3464, 8
        %v4429 = vpop.permute.xlu0 %4428
        %4430 = vrot.lane.b32.xlu0 %v3568, 8
        %v4431 = vpop.permute.xlu0 %4430
        %4432 = vrot.lane.b32.xlu0 %v3672, 8
        %v4433 = vpop.permute.xlu0 %4432
        %4434 = vrot.lane.b32.xlu0 %v3776, 8
        %v4435 = vpop.permute.xlu0 %4434
        %4468 = vrot.lane.b32.xlu0 %v969, 10
        %v4469 = vpop.permute.xlu0 %4468
        %4470 = vrot.lane.b32.xlu0 %v1073, 10
        %v4471 = vpop.permute.xlu0 %4470
        %4472 = vrot.lane.b32.xlu0 %v1177, 10
        %v4473 = vpop.permute.xlu0 %4472
        %4474 = vrot.lane.b32.xlu0 %v1281, 10
        %v4475 = vpop.permute.xlu0 %4474
        %4476 = vrot.lane.b32.xlu0 %v1801, 10
        %v4477 = vpop.permute.xlu0 %4476
        %4478 = vrot.lane.b32.xlu0 %v1905, 10
        %v4479 = vpop.permute.xlu0 %4478
        %4480 = vrot.lane.b32.xlu0 %v2009, 10
        %v4481 = vpop.permute.xlu0 %4480
        %4482 = vrot.lane.b32.xlu0 %v2113, 10
        %v4483 = vpop.permute.xlu0 %4482
        %4484 = vrot.lane.b32.xlu0 %v2633, 10
        %v4485 = vpop.permute.xlu0 %4484
        %4486 = vrot.lane.b32.xlu0 %v2737, 10
        %v4487 = vpop.permute.xlu0 %4486
        %4488 = vrot.lane.b32.xlu0 %v2841, 10
        %v4489 = vpop.permute.xlu0 %4488
        %4490 = vrot.lane.b32.xlu0 %v2945, 10
        %v4491 = vpop.permute.xlu0 %4490
        %4492 = vrot.lane.b32.xlu0 %v3465, 10
        %v4493 = vpop.permute.xlu0 %4492
        %4494 = vrot.lane.b32.xlu0 %v3569, 10
        %v4495 = vpop.permute.xlu0 %4494
        %4496 = vrot.lane.b32.xlu0 %v3673, 10
        %v4497 = vpop.permute.xlu0 %4496
        %4498 = vrot.lane.b32.xlu0 %v3777, 10
        %v4499 = vpop.permute.xlu0 %4498
        %4532 = vrot.lane.b32.xlu0 %v970, 12
        %v4533 = vpop.permute.xlu0 %4532
        %4534 = vrot.lane.b32.xlu0 %v1074, 12
        %v4535 = vpop.permute.xlu0 %4534
        %4536 = vrot.lane.b32.xlu0 %v1178, 12
        %v4537 = vpop.permute.xlu0 %4536
        %4538 = vrot.lane.b32.xlu0 %v1282, 12
        %v4539 = vpop.permute.xlu0 %4538
        %4540 = vrot.lane.b32.xlu0 %v1802, 12
        %v4541 = vpop.permute.xlu0 %4540
        %4542 = vrot.lane.b32.xlu0 %v1906, 12
        %v4543 = vpop.permute.xlu0 %4542
        %4544 = vrot.lane.b32.xlu0 %v2010, 12
        %v4545 = vpop.permute.xlu0 %4544
        %4546 = vrot.lane.b32.xlu0 %v2114, 12
        %v4547 = vpop.permute.xlu0 %4546
        %4548 = vrot.lane.b32.xlu0 %v2634, 12
        %v4549 = vpop.permute.xlu0 %4548
        %4550 = vrot.lane.b32.xlu0 %v2738, 12
        %v4551 = vpop.permute.xlu0 %4550
        %4552 = vrot.lane.b32.xlu0 %v2842, 12
        %v4553 = vpop.permute.xlu0 %4552
        %4554 = vrot.lane.b32.xlu0 %v2946, 12
        %v4555 = vpop.permute.xlu0 %4554
        %4556 = vrot.lane.b32.xlu0 %v3466, 12
        %v4557 = vpop.permute.xlu0 %4556
        %4558 = vrot.lane.b32.xlu0 %v3570, 12
        %v4559 = vpop.permute.xlu0 %4558
        %4560 = vrot.lane.b32.xlu0 %v3674, 12
        %v4561 = vpop.permute.xlu0 %4560
        %4562 = vrot.lane.b32.xlu0 %v3778, 12
        %v4563 = vpop.permute.xlu0 %4562
        %4596 = vrot.lane.b32.xlu0 %v971, 14
        %v4597 = vpop.permute.xlu0 %4596
        %4598 = vrot.lane.b32.xlu0 %v1075, 14
        %v4599 = vpop.permute.xlu0 %4598
        %4600 = vrot.lane.b32.xlu0 %v1179, 14
        %v4601 = vpop.permute.xlu0 %4600
        %4602 = vrot.lane.b32.xlu0 %v1283, 14
        %v4603 = vpop.permute.xlu0 %4602
        %4604 = vrot.lane.b32.xlu0 %v1803, 14
        %v4605 = vpop.permute.xlu0 %4604
        %4606 = vrot.lane.b32.xlu0 %v1907, 14
        %v4607 = vpop.permute.xlu0 %4606
        %4608 = vrot.lane.b32.xlu0 %v2011, 14
        %v4609 = vpop.permute.xlu0 %4608
        %4610 = vrot.lane.b32.xlu0 %v2115, 14
        %v4611 = vpop.permute.xlu0 %4610
        %4612 = vrot.lane.b32.xlu0 %v2635, 14
        %v4613 = vpop.permute.xlu0 %4612
        %4614 = vrot.lane.b32.xlu0 %v2739, 14
        %v4615 = vpop.permute.xlu0 %4614
        %4616 = vrot.lane.b32.xlu0 %v2843, 14
        %v4617 = vpop.permute.xlu0 %4616
        %4618 = vrot.lane.b32.xlu0 %v2947, 14
        %v4619 = vpop.permute.xlu0 %4618
        %4620 = vrot.lane.b32.xlu0 %v3467, 14
        %v4621 = vpop.permute.xlu0 %4620
        %4622 = vrot.lane.b32.xlu0 %v3571, 14
        %v4623 = vpop.permute.xlu0 %4622
        %4624 = vrot.lane.b32.xlu0 %v3675, 14
        %v4625 = vpop.permute.xlu0 %4624
        %4626 = vrot.lane.b32.xlu0 %v3779, 14
        %v4627 = vpop.permute.xlu0 %4626
        %4660 = vrot.lane.b32.xlu0 %v1380, 16
        %v4661 = vpop.permute.xlu0 %4660
        %4662 = vrot.lane.b32.xlu0 %v1484, 16
        %v4663 = vpop.permute.xlu0 %4662
        %4664 = vrot.lane.b32.xlu0 %v1588, 16
        %v4665 = vpop.permute.xlu0 %4664
        %4666 = vrot.lane.b32.xlu0 %v1692, 16
        %v4667 = vpop.permute.xlu0 %4666
        %4668 = vrot.lane.b32.xlu0 %v2212, 16
        %v4669 = vpop.permute.xlu0 %4668
        %4670 = vrot.lane.b32.xlu0 %v2316, 16
        %v4671 = vpop.permute.xlu0 %4670
        %4672 = vrot.lane.b32.xlu0 %v2420, 16
        %v4673 = vpop.permute.xlu0 %4672
        %4674 = vrot.lane.b32.xlu0 %v2524, 16
        %v4675 = vpop.permute.xlu0 %4674
        %4676 = vrot.lane.b32.xlu0 %v3044, 16
        %v4677 = vpop.permute.xlu0 %4676
        %4678 = vrot.lane.b32.xlu0 %v3148, 16
        %v4679 = vpop.permute.xlu0 %4678
        %4680 = vrot.lane.b32.xlu0 %v3252, 16
        %v4681 = vpop.permute.xlu0 %4680
        %4682 = vrot.lane.b32.xlu0 %v3356, 16
        %v4683 = vpop.permute.xlu0 %4682
        %4684 = vrot.lane.b32.xlu0 %v3876, 16
        %v4685 = vpop.permute.xlu0 %4684
        %4686 = vrot.lane.b32.xlu0 %v3980, 16
        %v4687 = vpop.permute.xlu0 %4686
        %4688 = vrot.lane.b32.xlu0 %v4084, 16
        %v4689 = vpop.permute.xlu0 %4688
        %4690 = vrot.lane.b32.xlu0 %v4188, 16
        %v4691 = vpop.permute.xlu0 %4690
        %4724 = vrot.lane.b32.xlu0 %v1381, 18
        %v4725 = vpop.permute.xlu0 %4724
        %4726 = vrot.lane.b32.xlu0 %v1485, 18
        %v4727 = vpop.permute.xlu0 %4726
        %4728 = vrot.lane.b32.xlu0 %v1589, 18
        %v4729 = vpop.permute.xlu0 %4728
        %4730 = vrot.lane.b32.xlu0 %v1693, 18
        %v4731 = vpop.permute.xlu0 %4730
        %4732 = vrot.lane.b32.xlu0 %v2213, 18
        %v4733 = vpop.permute.xlu0 %4732
        %4734 = vrot.lane.b32.xlu0 %v2317, 18
        %v4735 = vpop.permute.xlu0 %4734
        %4736 = vrot.lane.b32.xlu0 %v2421, 18
        %v4737 = vpop.permute.xlu0 %4736
        %4738 = vrot.lane.b32.xlu0 %v2525, 18
        %v4739 = vpop.permute.xlu0 %4738
        %4740 = vrot.lane.b32.xlu0 %v3045, 18
        %v4741 = vpop.permute.xlu0 %4740
        %4742 = vrot.lane.b32.xlu0 %v3149, 18
        %v4743 = vpop.permute.xlu0 %4742
        %4744 = vrot.lane.b32.xlu0 %v3253, 18
        %v4745 = vpop.permute.xlu0 %4744
        %4746 = vrot.lane.b32.xlu0 %v3357, 18
        %v4747 = vpop.permute.xlu0 %4746
        %4748 = vrot.lane.b32.xlu0 %v3877, 18
        %v4749 = vpop.permute.xlu0 %4748
        %4750 = vrot.lane.b32.xlu0 %v3981, 18
        %v4751 = vpop.permute.xlu0 %4750
        %4752 = vrot.lane.b32.xlu0 %v4085, 18
        %v4753 = vpop.permute.xlu0 %4752
        %4754 = vrot.lane.b32.xlu0 %v4189, 18
        %v4755 = vpop.permute.xlu0 %4754
        %4788 = vrot.lane.b32.xlu0 %v1382, 20
        %v4789 = vpop.permute.xlu0 %4788
        %4790 = vrot.lane.b32.xlu0 %v1486, 20
        %v4791 = vpop.permute.xlu0 %4790
        %4792 = vrot.lane.b32.xlu0 %v1590, 20
        %v4793 = vpop.permute.xlu0 %4792
        %4794 = vrot.lane.b32.xlu0 %v1694, 20
        %v4795 = vpop.permute.xlu0 %4794
        %4796 = vrot.lane.b32.xlu0 %v2214, 20
        %v4797 = vpop.permute.xlu0 %4796
        %4798 = vrot.lane.b32.xlu0 %v2318, 20
        %v4799 = vpop.permute.xlu0 %4798
        %4800 = vrot.lane.b32.xlu0 %v2422, 20
        %v4801 = vpop.permute.xlu0 %4800
        %4802 = vrot.lane.b32.xlu0 %v2526, 20
        %v4803 = vpop.permute.xlu0 %4802
        %4804 = vrot.lane.b32.xlu0 %v3046, 20
        %v4805 = vpop.permute.xlu0 %4804
        %4806 = vrot.lane.b32.xlu0 %v3150, 20
        %v4807 = vpop.permute.xlu0 %4806
        %4808 = vrot.lane.b32.xlu0 %v3254, 20
        %v4809 = vpop.permute.xlu0 %4808
        %4810 = vrot.lane.b32.xlu0 %v3358, 20
        %v4811 = vpop.permute.xlu0 %4810
        %4812 = vrot.lane.b32.xlu0 %v3878, 20
        %v4813 = vpop.permute.xlu0 %4812
        %4814 = vrot.lane.b32.xlu0 %v3982, 20
        %v4815 = vpop.permute.xlu0 %4814
        %4816 = vrot.lane.b32.xlu0 %v4086, 20
        %v4817 = vpop.permute.xlu0 %4816
        %4818 = vrot.lane.b32.xlu0 %v4190, 20
        %v4819 = vpop.permute.xlu0 %4818
        %4852 = vrot.lane.b32.xlu0 %v1383, 22
        %v4853 = vpop.permute.xlu0 %4852
        %4854 = vrot.lane.b32.xlu0 %v1487, 22
        %v4855 = vpop.permute.xlu0 %4854
        %4856 = vrot.lane.b32.xlu0 %v1591, 22
        %v4857 = vpop.permute.xlu0 %4856
        %4858 = vrot.lane.b32.xlu0 %v1695, 22
        %v4859 = vpop.permute.xlu0 %4858
        %4860 = vrot.lane.b32.xlu0 %v2215, 22
        %v4861 = vpop.permute.xlu0 %4860
        %4862 = vrot.lane.b32.xlu0 %v2319, 22
        %v4863 = vpop.permute.xlu0 %4862
        %4864 = vrot.lane.b32.xlu0 %v2423, 22
        %v4865 = vpop.permute.xlu0 %4864
        %4866 = vrot.lane.b32.xlu0 %v2527, 22
        %v4867 = vpop.permute.xlu0 %4866
        %4868 = vrot.lane.b32.xlu0 %v3047, 22
        %v4869 = vpop.permute.xlu0 %4868
        %4870 = vrot.lane.b32.xlu0 %v3151, 22
        %v4871 = vpop.permute.xlu0 %4870
        %4872 = vrot.lane.b32.xlu0 %v3255, 22
        %v4873 = vpop.permute.xlu0 %4872
        %4874 = vrot.lane.b32.xlu0 %v3359, 22
        %v4875 = vpop.permute.xlu0 %4874
        %4876 = vrot.lane.b32.xlu0 %v3879, 22
        %v4877 = vpop.permute.xlu0 %4876
        %4878 = vrot.lane.b32.xlu0 %v3983, 22
        %v4879 = vpop.permute.xlu0 %4878
        %4880 = vrot.lane.b32.xlu0 %v4087, 22
        %v4881 = vpop.permute.xlu0 %4880
        %4882 = vrot.lane.b32.xlu0 %v4191, 22
        %v4883 = vpop.permute.xlu0 %4882
        %4916 = vrot.lane.b32.xlu0 %v1384, 24
        %v4917 = vpop.permute.xlu0 %4916
        %4918 = vrot.lane.b32.xlu0 %v1488, 24
        %v4919 = vpop.permute.xlu0 %4918
        %4920 = vrot.lane.b32.xlu0 %v1592, 24
        %v4921 = vpop.permute.xlu0 %4920
        %4922 = vrot.lane.b32.xlu0 %v1696, 24
        %v4923 = vpop.permute.xlu0 %4922
        %4924 = vrot.lane.b32.xlu0 %v2216, 24
        %v4925 = vpop.permute.xlu0 %4924
        %4926 = vrot.lane.b32.xlu0 %v2320, 24
        %v4927 = vpop.permute.xlu0 %4926
        %4928 = vrot.lane.b32.xlu0 %v2424, 24
        %v4929 = vpop.permute.xlu0 %4928
        %4930 = vrot.lane.b32.xlu0 %v2528, 24
        %v4931 = vpop.permute.xlu0 %4930
        %4932 = vrot.lane.b32.xlu0 %v3048, 24
        %v4933 = vpop.permute.xlu0 %4932
        %4934 = vrot.lane.b32.xlu0 %v3152, 24
        %v4935 = vpop.permute.xlu0 %4934
        %4936 = vrot.lane.b32.xlu0 %v3256, 24
        %v4937 = vpop.permute.xlu0 %4936
        %4938 = vrot.lane.b32.xlu0 %v3360, 24
        %v4939 = vpop.permute.xlu0 %4938
        %4940 = vrot.lane.b32.xlu0 %v3880, 24
        %v4941 = vpop.permute.xlu0 %4940
        %4942 = vrot.lane.b32.xlu0 %v3984, 24
        %v4943 = vpop.permute.xlu0 %4942
        %4944 = vrot.lane.b32.xlu0 %v4088, 24
        %v4945 = vpop.permute.xlu0 %4944
        %4946 = vrot.lane.b32.xlu0 %v4192, 24
        %v4947 = vpop.permute.xlu0 %4946
        %4980 = vrot.lane.b32.xlu0 %v1385, 26
        %v4981 = vpop.permute.xlu0 %4980
        %4982 = vrot.lane.b32.xlu0 %v1489, 26
        %v4983 = vpop.permute.xlu0 %4982
        %4984 = vrot.lane.b32.xlu0 %v1593, 26
        %v4985 = vpop.permute.xlu0 %4984
        %4986 = vrot.lane.b32.xlu0 %v1697, 26
        %v4987 = vpop.permute.xlu0 %4986
        %4988 = vrot.lane.b32.xlu0 %v2217, 26
        %v4989 = vpop.permute.xlu0 %4988
        %4990 = vrot.lane.b32.xlu0 %v2321, 26
        %v4991 = vpop.permute.xlu0 %4990
        %4992 = vrot.lane.b32.xlu0 %v2425, 26
        %v4993 = vpop.permute.xlu0 %4992
        %4994 = vrot.lane.b32.xlu0 %v2529, 26
        %v4995 = vpop.permute.xlu0 %4994
        %4996 = vrot.lane.b32.xlu0 %v3049, 26
        %v4997 = vpop.permute.xlu0 %4996
        %4998 = vrot.lane.b32.xlu0 %v3153, 26
        %v4999 = vpop.permute.xlu0 %4998
        %5000 = vrot.lane.b32.xlu0 %v3257, 26
        %v5001 = vpop.permute.xlu0 %5000
        %5002 = vrot.lane.b32.xlu0 %v3361, 26
        %v5003 = vpop.permute.xlu0 %5002
        %5004 = vrot.lane.b32.xlu0 %v3881, 26
        %v5005 = vpop.permute.xlu0 %5004
        %5006 = vrot.lane.b32.xlu0 %v3985, 26
        %v5007 = vpop.permute.xlu0 %5006
        %5008 = vrot.lane.b32.xlu0 %v4089, 26
        %v5009 = vpop.permute.xlu0 %5008
        %5010 = vrot.lane.b32.xlu0 %v4193, 26
        %v5011 = vpop.permute.xlu0 %5010
        %5044 = vrot.lane.b32.xlu0 %v1386, 28
        %v5045 = vpop.permute.xlu0 %5044
        %5046 = vrot.lane.b32.xlu0 %v1490, 28
        %v5047 = vpop.permute.xlu0 %5046
        %5048 = vrot.lane.b32.xlu0 %v1594, 28
        %v5049 = vpop.permute.xlu0 %5048
        %5050 = vrot.lane.b32.xlu0 %v1698, 28
        %v5051 = vpop.permute.xlu0 %5050
        %5052 = vrot.lane.b32.xlu0 %v2218, 28
        %v5053 = vpop.permute.xlu0 %5052
        %5054 = vrot.lane.b32.xlu0 %v2322, 28
        %v5055 = vpop.permute.xlu0 %5054
        %5056 = vrot.lane.b32.xlu0 %v2426, 28
        %v5057 = vpop.permute.xlu0 %5056
        %5058 = vrot.lane.b32.xlu0 %v2530, 28
        %v5059 = vpop.permute.xlu0 %5058
        %5060 = vrot.lane.b32.xlu0 %v3050, 28
        %v5061 = vpop.permute.xlu0 %5060
        %5062 = vrot.lane.b32.xlu0 %v3154, 28
        %v5063 = vpop.permute.xlu0 %5062
        %5064 = vrot.lane.b32.xlu0 %v3258, 28
        %v5065 = vpop.permute.xlu0 %5064
        %5066 = vrot.lane.b32.xlu0 %v3362, 28
        %v5067 = vpop.permute.xlu0 %5066
        %5068 = vrot.lane.b32.xlu0 %v3882, 28
        %v5069 = vpop.permute.xlu0 %5068
        %5070 = vrot.lane.b32.xlu0 %v3986, 28
        %v5071 = vpop.permute.xlu0 %5070
        %5072 = vrot.lane.b32.xlu0 %v4090, 28
        %v5073 = vpop.permute.xlu0 %5072
        %5074 = vrot.lane.b32.xlu0 %v4194, 28
        %v5075 = vpop.permute.xlu0 %5074
        %5108 = vrot.lane.b32.xlu0 %v1387, 30
        %v5109 = vpop.permute.xlu0 %5108
        %5110 = vrot.lane.b32.xlu0 %v1491, 30
        %v5111 = vpop.permute.xlu0 %5110
        %5112 = vrot.lane.b32.xlu0 %v1595, 30
        %v5113 = vpop.permute.xlu0 %5112
        %5114 = vrot.lane.b32.xlu0 %v1699, 30
        %v5115 = vpop.permute.xlu0 %5114
        %5116 = vrot.lane.b32.xlu0 %v2219, 30
        %v5117 = vpop.permute.xlu0 %5116
        %5118 = vrot.lane.b32.xlu0 %v2323, 30
        %v5119 = vpop.permute.xlu0 %5118
        %5120 = vrot.lane.b32.xlu0 %v2427, 30
        %v5121 = vpop.permute.xlu0 %5120
        %5122 = vrot.lane.b32.xlu0 %v2531, 30
        %v5123 = vpop.permute.xlu0 %5122
        %5124 = vrot.lane.b32.xlu0 %v3051, 30
        %v5125 = vpop.permute.xlu0 %5124
        %5126 = vrot.lane.b32.xlu0 %v3155, 30
        %v5127 = vpop.permute.xlu0 %5126
        %5128 = vrot.lane.b32.xlu0 %v3259, 30
        %v5129 = vpop.permute.xlu0 %5128
        %5130 = vrot.lane.b32.xlu0 %v3363, 30
        %v5131 = vpop.permute.xlu0 %5130
        %5132 = vrot.lane.b32.xlu0 %v3883, 30
        %v5133 = vpop.permute.xlu0 %5132
        %5134 = vrot.lane.b32.xlu0 %v3987, 30
        %v5135 = vpop.permute.xlu0 %5134
        %5136 = vrot.lane.b32.xlu0 %v4091, 30
        %v5137 = vpop.permute.xlu0 %5136
        %5138 = vrot.lane.b32.xlu0 %v4195, 30
        %v5139 = vpop.permute.xlu0 %5138
        %vm5156 = vcmask 15360
        %v5157 = vsel %vm5156, %v964, %v4213
        %v5158 = vsel %vm5156, %v1068, %v4215
        %v5159 = vsel %vm5156, %v1172, %v4217
        %v5160 = vsel %vm5156, %v1276, %v4219
        %v5161 = vsel %vm5156, %v1796, %v4221
        %v5162 = vsel %vm5156, %v1900, %v4223
        %v5163 = vsel %vm5156, %v2004, %v4225
        %v5164 = vsel %vm5156, %v2108, %v4227
        %v5165 = vsel %vm5156, %v2628, %v4229
        %v5166 = vsel %vm5156, %v2732, %v4231
        %v5167 = vsel %vm5156, %v2836, %v4233
        %v5168 = vsel %vm5156, %v2940, %v4235
        %v5169 = vsel %vm5156, %v3460, %v4237
        %v5170 = vsel %vm5156, %v3564, %v4239
        %v5171 = vsel %vm5156, %v3668, %v4241
        %v5172 = vsel %vm5156, %v3772, %v4243
        %vm5173 = vcmask 31744
        %v5174 = vsel %vm5173, %v5157, %v4277
        %v5175 = vsel %vm5173, %v5158, %v4279
        %v5176 = vsel %vm5173, %v5159, %v4281
        %v5177 = vsel %vm5173, %v5160, %v4283
        %v5178 = vsel %vm5173, %v5161, %v4285
        %v5179 = vsel %vm5173, %v5162, %v4287
        %v5180 = vsel %vm5173, %v5163, %v4289
        %v5181 = vsel %vm5173, %v5164, %v4291
        %v5182 = vsel %vm5173, %v5165, %v4293
        %v5183 = vsel %vm5173, %v5166, %v4295
        %v5184 = vsel %vm5173, %v5167, %v4297
        %v5185 = vsel %vm5173, %v5168, %v4299
        %v5186 = vsel %vm5173, %v5169, %v4301
        %v5187 = vsel %vm5173, %v5170, %v4303
        %v5188 = vsel %vm5173, %v5171, %v4305
        %v5189 = vsel %vm5173, %v5172, %v4307
        %vm5190 = vcmask 48128
        %v5191 = vsel %vm5190, %v5174, %v4341
        %v5192 = vsel %vm5190, %v5175, %v4343
        %v5193 = vsel %vm5190, %v5176, %v4345
        %v5194 = vsel %vm5190, %v5177, %v4347
        %v5195 = vsel %vm5190, %v5178, %v4349
        %v5196 = vsel %vm5190, %v5179, %v4351
        %v5197 = vsel %vm5190, %v5180, %v4353
        %v5198 = vsel %vm5190, %v5181, %v4355
        %v5199 = vsel %vm5190, %v5182, %v4357
        %v5200 = vsel %vm5190, %v5183, %v4359
        %v5201 = vsel %vm5190, %v5184, %v4361
        %v5202 = vsel %vm5190, %v5185, %v4363
        %v5203 = vsel %vm5190, %v5186, %v4365
        %v5204 = vsel %vm5190, %v5187, %v4367
        %v5205 = vsel %vm5190, %v5188, %v4369
        %v5206 = vsel %vm5190, %v5189, %v4371
        %vm5207 = vcmask 64512
        %v5208 = vsel %vm5207, %v5191, %v4405
        %v5209 = vsel %vm5207, %v5192, %v4407
        %v5210 = vsel %vm5207, %v5193, %v4409
        %v5211 = vsel %vm5207, %v5194, %v4411
        %v5212 = vsel %vm5207, %v5195, %v4413
        %v5213 = vsel %vm5207, %v5196, %v4415
        %v5214 = vsel %vm5207, %v5197, %v4417
        %v5215 = vsel %vm5207, %v5198, %v4419
        %v5216 = vsel %vm5207, %v5199, %v4421
        %v5217 = vsel %vm5207, %v5200, %v4423
        %v5218 = vsel %vm5207, %v5201, %v4425
        %v5219 = vsel %vm5207, %v5202, %v4427
        %v5220 = vsel %vm5207, %v5203, %v4429
        %v5221 = vsel %vm5207, %v5204, %v4431
        %v5222 = vsel %vm5207, %v5205, %v4433
        %v5223 = vsel %vm5207, %v5206, %v4435
        %vm5224 = vcmask 80896
        %v5225 = vsel %vm5224, %v5208, %v4469
        %v5226 = vsel %vm5224, %v5209, %v4471
        %v5227 = vsel %vm5224, %v5210, %v4473
        %v5228 = vsel %vm5224, %v5211, %v4475
        %v5229 = vsel %vm5224, %v5212, %v4477
        %v5230 = vsel %vm5224, %v5213, %v4479
        %v5231 = vsel %vm5224, %v5214, %v4481
        %v5232 = vsel %vm5224, %v5215, %v4483
        %v5233 = vsel %vm5224, %v5216, %v4485
        %v5234 = vsel %vm5224, %v5217, %v4487
        %v5235 = vsel %vm5224, %v5218, %v4489
        %v5236 = vsel %vm5224, %v5219, %v4491
        %v5237 = vsel %vm5224, %v5220, %v4493
        %v5238 = vsel %vm5224, %v5221, %v4495
        %v5239 = vsel %vm5224, %v5222, %v4497
        %v5240 = vsel %vm5224, %v5223, %v4499
        %vm5241 = vcmask 97280
        %v5242 = vsel %vm5241, %v5225, %v4533
        %v5243 = vsel %vm5241, %v5226, %v4535
        %v5244 = vsel %vm5241, %v5227, %v4537
        %v5245 = vsel %vm5241, %v5228, %v4539
        %v5246 = vsel %vm5241, %v5229, %v4541
        %v5247 = vsel %vm5241, %v5230, %v4543
        %v5248 = vsel %vm5241, %v5231, %v4545
        %v5249 = vsel %vm5241, %v5232, %v4547
        %v5250 = vsel %vm5241, %v5233, %v4549
        %v5251 = vsel %vm5241, %v5234, %v4551
        %v5252 = vsel %vm5241, %v5235, %v4553
        %v5253 = vsel %vm5241, %v5236, %v4555
        %v5254 = vsel %vm5241, %v5237, %v4557
        %v5255 = vsel %vm5241, %v5238, %v4559
        %v5256 = vsel %vm5241, %v5239, %v4561
        %v5257 = vsel %vm5241, %v5240, %v4563
        %vm5258 = vcmask 113664
        %v5259 = vsel %vm5258, %v5242, %v4597
        %v5260 = vsel %vm5258, %v5243, %v4599
        %v5261 = vsel %vm5258, %v5244, %v4601
        %v5262 = vsel %vm5258, %v5245, %v4603
        %v5263 = vsel %vm5258, %v5246, %v4605
        %v5264 = vsel %vm5258, %v5247, %v4607
        %v5265 = vsel %vm5258, %v5248, %v4609
        %v5266 = vsel %vm5258, %v5249, %v4611
        %v5267 = vsel %vm5258, %v5250, %v4613
        %v5268 = vsel %vm5258, %v5251, %v4615
        %v5269 = vsel %vm5258, %v5252, %v4617
        %v5270 = vsel %vm5258, %v5253, %v4619
        %v5271 = vsel %vm5258, %v5254, %v4621
        %v5272 = vsel %vm5258, %v5255, %v4623
        %v5273 = vsel %vm5258, %v5256, %v4625
        %v5274 = vsel %vm5258, %v5257, %v4627
        %vm5275 = vcmask 130048
        %v5276 = vsel %vm5275, %v5259, %v4661
        %v5277 = vsel %vm5275, %v5260, %v4663
        %v5278 = vsel %vm5275, %v5261, %v4665
        %v5279 = vsel %vm5275, %v5262, %v4667
        %v5280 = vsel %vm5275, %v5263, %v4669
        %v5281 = vsel %vm5275, %v5264, %v4671
        %v5282 = vsel %vm5275, %v5265, %v4673
        %v5283 = vsel %vm5275, %v5266, %v4675
        %v5284 = vsel %vm5275, %v5267, %v4677
        %v5285 = vsel %vm5275, %v5268, %v4679
        %v5286 = vsel %vm5275, %v5269, %v4681
        %v5287 = vsel %vm5275, %v5270, %v4683
        %v5288 = vsel %vm5275, %v5271, %v4685
        %v5289 = vsel %vm5275, %v5272, %v4687
        %v5290 = vsel %vm5275, %v5273, %v4689
        %v5291 = vsel %vm5275, %v5274, %v4691
        %vm5292 = vcmask 146432
        %v5293 = vsel %vm5292, %v5276, %v4725
        %v5294 = vsel %vm5292, %v5277, %v4727
        %v5295 = vsel %vm5292, %v5278, %v4729
        %v5296 = vsel %vm5292, %v5279, %v4731
        %v5297 = vsel %vm5292, %v5280, %v4733
        %v5298 = vsel %vm5292, %v5281, %v4735
        %v5299 = vsel %vm5292, %v5282, %v4737
        %v5300 = vsel %vm5292, %v5283, %v4739
        %v5301 = vsel %vm5292, %v5284, %v4741
        %v5302 = vsel %vm5292, %v5285, %v4743
        %v5303 = vsel %vm5292, %v5286, %v4745
        %v5304 = vsel %vm5292, %v5287, %v4747
        %v5305 = vsel %vm5292, %v5288, %v4749
        %v5306 = vsel %vm5292, %v5289, %v4751
        %v5307 = vsel %vm5292, %v5290, %v4753
        %v5308 = vsel %vm5292, %v5291, %v4755
        %vm5309 = vcmask 162816
        %v5310 = vsel %vm5309, %v5293, %v4789
        %v5311 = vsel %vm5309, %v5294, %v4791
        %v5312 = vsel %vm5309, %v5295, %v4793
        %v5313 = vsel %vm5309, %v5296, %v4795
        %v5314 = vsel %vm5309, %v5297, %v4797
        %v5315 = vsel %vm5309, %v5298, %v4799
        %v5316 = vsel %vm5309, %v5299, %v4801
        %v5317 = vsel %vm5309, %v5300, %v4803
        %v5318 = vsel %vm5309, %v5301, %v4805
        %v5319 = vsel %vm5309, %v5302, %v4807
        %v5320 = vsel %vm5309, %v5303, %v4809
        %v5321 = vsel %vm5309, %v5304, %v4811
        %v5322 = vsel %vm5309, %v5305, %v4813
        %v5323 = vsel %vm5309, %v5306, %v4815
        %v5324 = vsel %vm5309, %v5307, %v4817
        %v5325 = vsel %vm5309, %v5308, %v4819
        %vm5326 = vcmask 179200
        %v5327 = vsel %vm5326, %v5310, %v4853
        %v5328 = vsel %vm5326, %v5311, %v4855
        %v5329 = vsel %vm5326, %v5312, %v4857
        %v5330 = vsel %vm5326, %v5313, %v4859
        %v5331 = vsel %vm5326, %v5314, %v4861
        %v5332 = vsel %vm5326, %v5315, %v4863
        %v5333 = vsel %vm5326, %v5316, %v4865
        %v5334 = vsel %vm5326, %v5317, %v4867
        %v5335 = vsel %vm5326, %v5318, %v4869
        %v5336 = vsel %vm5326, %v5319, %v4871
        %v5337 = vsel %vm5326, %v5320, %v4873
        %v5338 = vsel %vm5326, %v5321, %v4875
        %v5339 = vsel %vm5326, %v5322, %v4877
        %v5340 = vsel %vm5326, %v5323, %v4879
        %v5341 = vsel %vm5326, %v5324, %v4881
        %v5342 = vsel %vm5326, %v5325, %v4883
        %vm5343 = vcmask 195584
        %v5344 = vsel %vm5343, %v5327, %v4917
        %v5345 = vsel %vm5343, %v5328, %v4919
        %v5346 = vsel %vm5343, %v5329, %v4921
        %v5347 = vsel %vm5343, %v5330, %v4923
        %v5348 = vsel %vm5343, %v5331, %v4925
        %v5349 = vsel %vm5343, %v5332, %v4927
        %v5350 = vsel %vm5343, %v5333, %v4929
        %v5351 = vsel %vm5343, %v5334, %v4931
        %v5352 = vsel %vm5343, %v5335, %v4933
        %v5353 = vsel %vm5343, %v5336, %v4935
        %v5354 = vsel %vm5343, %v5337, %v4937
        %v5355 = vsel %vm5343, %v5338, %v4939
        %v5356 = vsel %vm5343, %v5339, %v4941
        %v5357 = vsel %vm5343, %v5340, %v4943
        %v5358 = vsel %vm5343, %v5341, %v4945
        %v5359 = vsel %vm5343, %v5342, %v4947
        %vm5360 = vcmask 211968
        %v5361 = vsel %vm5360, %v5344, %v4981
        %v5362 = vsel %vm5360, %v5345, %v4983
        %v5363 = vsel %vm5360, %v5346, %v4985
        %v5364 = vsel %vm5360, %v5347, %v4987
        %v5365 = vsel %vm5360, %v5348, %v4989
        %v5366 = vsel %vm5360, %v5349, %v4991
        %v5367 = vsel %vm5360, %v5350, %v4993
        %v5368 = vsel %vm5360, %v5351, %v4995
        %v5369 = vsel %vm5360, %v5352, %v4997
        %v5370 = vsel %vm5360, %v5353, %v4999
        %v5371 = vsel %vm5360, %v5354, %v5001
        %v5372 = vsel %vm5360, %v5355, %v5003
        %v5373 = vsel %vm5360, %v5356, %v5005
        %v5374 = vsel %vm5360, %v5357, %v5007
        %v5375 = vsel %vm5360, %v5358, %v5009
        %v5376 = vsel %vm5360, %v5359, %v5011
        %vm5377 = vcmask 228352
        %v5378 = vsel %vm5377, %v5361, %v5045
        %v5379 = vsel %vm5377, %v5362, %v5047
        %v5380 = vsel %vm5377, %v5363, %v5049
        %v5381 = vsel %vm5377, %v5364, %v5051
        %v5382 = vsel %vm5377, %v5365, %v5053
        %v5383 = vsel %vm5377, %v5366, %v5055
        %v5384 = vsel %vm5377, %v5367, %v5057
        %v5385 = vsel %vm5377, %v5368, %v5059
        %v5386 = vsel %vm5377, %v5369, %v5061
        %v5387 = vsel %vm5377, %v5370, %v5063
        %v5388 = vsel %vm5377, %v5371, %v5065
        %v5389 = vsel %vm5377, %v5372, %v5067
        %v5390 = vsel %vm5377, %v5373, %v5069
        %v5391 = vsel %vm5377, %v5374, %v5071
        %v5392 = vsel %vm5377, %v5375, %v5073
        %v5393 = vsel %vm5377, %v5376, %v5075
        %vm5394 = vcmask 244736
        %v5395 = vsel %vm5394, %v5378, %v5109
        %v5396 = vsel %vm5394, %v5379, %v5111
        %v5397 = vsel %vm5394, %v5380, %v5113
        %v5398 = vsel %vm5394, %v5381, %v5115
        %v5399 = vsel %vm5394, %v5382, %v5117
        %v5400 = vsel %vm5394, %v5383, %v5119
        %v5401 = vsel %vm5394, %v5384, %v5121
        %v5402 = vsel %vm5394, %v5385, %v5123
        %v5403 = vsel %vm5394, %v5386, %v5125
        %v5404 = vsel %vm5394, %v5387, %v5127
        %v5405 = vsel %vm5394, %v5388, %v5129
        %v5406 = vsel %vm5394, %v5389, %v5131
        %v5407 = vsel %vm5394, %v5390, %v5133
        %v5408 = vsel %vm5394, %v5391, %v5135
        %v5409 = vsel %vm5394, %v5392, %v5137
        %v5410 = vsel %vm5394, %v5393, %v5139
        %vm5411 = vcmask 261120
        %5412 = vst.msk [vmem:[%s153] sm:$0xff] %vm5411, %v5395
        %5413 = vst.msk [vmem:[%s153 + $0x8] sm:$0xff] %vm5411, %v5396
        %5414 = vst.msk [vmem:[%s153 + $0x10] sm:$0xff] %vm5411, %v5397
        %5415 = vst.msk [vmem:[%s153 + $0x18] sm:$0xff] %vm5411, %v5398
        %5416 = vst.msk [vmem:[%s153 + $0x20] sm:$0xff] %vm5411, %v5399
        %5417 = vst.msk [vmem:[%s153 + $0x28] sm:$0xff] %vm5411, %v5400
        %5418 = vst.msk [vmem:[%s153 + $0x30] sm:$0xff] %vm5411, %v5401
        %5419 = vst.msk [vmem:[%s153 + $0x38] sm:$0xff] %vm5411, %v5402
        %5420 = vst.msk [vmem:[%s153 + $0x40] sm:$0xff] %vm5411, %v5403
        %5421 = vst.msk [vmem:[%s153 + $0x48] sm:$0xff] %vm5411, %v5404
        %5422 = vst.msk [vmem:[%s153 + $0x50] sm:$0xff] %vm5411, %v5405
        %5423 = vst.msk [vmem:[%s153 + $0x58] sm:$0xff] %vm5411, %v5406
        %5424 = vst.msk [vmem:[%s153 + $0x60] sm:$0xff] %vm5411, %v5407
        %5425 = vst.msk [vmem:[%s153 + $0x68] sm:$0xff] %vm5411, %v5408
        %5426 = vst.msk [vmem:[%s153 + $0x70] sm:$0xff] %vm5411, %v5409
        %5427 = vst.msk [vmem:[%s153 + $0x78] sm:$0xff] %vm5411, %v5410
        %s5428 = sand.u32 %s68, 1
        %s5429 = scalar_lea.sflag [#allocation4], %s5428
        %s5430 = sand.u32 %s68, 1
        %s5431 = smul.addr %s5430, 128
        %s5432 = scalar_lea.vmem [#allocation5], %s5431
        // Predicated region
        $region29: #{tpu_custom_call.1} parent=23 // pred_check
          %p5433 = pneg %p78
        $region30: #{tpu_custom_call.1} parent=23 // pred_check_branch
          %5435 = sbr.rel (%p5433) target = $region32
        $region31: #{tpu_custom_call.1} parent=23 // pred_region
          %s5436 = smul.u32 4, %s23
          %s5438 = ssub.s32 2048, 2048
          %5439 = vsyncadd %s5429, %s5438
          %s5440 = smul.addr %s5436, 4
          %s5441 = smul.addr %s22, 16
          %s5442 = sadd.s32 %s5440, %s5441
          %s5443 = smul.addr %s5442, 128
          %s5444 = scalar_lea.hbm %s1, %s5443
          %s5445 = sshll.u32 %s5432, 4
          %s5446 = int_to_ptr.vmem [resolvable:$true] %s5445
          %5451 = dma.vmem_to_hbm [thread:$0]  %s5446, 2048, %s5444, %s5429, 128, 128, 8
        $region32: #{tpu_custom_call.1} parent=23 // pred_fallthru
          _
      $region24: #{tpu_custom_call.1} parent=5 // pred_fallthru
        _
      %p5452 = scmp.le.s32.totalorder 2, %s13
      // Predicated region
      $region33: #{tpu_custom_call.1} parent=5 // pred_check
        %p5453 = pneg %p5452
      $region34: #{tpu_custom_call.1} parent=5 // pred_check_branch
        %5455 = sbr.rel (%p5453) target = $region36
      $region35: #{tpu_custom_call.1} parent=5 // pred_region
        %s5456 = ssub.s32 %s13, 2
        // Predicated region
        $region37: #{tpu_custom_call.1} parent=35 // pred_check
          %p5457 = pneg %p84
        $region38: #{tpu_custom_call.1} parent=35 // pred_check_branch
          %5459 = sbr.rel (%p5457) target = $region40
        $region39: #{tpu_custom_call.1} parent=35 // pred_region
          %s5460 = sand.u32 %s69, 1
          %s5461 = scalar_lea.sflag [#allocation4], %s5460
          %s5462 = sand.u32 %s69, 1
          %s5463 = smul.addr %s5462, 128
          %s5464 = scalar_lea.vmem [#allocation5], %s5463
          %5465 = dma.done %s5461, 2048
        $region40: #{tpu_custom_call.1} parent=35 // pred_fallthru
          _
      $region36: #{tpu_custom_call.1} parent=5 // pred_fallthru
        _
    $region6: #{tpu_custom_call.1} parent=1 // loop_footer
      %s17 = sadd.s32 1, %s13
    $region7: #{tpu_custom_call.1} parent=1 // loop_footer_branch
      %12 = sbr.rel target = $region3
    $region8: #{tpu_custom_call.1} parent=1 // loop_exit
      _
    %5466 = vsyncpa [#allocation3], 1
    %s5467 = scalar_lea.sflag [#allocation3], 1
    %5468 = vsyncpa %s5467, 1
    %5469 = vsyncpa [#allocation4], 1
    %s5470 = scalar_lea.sflag [#allocation4], 1
    %5471 = vsyncpa %s5470, 1

</llo_original>
